<compile_context>
chip_gen: v5e
topology: v5e:2x2
jax: 0.10.0
libtpu: 0.0.40
codegen_flags: <defaults>
</compile_context>

<pallas_src>
import math

import jax
import jax.numpy as jnp
from jax import lax
from jax.experimental import pallas as pl
from jax.experimental.pallas import tpu as pltpu

# ----------------------------- config -----------------------------
VOCAB = 100
MAX_POS = 16
HIDDEN = 32
HEADS = 4
HEAD_DIM = HIDDEN // HEADS
FFN = 64
LAYERS = 2
NUM_CLASSES = 3
LN_EPS = 1e-12
ATT_SCALE = 1.0 / math.sqrt(HEAD_DIM)
NEG_INF = -1e9


# ----------------------------- fused kernel -----------------------------
def _layernorm(x, gamma, beta):
    mu = jnp.mean(x, axis=-1, keepdims=True)
    var = jnp.mean(jnp.square(x - mu), axis=-1, keepdims=True)
    return (x - mu) * lax.rsqrt(var + LN_EPS) * gamma + beta


def _fused_bert_kernel(
    ids_ref, mask_ref,
    wemb_ref, pemb_ref, temb_ref,
    embg_ref, embb_ref,
    wq_ref, wk_ref, wv_ref, bq_ref, bk_ref, bv_ref,
    wo_ref, bo_ref,
    ln1g_ref, ln1b_ref,
    w1_ref, b1_ref, w2_ref, b2_ref,
    ln2g_ref, ln2b_ref,
    fcw_ref, fcb_ref,
    o_ref,
):
    B, S = mask_ref.shape
    N = B * S
    D = HIDDEN

    # ---- in-kernel embedding lookup: one-hot matmul on the MXU (no jnp.take glue) ----
    ids = ids_ref[...]                                              # [N, 1] int32
    vocab_iota = lax.broadcasted_iota(jnp.int32, (N, VOCAB), 1)
    onehot = (ids == vocab_iota).astype(jnp.bfloat16)               # [N, VOCAB]
    xw = jnp.dot(onehot, wemb_ref[...],
                 preferred_element_type=jnp.float32)                # [N, D] f32
    pos = pemb_ref[0:S, :]                                          # [S, D]
    typ = temb_ref[0:1, :]                                          # [1, D] (token_type 0)
    x = (xw.reshape(B, S, D) + pos[None, :, :] + typ[None, :, :]).reshape(N, D)

    # Embedding LayerNorm (f32).
    x = _layernorm(x, embg_ref[...], embb_ref[...])

    # ---- attention bias: computed in-kernel, broadcast hoisted out of all loops ----
    maskf = mask_ref[...].astype(jnp.float32)                       # [B, S]
    bias = jnp.broadcast_to(((1.0 - maskf) * NEG_INF)[:, None, :], (B, S, S))

    for l in range(LAYERS):                 # static unroll: all weights already in VMEM
        xb = x.astype(jnp.bfloat16)
        attn = jnp.zeros((N, D), jnp.float32)

        for h in range(HEADS):
            # Per-head projections: lane-dense outputs, no lane-axis slicing of x.
            # NOTE: 1/sqrt(head_dim) is folded into Wq/bq at init -> no per-score scale.
            q = jnp.dot(xb, wq_ref[l, h], preferred_element_type=jnp.float32) + bq_ref[l, h]
            k = jnp.dot(xb, wk_ref[l, h], preferred_element_type=jnp.float32) + bk_ref[l, h]
            v = jnp.dot(xb, wv_ref[l, h], preferred_element_type=jnp.float32) + bv_ref[l, h]

            qb = q.astype(jnp.bfloat16).reshape(B, S, HEAD_DIM)
            kb = k.astype(jnp.bfloat16).reshape(B, S, HEAD_DIM)
            vb = v.astype(jnp.bfloat16).reshape(B, S, HEAD_DIM)

            s = jnp.einsum("bqd,bkd->bqk", qb, kb,
                           preferred_element_type=jnp.float32) + bias
            m = jnp.max(s, axis=-1, keepdims=True)
            p = jnp.exp(s - m)
            p = p / jnp.sum(p, axis=-1, keepdims=True)              # exact softmax (f32)

            ctx = jnp.einsum("bqk,bkd->bqd", p.astype(jnp.bfloat16), vb,
                             preferred_element_type=jnp.float32)    # [B, S, Hd]

            # Head merge by accumulating per-head output projections (no lane concat).
            attn = attn + jnp.dot(ctx.reshape(N, HEAD_DIM).astype(jnp.bfloat16),
                                  wo_ref[l, h], preferred_element_type=jnp.float32)

        attn = attn + bo_ref[l]
        x = _layernorm(attn + x, ln1g_ref[l], ln1b_ref[l])

        # ---- fused FFN: W1 + GELU + W2 (intermediate never leaves VMEM) ----
        h1 = jnp.dot(x.astype(jnp.bfloat16), w1_ref[l],
                     preferred_element_type=jnp.float32) + b1_ref[l]
        # TODO(synk): HuggingFace BERT uses exact erf GELU; tanh approximation used here.
        h1 = jax.nn.gelu(h1, approximate=True)
        h2 = jnp.dot(h1.astype(jnp.bfloat16), w2_ref[l],
                     preferred_element_type=jnp.float32) + b2_ref[l]
        x = _layernorm(h2 + x, ln2g_ref[l], ln2b_ref[l])

    # ---- CLS pooling: direct row select (no one-hot matmul) ----
    pooled = x.reshape(B, S, D)[:, 0:1, :].reshape(B, D)            # token 0 of each seq

    # TODO(synk): nn.Dropout(0.1) is identity at inference; not applied here.
    logits = jnp.dot(pooled.astype(jnp.bfloat16), fcw_ref[...],
                     preferred_element_type=jnp.float32) + fcb_ref[...]
    o_ref[...] = logits.astype(o_ref.dtype)


# ----------------------------- parameters -----------------------------
def init_params(key):
    def nrm(k, shape, scale=0.02):
        return scale * jax.random.normal(k, shape, dtype=jnp.float32)

    keys = iter(jax.random.split(key, 16))
    bf = jnp.bfloat16
    params = {
        # matmul weights stored in bf16 (MXU operands); biases / LN params stay f32
        "word_emb": nrm(next(keys), (VOCAB, HIDDEN)).astype(bf),
        "pos_emb": nrm(next(keys), (MAX_POS, HIDDEN)),
        "type_emb": nrm(next(keys), (2, HIDDEN)),
        "emb_ln_g": jnp.ones((1, HIDDEN), jnp.float32),
        "emb_ln_b": jnp.zeros((1, HIDDEN), jnp.float32),
        # per-head projection weights [L, H, D, Hd]; 1/sqrt(Hd) folded into wq/bq
        "wq": (nrm(next(keys), (LAYERS, HEADS, HIDDEN, HEAD_DIM)) * ATT_SCALE).astype(bf),
        "wk": nrm(next(keys), (LAYERS, HEADS, HIDDEN, HEAD_DIM)).astype(bf),
        "wv": nrm(next(keys), (LAYERS, HEADS, HIDDEN, HEAD_DIM)).astype(bf),
        "bq": jnp.zeros((LAYERS, HEADS, 1, HEAD_DIM), jnp.float32),   # already "scaled" (zeros)
        "bk": jnp.zeros((LAYERS, HEADS, 1, HEAD_DIM), jnp.float32),
        "bv": jnp.zeros((LAYERS, HEADS, 1, HEAD_DIM), jnp.float32),
        # per-head output projection [L, H, Hd, D]
        "wo": nrm(next(keys), (LAYERS, HEADS, HEAD_DIM, HIDDEN)).astype(bf),
        "bo": jnp.zeros((LAYERS, 1, HIDDEN), jnp.float32),
        "ln1_g": jnp.ones((LAYERS, 1, HIDDEN), jnp.float32),
        "ln1_b": jnp.zeros((LAYERS, 1, HIDDEN), jnp.float32),
        "w1": nrm(next(keys), (LAYERS, HIDDEN, FFN)).astype(bf),
        "b1": jnp.zeros((LAYERS, 1, FFN), jnp.float32),
        "w2": nrm(next(keys), (LAYERS, FFN, HIDDEN)).astype(bf),
        "b2": jnp.zeros((LAYERS, 1, HIDDEN), jnp.float32),
        "ln2_g": jnp.ones((LAYERS, 1, HIDDEN), jnp.float32),
        "ln2_b": jnp.zeros((LAYERS, 1, HIDDEN), jnp.float32),
        "fc_w": nrm(next(keys), (HIDDEN, NUM_CLASSES)).astype(bf),
        "fc_b": jnp.zeros((1, NUM_CLASSES), jnp.float32),
    }
    return params


# ----------------------------- forward -----------------------------
def forward(params, input_ids, attention_mask):
    B, S = input_ids.shape

    # Only remaining wrapper glue: a trivial int reshape (embedding lookup, position/
    # type adds, LayerNorms, attention, FFN, pooling and the classifier all run in
    # ONE pallas_call).
    ids = input_ids.reshape(B * S, 1).astype(jnp.int32)
    mask = attention_mask.astype(jnp.int32)

    args = (
        ids, mask,
        params["word_emb"], params["pos_emb"], params["type_emb"],
        params["emb_ln_g"], params["emb_ln_b"],
        params["wq"], params["wk"], params["wv"],
        params["bq"], params["bk"], params["bv"],
        params["wo"], params["bo"],
        params["ln1_g"], params["ln1_b"],
        params["w1"], params["b1"], params["w2"], params["b2"],
        params["ln2_g"], params["ln2_b"],
        params["fc_w"], params["fc_b"],
    )
    # Single grid-less kernel invocation: every operand is a full-array VMEM block
    # (~70 KB total -> fits trivially on v5e/v6e/v7x, no pipelining needed).
    return pl.pallas_call(
        _fused_bert_kernel,
        out_shape=jax.ShapeDtypeStruct((B, NUM_CLASSES), jnp.float32),
        in_specs=[pl.BlockSpec(memory_space=pltpu.MemorySpace.VMEM) for _ in args],
        out_specs=pl.BlockSpec(memory_space=pltpu.MemorySpace.VMEM),
    )(*args)


# ----------------------------- main -----------------------------
if __name__ == "__main__":
    B, S = 2, 8
    key = jax.random.PRNGKey(0)
    k_ids, k_params = jax.random.split(key)

    input_ids = jax.random.randint(k_ids, (B, S), 0, VOCAB, dtype=jnp.int32)
    attention_mask = jnp.ones((B, S), dtype=jnp.int32).at[1, 6:].set(0)

    params = init_params(k_params)

    logits = jax.jit(forward)(params, input_ids, attention_mask)
    logits = jax.block_until_ready(logits)

    assert logits.shape == (B, NUM_CLASSES)
    assert logits.dtype == jnp.float32
    assert bool(jnp.all(jnp.isfinite(logits)))
    print("KERNEL_OK")
</pallas_src>

<mosaic_0001>
module attributes {stable_mosaic.version = 11 : i64} {
  func.func @_fused_bert_kernel(%arg0: memref<16x1xi32, #tpu.memory_space<vmem>>, %arg1: memref<2x8xi32, #tpu.memory_space<vmem>>, %arg2: memref<100x32xbf16, #tpu.memory_space<vmem>>, %arg3: memref<16x32xf32, #tpu.memory_space<vmem>>, %arg4: memref<2x32xf32, #tpu.memory_space<vmem>>, %arg5: memref<1x32xf32, #tpu.memory_space<vmem>>, %arg6: memref<1x32xf32, #tpu.memory_space<vmem>>, %arg7: memref<2x4x32x8xbf16, #tpu.memory_space<vmem>>, %arg8: memref<2x4x32x8xbf16, #tpu.memory_space<vmem>>, %arg9: memref<2x4x32x8xbf16, #tpu.memory_space<vmem>>, %arg10: memref<2x4x1x8xf32, #tpu.memory_space<vmem>>, %arg11: memref<2x4x1x8xf32, #tpu.memory_space<vmem>>, %arg12: memref<2x4x1x8xf32, #tpu.memory_space<vmem>>, %arg13: memref<2x4x8x32xbf16, #tpu.memory_space<vmem>>, %arg14: memref<2x1x32xf32, #tpu.memory_space<vmem>>, %arg15: memref<2x1x32xf32, #tpu.memory_space<vmem>>, %arg16: memref<2x1x32xf32, #tpu.memory_space<vmem>>, %arg17: memref<2x32x64xbf16, #tpu.memory_space<vmem>>, %arg18: memref<2x1x64xf32, #tpu.memory_space<vmem>>, %arg19: memref<2x64x32xbf16, #tpu.memory_space<vmem>>, %arg20: memref<2x1x32xf32, #tpu.memory_space<vmem>>, %arg21: memref<2x1x32xf32, #tpu.memory_space<vmem>>, %arg22: memref<2x1x32xf32, #tpu.memory_space<vmem>>, %arg23: memref<32x3xbf16, #tpu.memory_space<vmem>>, %arg24: memref<1x3xf32, #tpu.memory_space<vmem>>, %arg25: memref<2x3xf32, #tpu.memory_space<vmem>>) attributes {dimension_semantics = [], scalar_prefetch = 0 : i64, scratch_operands = 0 : i64, tpu.core_type = #tpu.core_type<tc>} {
    %c0 = arith.constant 0 : index
    %c0_0 = arith.constant 0 : index
    %0 = vector.load %arg0[%c0, %c0_0] : memref<16x1xi32, #tpu.memory_space<vmem>>, vector<16x1xi32>
    %1 = tpu.iota {dimensions = array<i32: 1>} : vector<16x100xi32>
    %2 = vector.broadcast %0 : vector<16x1xi32> to vector<16x100xi32>
    %3 = arith.cmpi eq, %2, %1 : vector<16x100xi32>
    %4 = arith.extui %3 : vector<16x100xi1> to vector<16x100xi32>
    %5 = arith.sitofp %4 : vector<16x100xi32> to vector<16x100xf32>
    %6 = arith.truncf %5 : vector<16x100xf32> to vector<16x100xbf16>
    %c0_1 = arith.constant 0 : index
    %c0_2 = arith.constant 0 : index
    %7 = vector.load %arg2[%c0_1, %c0_2] : memref<100x32xbf16, #tpu.memory_space<vmem>>, vector<100x32xbf16>
    %cst = arith.constant dense<0.000000e+00> : vector<16x32xf32>
    %8 = tpu.matmul %6, %7, %cst {dimension_numbers = #tpu.dot_dimension_numbers<[1], [0], [0], [1], [0, 0, 1, 1], [], []>} : vector<16x100xbf16>, vector<100x32xbf16>, vector<16x32xf32> -> vector<16x32xf32>
    %c0_3 = arith.constant 0 : index
    %c0_4 = arith.constant 0 : index
    %9 = vector.load %arg3[%c0_3, %c0_4] : memref<16x32xf32, #tpu.memory_space<vmem>>, vector<8x32xf32>
    %c0_5 = arith.constant 0 : index
    %c0_6 = arith.constant 0 : index
    %10 = vector.load %arg4[%c0_5, %c0_6] : memref<2x32xf32, #tpu.memory_space<vmem>>, vector<1x32xf32>
    %11 = vector.shape_cast %8 : vector<16x32xf32> to vector<2x8x32xf32>
    %12 = vector.shape_cast %9 : vector<8x32xf32> to vector<1x8x32xf32>
    %13 = vector.broadcast %12 : vector<1x8x32xf32> to vector<2x8x32xf32>
    %14 = arith.addf %11, %13 : vector<2x8x32xf32>
    %15 = vector.shape_cast %10 : vector<1x32xf32> to vector<1x1x32xf32>
    %16 = vector.broadcast %15 : vector<1x1x32xf32> to vector<2x8x32xf32>
    %17 = arith.addf %14, %16 : vector<2x8x32xf32>
    %18 = vector.shape_cast %17 : vector<2x8x32xf32> to vector<16x32xf32>
    %c0_7 = arith.constant 0 : index
    %c0_8 = arith.constant 0 : index
    %19 = vector.load %arg5[%c0_7, %c0_8] : memref<1x32xf32, #tpu.memory_space<vmem>>, vector<1x32xf32>
    %c0_9 = arith.constant 0 : index
    %c0_10 = arith.constant 0 : index
    %20 = vector.load %arg6[%c0_9, %c0_10] : memref<1x32xf32, #tpu.memory_space<vmem>>, vector<1x32xf32>
    %cst_11 = arith.constant dense<0.000000e+00> : vector<16xf32>
    %21 = vector.multi_reduction <add>, %18, %cst_11 [1] : vector<16x32xf32> to vector<16xf32>
    %22 = vector.shape_cast %21 : vector<16xf32> to vector<16x1xf32>
    %cst_12 = arith.constant 3.200000e+01 : f32
    %23 = vector.broadcast %cst_12 : f32 to vector<16x1xf32>
    %24 = arith.divf %22, %23 : vector<16x1xf32>
    %25 = vector.broadcast %24 : vector<16x1xf32> to vector<16x32xf32>
    %26 = arith.subf %18, %25 : vector<16x32xf32>
    %27 = arith.mulf %26, %26 : vector<16x32xf32>
    %cst_13 = arith.constant dense<0.000000e+00> : vector<16xf32>
    %28 = vector.multi_reduction <add>, %27, %cst_13 [1] : vector<16x32xf32> to vector<16xf32>
    %29 = vector.shape_cast %28 : vector<16xf32> to vector<16x1xf32>
    %cst_14 = arith.constant 3.200000e+01 : f32
    %30 = vector.broadcast %cst_14 : f32 to vector<16x1xf32>
    %31 = arith.divf %29, %30 : vector<16x1xf32>
    %32 = vector.broadcast %24 : vector<16x1xf32> to vector<16x32xf32>
    %33 = arith.subf %18, %32 : vector<16x32xf32>
    %cst_15 = arith.constant 9.99999996E-13 : f32
    %34 = vector.broadcast %cst_15 : f32 to vector<16x1xf32>
    %35 = arith.addf %31, %34 : vector<16x1xf32>
    %36 = math.rsqrt %35 : vector<16x1xf32>
    %37 = vector.broadcast %36 : vector<16x1xf32> to vector<16x32xf32>
    %38 = arith.mulf %33, %37 : vector<16x32xf32>
    %39 = vector.broadcast %19 : vector<1x32xf32> to vector<16x32xf32>
    %40 = arith.mulf %38, %39 : vector<16x32xf32>
    %41 = vector.broadcast %20 : vector<1x32xf32> to vector<16x32xf32>
    %42 = arith.addf %40, %41 : vector<16x32xf32>
    %c0_16 = arith.constant 0 : index
    %c0_17 = arith.constant 0 : index
    %43 = vector.load %arg1[%c0_16, %c0_17] : memref<2x8xi32, #tpu.memory_space<vmem>>, vector<2x8xi32>
    %44 = arith.sitofp %43 : vector<2x8xi32> to vector<2x8xf32>
    %cst_18 = arith.constant 1.000000e+00 : f32
    %45 = vector.broadcast %cst_18 : f32 to vector<2x8xf32>
    %46 = arith.subf %45, %44 : vector<2x8xf32>
    %cst_19 = arith.constant -1.000000e+09 : f32
    %47 = vector.broadcast %cst_19 : f32 to vector<2x8xf32>
    %48 = arith.mulf %46, %47 : vector<2x8xf32>
    %49 = vector.shape_cast %48 : vector<2x8xf32> to vector<2x1x8xf32>
    %50 = vector.shape_cast %49 : vector<2x1x8xf32> to vector<2x1x8xf32>
    %51 = vector.broadcast %50 : vector<2x1x8xf32> to vector<2x8x8xf32>
    %52 = arith.truncf %42 : vector<16x32xf32> to vector<16x32xbf16>
    %cst_20 = arith.constant 0.000000e+00 : f32
    %53 = vector.broadcast %cst_20 : f32 to vector<16x32xf32>
    %c0_21 = arith.constant 0 : index
    %c0_22 = arith.constant 0 : index
    %c0_23 = arith.constant 0 : index
    %c0_24 = arith.constant 0 : index
    %54 = vector.load %arg7[%c0_21, %c0_22, %c0_23, %c0_24] : memref<2x4x32x8xbf16, #tpu.memory_space<vmem>>, vector<1x1x32x8xbf16>
    %55 = vector.shape_cast %54 : vector<1x1x32x8xbf16> to vector<32x8xbf16>
    %cst_25 = arith.constant dense<0.000000e+00> : vector<16x8xf32>
    %56 = tpu.matmul %52, %55, %cst_25 {dimension_numbers = #tpu.dot_dimension_numbers<[1], [0], [0], [1], [0, 0, 1, 1], [], []>} : vector<16x32xbf16>, vector<32x8xbf16>, vector<16x8xf32> -> vector<16x8xf32>
    %c0_26 = arith.constant 0 : index
    %c0_27 = arith.constant 0 : index
    %c0_28 = arith.constant 0 : index
    %c0_29 = arith.constant 0 : index
    %57 = vector.load %arg10[%c0_26, %c0_27, %c0_28, %c0_29] : memref<2x4x1x8xf32, #tpu.memory_space<vmem>>, vector<1x1x1x8xf32>
    %58 = vector.shape_cast %57 : vector<1x1x1x8xf32> to vector<1x8xf32>
    %59 = vector.broadcast %58 : vector<1x8xf32> to vector<16x8xf32>
    %60 = arith.addf %56, %59 : vector<16x8xf32>
    %c0_30 = arith.constant 0 : index
    %c0_31 = arith.constant 0 : index
    %c0_32 = arith.constant 0 : index
    %c0_33 = arith.constant 0 : index
    %61 = vector.load %arg8[%c0_30, %c0_31, %c0_32, %c0_33] : memref<2x4x32x8xbf16, #tpu.memory_space<vmem>>, vector<1x1x32x8xbf16>
    %62 = vector.shape_cast %61 : vector<1x1x32x8xbf16> to vector<32x8xbf16>
    %cst_34 = arith.constant dense<0.000000e+00> : vector<16x8xf32>
    %63 = tpu.matmul %52, %62, %cst_34 {dimension_numbers = #tpu.dot_dimension_numbers<[1], [0], [0], [1], [0, 0, 1, 1], [], []>} : vector<16x32xbf16>, vector<32x8xbf16>, vector<16x8xf32> -> vector<16x8xf32>
    %c0_35 = arith.constant 0 : index
    %c0_36 = arith.constant 0 : index
    %c0_37 = arith.constant 0 : index
    %c0_38 = arith.constant 0 : index
    %64 = vector.load %arg11[%c0_35, %c0_36, %c0_37, %c0_38] : memref<2x4x1x8xf32, #tpu.memory_space<vmem>>, vector<1x1x1x8xf32>
    %65 = vector.shape_cast %64 : vector<1x1x1x8xf32> to vector<1x8xf32>
    %66 = vector.broadcast %65 : vector<1x8xf32> to vector<16x8xf32>
    %67 = arith.addf %63, %66 : vector<16x8xf32>
    %c0_39 = arith.constant 0 : index
    %c0_40 = arith.constant 0 : index
    %c0_41 = arith.constant 0 : index
    %c0_42 = arith.constant 0 : index
    %68 = vector.load %arg9[%c0_39, %c0_40, %c0_41, %c0_42] : memref<2x4x32x8xbf16, #tpu.memory_space<vmem>>, vector<1x1x32x8xbf16>
    %69 = vector.shape_cast %68 : vector<1x1x32x8xbf16> to vector<32x8xbf16>
    %cst_43 = arith.constant dense<0.000000e+00> : vector<16x8xf32>
    %70 = tpu.matmul %52, %69, %cst_43 {dimension_numbers = #tpu.dot_dimension_numbers<[1], [0], [0], [1], [0, 0, 1, 1], [], []>} : vector<16x32xbf16>, vector<32x8xbf16>, vector<16x8xf32> -> vector<16x8xf32>
    %c0_44 = arith.constant 0 : index
    %c0_45 = arith.constant 0 : index
    %c0_46 = arith.constant 0 : index
    %c0_47 = arith.constant 0 : index
    %71 = vector.load %arg12[%c0_44, %c0_45, %c0_46, %c0_47] : memref<2x4x1x8xf32, #tpu.memory_space<vmem>>, vector<1x1x1x8xf32>
    %72 = vector.shape_cast %71 : vector<1x1x1x8xf32> to vector<1x8xf32>
    %73 = vector.broadcast %72 : vector<1x8xf32> to vector<16x8xf32>
    %74 = arith.addf %70, %73 : vector<16x8xf32>
    %75 = arith.truncf %60 : vector<16x8xf32> to vector<16x8xbf16>
    %76 = vector.shape_cast %75 : vector<16x8xbf16> to vector<2x8x8xbf16>
    %77 = arith.truncf %67 : vector<16x8xf32> to vector<16x8xbf16>
    %78 = vector.shape_cast %77 : vector<16x8xbf16> to vector<2x8x8xbf16>
    %79 = arith.truncf %74 : vector<16x8xf32> to vector<16x8xbf16>
    %80 = vector.shape_cast %79 : vector<16x8xbf16> to vector<2x8x8xbf16>
    "tpu.trace_start"() <{level = 10 : i32, message = "bqd,bkd->bqk"}> : () -> ()
    %cst_48 = arith.constant dense<0.000000e+00> : vector<2x8x8xf32>
    %81 = tpu.matmul %76, %78, %cst_48 {dimension_numbers = #tpu.dot_dimension_numbers<[2], [2], [1], [1], [0, 0, 0, 1, 1, 1], [0], [0]>} : vector<2x8x8xbf16>, vector<2x8x8xbf16>, vector<2x8x8xf32> -> vector<2x8x8xf32>
    "tpu.trace_stop"() : () -> ()
    %82 = arith.addf %81, %51 : vector<2x8x8xf32>
    %cst_49 = arith.constant dense<0xFF800000> : vector<2x8xf32>
    %83 = vector.multi_reduction <maximumf>, %82, %cst_49 [2] : vector<2x8x8xf32> to vector<2x8xf32>
    %84 = vector.shape_cast %83 : vector<2x8xf32> to vector<2x8x1xf32>
    %85 = vector.broadcast %84 : vector<2x8x1xf32> to vector<2x8x8xf32>
    %86 = arith.subf %82, %85 : vector<2x8x8xf32>
    %87 = math.exp %86 : vector<2x8x8xf32>
    %cst_50 = arith.constant dense<0.000000e+00> : vector<2x8xf32>
    %88 = vector.multi_reduction <add>, %87, %cst_50 [2] : vector<2x8x8xf32> to vector<2x8xf32>
    %89 = vector.shape_cast %88 : vector<2x8xf32> to vector<2x8x1xf32>
    %90 = vector.broadcast %89 : vector<2x8x1xf32> to vector<2x8x8xf32>
    %91 = arith.divf %87, %90 : vector<2x8x8xf32>
    %92 = arith.truncf %91 : vector<2x8x8xf32> to vector<2x8x8xbf16>
    "tpu.trace_start"() <{level = 10 : i32, message = "bqk,bkd->bqd"}> : () -> ()
    %cst_51 = arith.constant dense<0.000000e+00> : vector<2x8x8xf32>
    %93 = tpu.matmul %92, %80, %cst_51 {dimension_numbers = #tpu.dot_dimension_numbers<[2], [1], [1], [2], [0, 0, 0, 1, 1, 2], [0], [0]>} : vector<2x8x8xbf16>, vector<2x8x8xbf16>, vector<2x8x8xf32> -> vector<2x8x8xf32>
    "tpu.trace_stop"() : () -> ()
    %94 = vector.shape_cast %93 : vector<2x8x8xf32> to vector<16x8xf32>
    %95 = arith.truncf %94 : vector<16x8xf32> to vector<16x8xbf16>
    %c0_52 = arith.constant 0 : index
    %c0_53 = arith.constant 0 : index
    %c0_54 = arith.constant 0 : index
    %c0_55 = arith.constant 0 : index
    %96 = vector.load %arg13[%c0_52, %c0_53, %c0_54, %c0_55] : memref<2x4x8x32xbf16, #tpu.memory_space<vmem>>, vector<1x1x8x32xbf16>
    %97 = vector.shape_cast %96 : vector<1x1x8x32xbf16> to vector<8x32xbf16>
    %cst_56 = arith.constant dense<0.000000e+00> : vector<16x32xf32>
    %98 = tpu.matmul %95, %97, %cst_56 {dimension_numbers = #tpu.dot_dimension_numbers<[1], [0], [0], [1], [0, 0, 1, 1], [], []>} : vector<16x8xbf16>, vector<8x32xbf16>, vector<16x32xf32> -> vector<16x32xf32>
    %99 = arith.addf %53, %98 : vector<16x32xf32>
    %c0_57 = arith.constant 0 : index
    %c1 = arith.constant 1 : index
    %c0_58 = arith.constant 0 : index
    %c0_59 = arith.constant 0 : index
    %100 = vector.load %arg7[%c0_57, %c1, %c0_58, %c0_59] : memref<2x4x32x8xbf16, #tpu.memory_space<vmem>>, vector<1x1x32x8xbf16>
    %101 = vector.shape_cast %100 : vector<1x1x32x8xbf16> to vector<32x8xbf16>
    %cst_60 = arith.constant dense<0.000000e+00> : vector<16x8xf32>
    %102 = tpu.matmul %52, %101, %cst_60 {dimension_numbers = #tpu.dot_dimension_numbers<[1], [0], [0], [1], [0, 0, 1, 1], [], []>} : vector<16x32xbf16>, vector<32x8xbf16>, vector<16x8xf32> -> vector<16x8xf32>
    %c0_61 = arith.constant 0 : index
    %c1_62 = arith.constant 1 : index
    %c0_63 = arith.constant 0 : index
    %c0_64 = arith.constant 0 : index
    %103 = vector.load %arg10[%c0_61, %c1_62, %c0_63, %c0_64] : memref<2x4x1x8xf32, #tpu.memory_space<vmem>>, vector<1x1x1x8xf32>
    %104 = vector.shape_cast %103 : vector<1x1x1x8xf32> to vector<1x8xf32>
    %105 = vector.broadcast %104 : vector<1x8xf32> to vector<16x8xf32>
    %106 = arith.addf %102, %105 : vector<16x8xf32>
    %c0_65 = arith.constant 0 : index
    %c1_66 = arith.constant 1 : index
    %c0_67 = arith.constant 0 : index
    %c0_68 = arith.constant 0 : index
    %107 = vector.load %arg8[%c0_65, %c1_66, %c0_67, %c0_68] : memref<2x4x32x8xbf16, #tpu.memory_space<vmem>>, vector<1x1x32x8xbf16>
    %108 = vector.shape_cast %107 : vector<1x1x32x8xbf16> to vector<32x8xbf16>
    %cst_69 = arith.constant dense<0.000000e+00> : vector<16x8xf32>
    %109 = tpu.matmul %52, %108, %cst_69 {dimension_numbers = #tpu.dot_dimension_numbers<[1], [0], [0], [1], [0, 0, 1, 1], [], []>} : vector<16x32xbf16>, vector<32x8xbf16>, vector<16x8xf32> -> vector<16x8xf32>
    %c0_70 = arith.constant 0 : index
    %c1_71 = arith.constant 1 : index
    %c0_72 = arith.constant 0 : index
    %c0_73 = arith.constant 0 : index
    %110 = vector.load %arg11[%c0_70, %c1_71, %c0_72, %c0_73] : memref<2x4x1x8xf32, #tpu.memory_space<vmem>>, vector<1x1x1x8xf32>
    %111 = vector.shape_cast %110 : vector<1x1x1x8xf32> to vector<1x8xf32>
    %112 = vector.broadcast %111 : vector<1x8xf32> to vector<16x8xf32>
    %113 = arith.addf %109, %112 : vector<16x8xf32>
    %c0_74 = arith.constant 0 : index
    %c1_75 = arith.constant 1 : index
    %c0_76 = arith.constant 0 : index
    %c0_77 = arith.constant 0 : index
    %114 = vector.load %arg9[%c0_74, %c1_75, %c0_76, %c0_77] : memref<2x4x32x8xbf16, #tpu.memory_space<vmem>>, vector<1x1x32x8xbf16>
    %115 = vector.shape_cast %114 : vector<1x1x32x8xbf16> to vector<32x8xbf16>
    %cst_78 = arith.constant dense<0.000000e+00> : vector<16x8xf32>
    %116 = tpu.matmul %52, %115, %cst_78 {dimension_numbers = #tpu.dot_dimension_numbers<[1], [0], [0], [1], [0, 0, 1, 1], [], []>} : vector<16x32xbf16>, vector<32x8xbf16>, vector<16x8xf32> -> vector<16x8xf32>
    %c0_79 = arith.constant 0 : index
    %c1_80 = arith.constant 1 : index
    %c0_81 = arith.constant 0 : index
    %c0_82 = arith.constant 0 : index
    %117 = vector.load %arg12[%c0_79, %c1_80, %c0_81, %c0_82] : memref<2x4x1x8xf32, #tpu.memory_space<vmem>>, vector<1x1x1x8xf32>
    %118 = vector.shape_cast %117 : vector<1x1x1x8xf32> to vector<1x8xf32>
    %119 = vector.broadcast %118 : vector<1x8xf32> to vector<16x8xf32>
    %120 = arith.addf %116, %119 : vector<16x8xf32>
    %121 = arith.truncf %106 : vector<16x8xf32> to vector<16x8xbf16>
    %122 = vector.shape_cast %121 : vector<16x8xbf16> to vector<2x8x8xbf16>
    %123 = arith.truncf %113 : vector<16x8xf32> to vector<16x8xbf16>
    %124 = vector.shape_cast %123 : vector<16x8xbf16> to vector<2x8x8xbf16>
    %125 = arith.truncf %120 : vector<16x8xf32> to vector<16x8xbf16>
    %126 = vector.shape_cast %125 : vector<16x8xbf16> to vector<2x8x8xbf16>
    "tpu.trace_start"() <{level = 10 : i32, message = "bqd,bkd->bqk"}> : () -> ()
    %cst_83 = arith.constant dense<0.000000e+00> : vector<2x8x8xf32>
    %127 = tpu.matmul %122, %124, %cst_83 {dimension_numbers = #tpu.dot_dimension_numbers<[2], [2], [1], [1], [0, 0, 0, 1, 1, 1], [0], [0]>} : vector<2x8x8xbf16>, vector<2x8x8xbf16>, vector<2x8x8xf32> -> vector<2x8x8xf32>
    "tpu.trace_stop"() : () -> ()
    %128 = arith.addf %127, %51 : vector<2x8x8xf32>
    %cst_84 = arith.constant dense<0xFF800000> : vector<2x8xf32>
    %129 = vector.multi_reduction <maximumf>, %128, %cst_84 [2] : vector<2x8x8xf32> to vector<2x8xf32>
    %130 = vector.shape_cast %129 : vector<2x8xf32> to vector<2x8x1xf32>
    %131 = vector.broadcast %130 : vector<2x8x1xf32> to vector<2x8x8xf32>
    %132 = arith.subf %128, %131 : vector<2x8x8xf32>
    %133 = math.exp %132 : vector<2x8x8xf32>
    %cst_85 = arith.constant dense<0.000000e+00> : vector<2x8xf32>
    %134 = vector.multi_reduction <add>, %133, %cst_85 [2] : vector<2x8x8xf32> to vector<2x8xf32>
    %135 = vector.shape_cast %134 : vector<2x8xf32> to vector<2x8x1xf32>
    %136 = vector.broadcast %135 : vector<2x8x1xf32> to vector<2x8x8xf32>
    %137 = arith.divf %133, %136 : vector<2x8x8xf32>
    %138 = arith.truncf %137 : vector<2x8x8xf32> to vector<2x8x8xbf16>
    "tpu.trace_start"() <{level = 10 : i32, message = "bqk,bkd->bqd"}> : () -> ()
    %cst_86 = arith.constant dense<0.000000e+00> : vector<2x8x8xf32>
    %139 = tpu.matmul %138, %126, %cst_86 {dimension_numbers = #tpu.dot_dimension_numbers<[2], [1], [1], [2], [0, 0, 0, 1, 1, 2], [0], [0]>} : vector<2x8x8xbf16>, vector<2x8x8xbf16>, vector<2x8x8xf32> -> vector<2x8x8xf32>
    "tpu.trace_stop"() : () -> ()
    %140 = vector.shape_cast %139 : vector<2x8x8xf32> to vector<16x8xf32>
    %141 = arith.truncf %140 : vector<16x8xf32> to vector<16x8xbf16>
    %c0_87 = arith.constant 0 : index
    %c1_88 = arith.constant 1 : index
    %c0_89 = arith.constant 0 : index
    %c0_90 = arith.constant 0 : index
    %142 = vector.load %arg13[%c0_87, %c1_88, %c0_89, %c0_90] : memref<2x4x8x32xbf16, #tpu.memory_space<vmem>>, vector<1x1x8x32xbf16>
    %143 = vector.shape_cast %142 : vector<1x1x8x32xbf16> to vector<8x32xbf16>
    %cst_91 = arith.constant dense<0.000000e+00> : vector<16x32xf32>
    %144 = tpu.matmul %141, %143, %cst_91 {dimension_numbers = #tpu.dot_dimension_numbers<[1], [0], [0], [1], [0, 0, 1, 1], [], []>} : vector<16x8xbf16>, vector<8x32xbf16>, vector<16x32xf32> -> vector<16x32xf32>
    %145 = arith.addf %99, %144 : vector<16x32xf32>
    %c0_92 = arith.constant 0 : index
    %c2 = arith.constant 2 : index
    %c0_93 = arith.constant 0 : index
    %c0_94 = arith.constant 0 : index
    %146 = vector.load %arg7[%c0_92, %c2, %c0_93, %c0_94] : memref<2x4x32x8xbf16, #tpu.memory_space<vmem>>, vector<1x1x32x8xbf16>
    %147 = vector.shape_cast %146 : vector<1x1x32x8xbf16> to vector<32x8xbf16>
    %cst_95 = arith.constant dense<0.000000e+00> : vector<16x8xf32>
    %148 = tpu.matmul %52, %147, %cst_95 {dimension_numbers = #tpu.dot_dimension_numbers<[1], [0], [0], [1], [0, 0, 1, 1], [], []>} : vector<16x32xbf16>, vector<32x8xbf16>, vector<16x8xf32> -> vector<16x8xf32>
    %c0_96 = arith.constant 0 : index
    %c2_97 = arith.constant 2 : index
    %c0_98 = arith.constant 0 : index
    %c0_99 = arith.constant 0 : index
    %149 = vector.load %arg10[%c0_96, %c2_97, %c0_98, %c0_99] : memref<2x4x1x8xf32, #tpu.memory_space<vmem>>, vector<1x1x1x8xf32>
    %150 = vector.shape_cast %149 : vector<1x1x1x8xf32> to vector<1x8xf32>
    %151 = vector.broadcast %150 : vector<1x8xf32> to vector<16x8xf32>
    %152 = arith.addf %148, %151 : vector<16x8xf32>
    %c0_100 = arith.constant 0 : index
    %c2_101 = arith.constant 2 : index
    %c0_102 = arith.constant 0 : index
    %c0_103 = arith.constant 0 : index
    %153 = vector.load %arg8[%c0_100, %c2_101, %c0_102, %c0_103] : memref<2x4x32x8xbf16, #tpu.memory_space<vmem>>, vector<1x1x32x8xbf16>
    %154 = vector.shape_cast %153 : vector<1x1x32x8xbf16> to vector<32x8xbf16>
    %cst_104 = arith.constant dense<0.000000e+00> : vector<16x8xf32>
    %155 = tpu.matmul %52, %154, %cst_104 {dimension_numbers = #tpu.dot_dimension_numbers<[1], [0], [0], [1], [0, 0, 1, 1], [], []>} : vector<16x32xbf16>, vector<32x8xbf16>, vector<16x8xf32> -> vector<16x8xf32>
    %c0_105 = arith.constant 0 : index
    %c2_106 = arith.constant 2 : index
    %c0_107 = arith.constant 0 : index
    %c0_108 = arith.constant 0 : index
    %156 = vector.load %arg11[%c0_105, %c2_106, %c0_107, %c0_108] : memref<2x4x1x8xf32, #tpu.memory_space<vmem>>, vector<1x1x1x8xf32>
    %157 = vector.shape_cast %156 : vector<1x1x1x8xf32> to vector<1x8xf32>
    %158 = vector.broadcast %157 : vector<1x8xf32> to vector<16x8xf32>
    %159 = arith.addf %155, %158 : vector<16x8xf32>
    %c0_109 = arith.constant 0 : index
    %c2_110 = arith.constant 2 : index
    %c0_111 = arith.constant 0 : index
    %c0_112 = arith.constant 0 : index
    %160 = vector.load %arg9[%c0_109, %c2_110, %c0_111, %c0_112] : memref<2x4x32x8xbf16, #tpu.memory_space<vmem>>, vector<1x1x32x8xbf16>
    %161 = vector.shape_cast %160 : vector<1x1x32x8xbf16> to vector<32x8xbf16>
    %cst_113 = arith.constant dense<0.000000e+00> : vector<16x8xf32>
    %162 = tpu.matmul %52, %161, %cst_113 {dimension_numbers = #tpu.dot_dimension_numbers<[1], [0], [0], [1], [0, 0, 1, 1], [], []>} : vector<16x32xbf16>, vector<32x8xbf16>, vector<16x8xf32> -> vector<16x8xf32>
    %c0_114 = arith.constant 0 : index
    %c2_115 = arith.constant 2 : index
    %c0_116 = arith.constant 0 : index
    %c0_117 = arith.constant 0 : index
    %163 = vector.load %arg12[%c0_114, %c2_115, %c0_116, %c0_117] : memref<2x4x1x8xf32, #tpu.memory_space<vmem>>, vector<1x1x1x8xf32>
    %164 = vector.shape_cast %163 : vector<1x1x1x8xf32> to vector<1x8xf32>
    %165 = vector.broadcast %164 : vector<1x8xf32> to vector<16x8xf32>
    %166 = arith.addf %162, %165 : vector<16x8xf32>
    %167 = arith.truncf %152 : vector<16x8xf32> to vector<16x8xbf16>
    %168 = vector.shape_cast %167 : vector<16x8xbf16> to vector<2x8x8xbf16>
    %169 = arith.truncf %159 : vector<16x8xf32> to vector<16x8xbf16>
    %170 = vector.shape_cast %169 : vector<16x8xbf16> to vector<2x8x8xbf16>
    %171 = arith.truncf %166 : vector<16x8xf32> to vector<16x8xbf16>
    %172 = vector.shape_cast %171 : vector<16x8xbf16> to vector<2x8x8xbf16>
    "tpu.trace_start"() <{level = 10 : i32, message = "bqd,bkd->bqk"}> : () -> ()
    %cst_118 = arith.constant dense<0.000000e+00> : vector<2x8x8xf32>
    %173 = tpu.matmul %168, %170, %cst_118 {dimension_numbers = #tpu.dot_dimension_numbers<[2], [2], [1], [1], [0, 0, 0, 1, 1, 1], [0], [0]>} : vector<2x8x8xbf16>, vector<2x8x8xbf16>, vector<2x8x8xf32> -> vector<2x8x8xf32>
    "tpu.trace_stop"() : () -> ()
    %174 = arith.addf %173, %51 : vector<2x8x8xf32>
    %cst_119 = arith.constant dense<0xFF800000> : vector<2x8xf32>
    %175 = vector.multi_reduction <maximumf>, %174, %cst_119 [2] : vector<2x8x8xf32> to vector<2x8xf32>
    %176 = vector.shape_cast %175 : vector<2x8xf32> to vector<2x8x1xf32>
    %177 = vector.broadcast %176 : vector<2x8x1xf32> to vector<2x8x8xf32>
    %178 = arith.subf %174, %177 : vector<2x8x8xf32>
    %179 = math.exp %178 : vector<2x8x8xf32>
    %cst_120 = arith.constant dense<0.000000e+00> : vector<2x8xf32>
    %180 = vector.multi_reduction <add>, %179, %cst_120 [2] : vector<2x8x8xf32> to vector<2x8xf32>
    %181 = vector.shape_cast %180 : vector<2x8xf32> to vector<2x8x1xf32>
    %182 = vector.broadcast %181 : vector<2x8x1xf32> to vector<2x8x8xf32>
    %183 = arith.divf %179, %182 : vector<2x8x8xf32>
    %184 = arith.truncf %183 : vector<2x8x8xf32> to vector<2x8x8xbf16>
    "tpu.trace_start"() <{level = 10 : i32, message = "bqk,bkd->bqd"}> : () -> ()
    %cst_121 = arith.constant dense<0.000000e+00> : vector<2x8x8xf32>
    %185 = tpu.matmul %184, %172, %cst_121 {dimension_numbers = #tpu.dot_dimension_numbers<[2], [1], [1], [2], [0, 0, 0, 1, 1, 2], [0], [0]>} : vector<2x8x8xbf16>, vector<2x8x8xbf16>, vector<2x8x8xf32> -> vector<2x8x8xf32>
    "tpu.trace_stop"() : () -> ()
    %186 = vector.shape_cast %185 : vector<2x8x8xf32> to vector<16x8xf32>
    %187 = arith.truncf %186 : vector<16x8xf32> to vector<16x8xbf16>
    %c0_122 = arith.constant 0 : index
    %c2_123 = arith.constant 2 : index
    %c0_124 = arith.constant 0 : index
    %c0_125 = arith.constant 0 : index
    %188 = vector.load %arg13[%c0_122, %c2_123, %c0_124, %c0_125] : memref<2x4x8x32xbf16, #tpu.memory_space<vmem>>, vector<1x1x8x32xbf16>
    %189 = vector.shape_cast %188 : vector<1x1x8x32xbf16> to vector<8x32xbf16>
    %cst_126 = arith.constant dense<0.000000e+00> : vector<16x32xf32>
    %190 = tpu.matmul %187, %189, %cst_126 {dimension_numbers = #tpu.dot_dimension_numbers<[1], [0], [0], [1], [0, 0, 1, 1], [], []>} : vector<16x8xbf16>, vector<8x32xbf16>, vector<16x32xf32> -> vector<16x32xf32>
    %191 = arith.addf %145, %190 : vector<16x32xf32>
    %c0_127 = arith.constant 0 : index
    %c3 = arith.constant 3 : index
    %c0_128 = arith.constant 0 : index
    %c0_129 = arith.constant 0 : index
    %192 = vector.load %arg7[%c0_127, %c3, %c0_128, %c0_129] : memref<2x4x32x8xbf16, #tpu.memory_space<vmem>>, vector<1x1x32x8xbf16>
    %193 = vector.shape_cast %192 : vector<1x1x32x8xbf16> to vector<32x8xbf16>
    %cst_130 = arith.constant dense<0.000000e+00> : vector<16x8xf32>
    %194 = tpu.matmul %52, %193, %cst_130 {dimension_numbers = #tpu.dot_dimension_numbers<[1], [0], [0], [1], [0, 0, 1, 1], [], []>} : vector<16x32xbf16>, vector<32x8xbf16>, vector<16x8xf32> -> vector<16x8xf32>
    %c0_131 = arith.constant 0 : index
    %c3_132 = arith.constant 3 : index
    %c0_133 = arith.constant 0 : index
    %c0_134 = arith.constant 0 : index
    %195 = vector.load %arg10[%c0_131, %c3_132, %c0_133, %c0_134] : memref<2x4x1x8xf32, #tpu.memory_space<vmem>>, vector<1x1x1x8xf32>
    %196 = vector.shape_cast %195 : vector<1x1x1x8xf32> to vector<1x8xf32>
    %197 = vector.broadcast %196 : vector<1x8xf32> to vector<16x8xf32>
    %198 = arith.addf %194, %197 : vector<16x8xf32>
    %c0_135 = arith.constant 0 : index
    %c3_136 = arith.constant 3 : index
    %c0_137 = arith.constant 0 : index
    %c0_138 = arith.constant 0 : index
    %199 = vector.load %arg8[%c0_135, %c3_136, %c0_137, %c0_138] : memref<2x4x32x8xbf16, #tpu.memory_space<vmem>>, vector<1x1x32x8xbf16>
    %200 = vector.shape_cast %199 : vector<1x1x32x8xbf16> to vector<32x8xbf16>
    %cst_139 = arith.constant dense<0.000000e+00> : vector<16x8xf32>
    %201 = tpu.matmul %52, %200, %cst_139 {dimension_numbers = #tpu.dot_dimension_numbers<[1], [0], [0], [1], [0, 0, 1, 1], [], []>} : vector<16x32xbf16>, vector<32x8xbf16>, vector<16x8xf32> -> vector<16x8xf32>
    %c0_140 = arith.constant 0 : index
    %c3_141 = arith.constant 3 : index
    %c0_142 = arith.constant 0 : index
    %c0_143 = arith.constant 0 : index
    %202 = vector.load %arg11[%c0_140, %c3_141, %c0_142, %c0_143] : memref<2x4x1x8xf32, #tpu.memory_space<vmem>>, vector<1x1x1x8xf32>
    %203 = vector.shape_cast %202 : vector<1x1x1x8xf32> to vector<1x8xf32>
    %204 = vector.broadcast %203 : vector<1x8xf32> to vector<16x8xf32>
    %205 = arith.addf %201, %204 : vector<16x8xf32>
    %c0_144 = arith.constant 0 : index
    %c3_145 = arith.constant 3 : index
    %c0_146 = arith.constant 0 : index
    %c0_147 = arith.constant 0 : index
    %206 = vector.load %arg9[%c0_144, %c3_145, %c0_146, %c0_147] : memref<2x4x32x8xbf16, #tpu.memory_space<vmem>>, vector<1x1x32x8xbf16>
    %207 = vector.shape_cast %206 : vector<1x1x32x8xbf16> to vector<32x8xbf16>
    %cst_148 = arith.constant dense<0.000000e+00> : vector<16x8xf32>
    %208 = tpu.matmul %52, %207, %cst_148 {dimension_numbers = #tpu.dot_dimension_numbers<[1], [0], [0], [1], [0, 0, 1, 1], [], []>} : vector<16x32xbf16>, vector<32x8xbf16>, vector<16x8xf32> -> vector<16x8xf32>
    %c0_149 = arith.constant 0 : index
    %c3_150 = arith.constant 3 : index
    %c0_151 = arith.constant 0 : index
    %c0_152 = arith.constant 0 : index
    %209 = vector.load %arg12[%c0_149, %c3_150, %c0_151, %c0_152] : memref<2x4x1x8xf32, #tpu.memory_space<vmem>>, vector<1x1x1x8xf32>
    %210 = vector.shape_cast %209 : vector<1x1x1x8xf32> to vector<1x8xf32>
    %211 = vector.broadcast %210 : vector<1x8xf32> to vector<16x8xf32>
    %212 = arith.addf %208, %211 : vector<16x8xf32>
    %213 = arith.truncf %198 : vector<16x8xf32> to vector<16x8xbf16>
    %214 = vector.shape_cast %213 : vector<16x8xbf16> to vector<2x8x8xbf16>
    %215 = arith.truncf %205 : vector<16x8xf32> to vector<16x8xbf16>
    %216 = vector.shape_cast %215 : vector<16x8xbf16> to vector<2x8x8xbf16>
    %217 = arith.truncf %212 : vector<16x8xf32> to vector<16x8xbf16>
    %218 = vector.shape_cast %217 : vector<16x8xbf16> to vector<2x8x8xbf16>
    "tpu.trace_start"() <{level = 10 : i32, message = "bqd,bkd->bqk"}> : () -> ()
    %cst_153 = arith.constant dense<0.000000e+00> : vector<2x8x8xf32>
    %219 = tpu.matmul %214, %216, %cst_153 {dimension_numbers = #tpu.dot_dimension_numbers<[2], [2], [1], [1], [0, 0, 0, 1, 1, 1], [0], [0]>} : vector<2x8x8xbf16>, vector<2x8x8xbf16>, vector<2x8x8xf32> -> vector<2x8x8xf32>
    "tpu.trace_stop"() : () -> ()
    %220 = arith.addf %219, %51 : vector<2x8x8xf32>
    %cst_154 = arith.constant dense<0xFF800000> : vector<2x8xf32>
    %221 = vector.multi_reduction <maximumf>, %220, %cst_154 [2] : vector<2x8x8xf32> to vector<2x8xf32>
    %222 = vector.shape_cast %221 : vector<2x8xf32> to vector<2x8x1xf32>
    %223 = vector.broadcast %222 : vector<2x8x1xf32> to vector<2x8x8xf32>
    %224 = arith.subf %220, %223 : vector<2x8x8xf32>
    %225 = math.exp %224 : vector<2x8x8xf32>
    %cst_155 = arith.constant dense<0.000000e+00> : vector<2x8xf32>
    %226 = vector.multi_reduction <add>, %225, %cst_155 [2] : vector<2x8x8xf32> to vector<2x8xf32>
    %227 = vector.shape_cast %226 : vector<2x8xf32> to vector<2x8x1xf32>
    %228 = vector.broadcast %227 : vector<2x8x1xf32> to vector<2x8x8xf32>
    %229 = arith.divf %225, %228 : vector<2x8x8xf32>
    %230 = arith.truncf %229 : vector<2x8x8xf32> to vector<2x8x8xbf16>
    "tpu.trace_start"() <{level = 10 : i32, message = "bqk,bkd->bqd"}> : () -> ()
    %cst_156 = arith.constant dense<0.000000e+00> : vector<2x8x8xf32>
    %231 = tpu.matmul %230, %218, %cst_156 {dimension_numbers = #tpu.dot_dimension_numbers<[2], [1], [1], [2], [0, 0, 0, 1, 1, 2], [0], [0]>} : vector<2x8x8xbf16>, vector<2x8x8xbf16>, vector<2x8x8xf32> -> vector<2x8x8xf32>
    "tpu.trace_stop"() : () -> ()
    %232 = vector.shape_cast %231 : vector<2x8x8xf32> to vector<16x8xf32>
    %233 = arith.truncf %232 : vector<16x8xf32> to vector<16x8xbf16>
    %c0_157 = arith.constant 0 : index
    %c3_158 = arith.constant 3 : index
    %c0_159 = arith.constant 0 : index
    %c0_160 = arith.constant 0 : index
    %234 = vector.load %arg13[%c0_157, %c3_158, %c0_159, %c0_160] : memref<2x4x8x32xbf16, #tpu.memory_space<vmem>>, vector<1x1x8x32xbf16>
    %235 = vector.shape_cast %234 : vector<1x1x8x32xbf16> to vector<8x32xbf16>
    %cst_161 = arith.constant dense<0.000000e+00> : vector<16x32xf32>
    %236 = tpu.matmul %233, %235, %cst_161 {dimension_numbers = #tpu.dot_dimension_numbers<[1], [0], [0], [1], [0, 0, 1, 1], [], []>} : vector<16x8xbf16>, vector<8x32xbf16>, vector<16x32xf32> -> vector<16x32xf32>
    %237 = arith.addf %191, %236 : vector<16x32xf32>
    %c0_162 = arith.constant 0 : index
    %c0_163 = arith.constant 0 : index
    %c0_164 = arith.constant 0 : index
    %238 = vector.load %arg14[%c0_162, %c0_163, %c0_164] : memref<2x1x32xf32, #tpu.memory_space<vmem>>, vector<1x1x32xf32>
    %239 = vector.shape_cast %238 : vector<1x1x32xf32> to vector<1x32xf32>
    %240 = vector.broadcast %239 : vector<1x32xf32> to vector<16x32xf32>
    %241 = arith.addf %237, %240 : vector<16x32xf32>
    %242 = arith.addf %241, %42 : vector<16x32xf32>
    %c0_165 = arith.constant 0 : index
    %c0_166 = arith.constant 0 : index
    %c0_167 = arith.constant 0 : index
    %243 = vector.load %arg15[%c0_165, %c0_166, %c0_167] : memref<2x1x32xf32, #tpu.memory_space<vmem>>, vector<1x1x32xf32>
    %244 = vector.shape_cast %243 : vector<1x1x32xf32> to vector<1x32xf32>
    %c0_168 = arith.constant 0 : index
    %c0_169 = arith.constant 0 : index
    %c0_170 = arith.constant 0 : index
    %245 = vector.load %arg16[%c0_168, %c0_169, %c0_170] : memref<2x1x32xf32, #tpu.memory_space<vmem>>, vector<1x1x32xf32>
    %246 = vector.shape_cast %245 : vector<1x1x32xf32> to vector<1x32xf32>
    %cst_171 = arith.constant dense<0.000000e+00> : vector<16xf32>
    %247 = vector.multi_reduction <add>, %242, %cst_171 [1] : vector<16x32xf32> to vector<16xf32>
    %248 = vector.shape_cast %247 : vector<16xf32> to vector<16x1xf32>
    %cst_172 = arith.constant 3.200000e+01 : f32
    %249 = vector.broadcast %cst_172 : f32 to vector<16x1xf32>
    %250 = arith.divf %248, %249 : vector<16x1xf32>
    %251 = vector.broadcast %250 : vector<16x1xf32> to vector<16x32xf32>
    %252 = arith.subf %242, %251 : vector<16x32xf32>
    %253 = arith.mulf %252, %252 : vector<16x32xf32>
    %cst_173 = arith.constant dense<0.000000e+00> : vector<16xf32>
    %254 = vector.multi_reduction <add>, %253, %cst_173 [1] : vector<16x32xf32> to vector<16xf32>
    %255 = vector.shape_cast %254 : vector<16xf32> to vector<16x1xf32>
    %cst_174 = arith.constant 3.200000e+01 : f32
    %256 = vector.broadcast %cst_174 : f32 to vector<16x1xf32>
    %257 = arith.divf %255, %256 : vector<16x1xf32>
    %258 = vector.broadcast %250 : vector<16x1xf32> to vector<16x32xf32>
    %259 = arith.subf %242, %258 : vector<16x32xf32>
    %cst_175 = arith.constant 9.99999996E-13 : f32
    %260 = vector.broadcast %cst_175 : f32 to vector<16x1xf32>
    %261 = arith.addf %257, %260 : vector<16x1xf32>
    %262 = math.rsqrt %261 : vector<16x1xf32>
    %263 = vector.broadcast %262 : vector<16x1xf32> to vector<16x32xf32>
    %264 = arith.mulf %259, %263 : vector<16x32xf32>
    %265 = vector.broadcast %244 : vector<1x32xf32> to vector<16x32xf32>
    %266 = arith.mulf %264, %265 : vector<16x32xf32>
    %267 = vector.broadcast %246 : vector<1x32xf32> to vector<16x32xf32>
    %268 = arith.addf %266, %267 : vector<16x32xf32>
    %269 = arith.truncf %268 : vector<16x32xf32> to vector<16x32xbf16>
    %c0_176 = arith.constant 0 : index
    %c0_177 = arith.constant 0 : index
    %c0_178 = arith.constant 0 : index
    %270 = vector.load %arg17[%c0_176, %c0_177, %c0_178] : memref<2x32x64xbf16, #tpu.memory_space<vmem>>, vector<1x32x64xbf16>
    %271 = vector.shape_cast %270 : vector<1x32x64xbf16> to vector<32x64xbf16>
    %cst_179 = arith.constant dense<0.000000e+00> : vector<16x64xf32>
    %272 = tpu.matmul %269, %271, %cst_179 {dimension_numbers = #tpu.dot_dimension_numbers<[1], [0], [0], [1], [0, 0, 1, 1], [], []>} : vector<16x32xbf16>, vector<32x64xbf16>, vector<16x64xf32> -> vector<16x64xf32>
    %c0_180 = arith.constant 0 : index
    %c0_181 = arith.constant 0 : index
    %c0_182 = arith.constant 0 : index
    %273 = vector.load %arg18[%c0_180, %c0_181, %c0_182] : memref<2x1x64xf32, #tpu.memory_space<vmem>>, vector<1x1x64xf32>
    %274 = vector.shape_cast %273 : vector<1x1x64xf32> to vector<1x64xf32>
    %275 = vector.broadcast %274 : vector<1x64xf32> to vector<16x64xf32>
    %276 = arith.addf %272, %275 : vector<16x64xf32>
    %277 = arith.mulf %276, %276 : vector<16x64xf32>
    %278 = arith.mulf %276, %277 : vector<16x64xf32>
    %cst_183 = arith.constant 4.471500e-02 : f32
    %279 = vector.broadcast %cst_183 : f32 to vector<16x64xf32>
    %280 = arith.mulf %279, %278 : vector<16x64xf32>
    %281 = arith.addf %276, %280 : vector<16x64xf32>
    %cst_184 = arith.constant 0.797884583 : f32
    %282 = vector.broadcast %cst_184 : f32 to vector<16x64xf32>
    %283 = arith.mulf %282, %281 : vector<16x64xf32>
    %284 = math.tanh %283 : vector<16x64xf32>
    %cst_185 = arith.constant 1.000000e+00 : f32
    %285 = vector.broadcast %cst_185 : f32 to vector<16x64xf32>
    %286 = arith.addf %285, %284 : vector<16x64xf32>
    %cst_186 = arith.constant 5.000000e-01 : f32
    %287 = vector.broadcast %cst_186 : f32 to vector<16x64xf32>
    %288 = arith.mulf %287, %286 : vector<16x64xf32>
    %289 = arith.mulf %276, %288 : vector<16x64xf32>
    %290 = arith.truncf %289 : vector<16x64xf32> to vector<16x64xbf16>
    %c0_187 = arith.constant 0 : index
    %c0_188 = arith.constant 0 : index
    %c0_189 = arith.constant 0 : index
    %291 = vector.load %arg19[%c0_187, %c0_188, %c0_189] : memref<2x64x32xbf16, #tpu.memory_space<vmem>>, vector<1x64x32xbf16>
    %292 = vector.shape_cast %291 : vector<1x64x32xbf16> to vector<64x32xbf16>
    %cst_190 = arith.constant dense<0.000000e+00> : vector<16x32xf32>
    %293 = tpu.matmul %290, %292, %cst_190 {dimension_numbers = #tpu.dot_dimension_numbers<[1], [0], [0], [1], [0, 0, 1, 1], [], []>} : vector<16x64xbf16>, vector<64x32xbf16>, vector<16x32xf32> -> vector<16x32xf32>
    %c0_191 = arith.constant 0 : index
    %c0_192 = arith.constant 0 : index
    %c0_193 = arith.constant 0 : index
    %294 = vector.load %arg20[%c0_191, %c0_192, %c0_193] : memref<2x1x32xf32, #tpu.memory_space<vmem>>, vector<1x1x32xf32>
    %295 = vector.shape_cast %294 : vector<1x1x32xf32> to vector<1x32xf32>
    %296 = vector.broadcast %295 : vector<1x32xf32> to vector<16x32xf32>
    %297 = arith.addf %293, %296 : vector<16x32xf32>
    %298 = arith.addf %297, %268 : vector<16x32xf32>
    %c0_194 = arith.constant 0 : index
    %c0_195 = arith.constant 0 : index
    %c0_196 = arith.constant 0 : index
    %299 = vector.load %arg21[%c0_194, %c0_195, %c0_196] : memref<2x1x32xf32, #tpu.memory_space<vmem>>, vector<1x1x32xf32>
    %300 = vector.shape_cast %299 : vector<1x1x32xf32> to vector<1x32xf32>
    %c0_197 = arith.constant 0 : index
    %c0_198 = arith.constant 0 : index
    %c0_199 = arith.constant 0 : index
    %301 = vector.load %arg22[%c0_197, %c0_198, %c0_199] : memref<2x1x32xf32, #tpu.memory_space<vmem>>, vector<1x1x32xf32>
    %302 = vector.shape_cast %301 : vector<1x1x32xf32> to vector<1x32xf32>
    %cst_200 = arith.constant dense<0.000000e+00> : vector<16xf32>
    %303 = vector.multi_reduction <add>, %298, %cst_200 [1] : vector<16x32xf32> to vector<16xf32>
    %304 = vector.shape_cast %303 : vector<16xf32> to vector<16x1xf32>
    %cst_201 = arith.constant 3.200000e+01 : f32
    %305 = vector.broadcast %cst_201 : f32 to vector<16x1xf32>
    %306 = arith.divf %304, %305 : vector<16x1xf32>
    %307 = vector.broadcast %306 : vector<16x1xf32> to vector<16x32xf32>
    %308 = arith.subf %298, %307 : vector<16x32xf32>
    %309 = arith.mulf %308, %308 : vector<16x32xf32>
    %cst_202 = arith.constant dense<0.000000e+00> : vector<16xf32>
    %310 = vector.multi_reduction <add>, %309, %cst_202 [1] : vector<16x32xf32> to vector<16xf32>
    %311 = vector.shape_cast %310 : vector<16xf32> to vector<16x1xf32>
    %cst_203 = arith.constant 3.200000e+01 : f32
    %312 = vector.broadcast %cst_203 : f32 to vector<16x1xf32>
    %313 = arith.divf %311, %312 : vector<16x1xf32>
    %314 = vector.broadcast %306 : vector<16x1xf32> to vector<16x32xf32>
    %315 = arith.subf %298, %314 : vector<16x32xf32>
    %cst_204 = arith.constant 9.99999996E-13 : f32
    %316 = vector.broadcast %cst_204 : f32 to vector<16x1xf32>
    %317 = arith.addf %313, %316 : vector<16x1xf32>
    %318 = math.rsqrt %317 : vector<16x1xf32>
    %319 = vector.broadcast %318 : vector<16x1xf32> to vector<16x32xf32>
    %320 = arith.mulf %315, %319 : vector<16x32xf32>
    %321 = vector.broadcast %300 : vector<1x32xf32> to vector<16x32xf32>
    %322 = arith.mulf %320, %321 : vector<16x32xf32>
    %323 = vector.broadcast %302 : vector<1x32xf32> to vector<16x32xf32>
    %324 = arith.addf %322, %323 : vector<16x32xf32>
    %325 = arith.truncf %324 : vector<16x32xf32> to vector<16x32xbf16>
    %cst_205 = arith.constant 0.000000e+00 : f32
    %326 = vector.broadcast %cst_205 : f32 to vector<16x32xf32>
    %c1_206 = arith.constant 1 : index
    %c0_207 = arith.constant 0 : index
    %c0_208 = arith.constant 0 : index
    %c0_209 = arith.constant 0 : index
    %327 = vector.load %arg7[%c1_206, %c0_207, %c0_208, %c0_209] : memref<2x4x32x8xbf16, #tpu.memory_space<vmem>>, vector<1x1x32x8xbf16>
    %328 = vector.shape_cast %327 : vector<1x1x32x8xbf16> to vector<32x8xbf16>
    %cst_210 = arith.constant dense<0.000000e+00> : vector<16x8xf32>
    %329 = tpu.matmul %325, %328, %cst_210 {dimension_numbers = #tpu.dot_dimension_numbers<[1], [0], [0], [1], [0, 0, 1, 1], [], []>} : vector<16x32xbf16>, vector<32x8xbf16>, vector<16x8xf32> -> vector<16x8xf32>
    %c1_211 = arith.constant 1 : index
    %c0_212 = arith.constant 0 : index
    %c0_213 = arith.constant 0 : index
    %c0_214 = arith.constant 0 : index
    %330 = vector.load %arg10[%c1_211, %c0_212, %c0_213, %c0_214] : memref<2x4x1x8xf32, #tpu.memory_space<vmem>>, vector<1x1x1x8xf32>
    %331 = vector.shape_cast %330 : vector<1x1x1x8xf32> to vector<1x8xf32>
    %332 = vector.broadcast %331 : vector<1x8xf32> to vector<16x8xf32>
    %333 = arith.addf %329, %332 : vector<16x8xf32>
    %c1_215 = arith.constant 1 : index
    %c0_216 = arith.constant 0 : index
    %c0_217 = arith.constant 0 : index
    %c0_218 = arith.constant 0 : index
    %334 = vector.load %arg8[%c1_215, %c0_216, %c0_217, %c0_218] : memref<2x4x32x8xbf16, #tpu.memory_space<vmem>>, vector<1x1x32x8xbf16>
    %335 = vector.shape_cast %334 : vector<1x1x32x8xbf16> to vector<32x8xbf16>
    %cst_219 = arith.constant dense<0.000000e+00> : vector<16x8xf32>
    %336 = tpu.matmul %325, %335, %cst_219 {dimension_numbers = #tpu.dot_dimension_numbers<[1], [0], [0], [1], [0, 0, 1, 1], [], []>} : vector<16x32xbf16>, vector<32x8xbf16>, vector<16x8xf32> -> vector<16x8xf32>
    %c1_220 = arith.constant 1 : index
    %c0_221 = arith.constant 0 : index
    %c0_222 = arith.constant 0 : index
    %c0_223 = arith.constant 0 : index
    %337 = vector.load %arg11[%c1_220, %c0_221, %c0_222, %c0_223] : memref<2x4x1x8xf32, #tpu.memory_space<vmem>>, vector<1x1x1x8xf32>
    %338 = vector.shape_cast %337 : vector<1x1x1x8xf32> to vector<1x8xf32>
    %339 = vector.broadcast %338 : vector<1x8xf32> to vector<16x8xf32>
    %340 = arith.addf %336, %339 : vector<16x8xf32>
    %c1_224 = arith.constant 1 : index
    %c0_225 = arith.constant 0 : index
    %c0_226 = arith.constant 0 : index
    %c0_227 = arith.constant 0 : index
    %341 = vector.load %arg9[%c1_224, %c0_225, %c0_226, %c0_227] : memref<2x4x32x8xbf16, #tpu.memory_space<vmem>>, vector<1x1x32x8xbf16>
    %342 = vector.shape_cast %341 : vector<1x1x32x8xbf16> to vector<32x8xbf16>
    %cst_228 = arith.constant dense<0.000000e+00> : vector<16x8xf32>
    %343 = tpu.matmul %325, %342, %cst_228 {dimension_numbers = #tpu.dot_dimension_numbers<[1], [0], [0], [1], [0, 0, 1, 1], [], []>} : vector<16x32xbf16>, vector<32x8xbf16>, vector<16x8xf32> -> vector<16x8xf32>
    %c1_229 = arith.constant 1 : index
    %c0_230 = arith.constant 0 : index
    %c0_231 = arith.constant 0 : index
    %c0_232 = arith.constant 0 : index
    %344 = vector.load %arg12[%c1_229, %c0_230, %c0_231, %c0_232] : memref<2x4x1x8xf32, #tpu.memory_space<vmem>>, vector<1x1x1x8xf32>
    %345 = vector.shape_cast %344 : vector<1x1x1x8xf32> to vector<1x8xf32>
    %346 = vector.broadcast %345 : vector<1x8xf32> to vector<16x8xf32>
    %347 = arith.addf %343, %346 : vector<16x8xf32>
    %348 = arith.truncf %333 : vector<16x8xf32> to vector<16x8xbf16>
    %349 = vector.shape_cast %348 : vector<16x8xbf16> to vector<2x8x8xbf16>
    %350 = arith.truncf %340 : vector<16x8xf32> to vector<16x8xbf16>
    %351 = vector.shape_cast %350 : vector<16x8xbf16> to vector<2x8x8xbf16>
    %352 = arith.truncf %347 : vector<16x8xf32> to vector<16x8xbf16>
    %353 = vector.shape_cast %352 : vector<16x8xbf16> to vector<2x8x8xbf16>
    "tpu.trace_start"() <{level = 10 : i32, message = "bqd,bkd->bqk"}> : () -> ()
    %cst_233 = arith.constant dense<0.000000e+00> : vector<2x8x8xf32>
    %354 = tpu.matmul %349, %351, %cst_233 {dimension_numbers = #tpu.dot_dimension_numbers<[2], [2], [1], [1], [0, 0, 0, 1, 1, 1], [0], [0]>} : vector<2x8x8xbf16>, vector<2x8x8xbf16>, vector<2x8x8xf32> -> vector<2x8x8xf32>
    "tpu.trace_stop"() : () -> ()
    %355 = arith.addf %354, %51 : vector<2x8x8xf32>
    %cst_234 = arith.constant dense<0xFF800000> : vector<2x8xf32>
    %356 = vector.multi_reduction <maximumf>, %355, %cst_234 [2] : vector<2x8x8xf32> to vector<2x8xf32>
    %357 = vector.shape_cast %356 : vector<2x8xf32> to vector<2x8x1xf32>
    %358 = vector.broadcast %357 : vector<2x8x1xf32> to vector<2x8x8xf32>
    %359 = arith.subf %355, %358 : vector<2x8x8xf32>
    %360 = math.exp %359 : vector<2x8x8xf32>
    %cst_235 = arith.constant dense<0.000000e+00> : vector<2x8xf32>
    %361 = vector.multi_reduction <add>, %360, %cst_235 [2] : vector<2x8x8xf32> to vector<2x8xf32>
    %362 = vector.shape_cast %361 : vector<2x8xf32> to vector<2x8x1xf32>
    %363 = vector.broadcast %362 : vector<2x8x1xf32> to vector<2x8x8xf32>
    %364 = arith.divf %360, %363 : vector<2x8x8xf32>
    %365 = arith.truncf %364 : vector<2x8x8xf32> to vector<2x8x8xbf16>
    "tpu.trace_start"() <{level = 10 : i32, message = "bqk,bkd->bqd"}> : () -> ()
    %cst_236 = arith.constant dense<0.000000e+00> : vector<2x8x8xf32>
    %366 = tpu.matmul %365, %353, %cst_236 {dimension_numbers = #tpu.dot_dimension_numbers<[2], [1], [1], [2], [0, 0, 0, 1, 1, 2], [0], [0]>} : vector<2x8x8xbf16>, vector<2x8x8xbf16>, vector<2x8x8xf32> -> vector<2x8x8xf32>
    "tpu.trace_stop"() : () -> ()
    %367 = vector.shape_cast %366 : vector<2x8x8xf32> to vector<16x8xf32>
    %368 = arith.truncf %367 : vector<16x8xf32> to vector<16x8xbf16>
    %c1_237 = arith.constant 1 : index
    %c0_238 = arith.constant 0 : index
    %c0_239 = arith.constant 0 : index
    %c0_240 = arith.constant 0 : index
    %369 = vector.load %arg13[%c1_237, %c0_238, %c0_239, %c0_240] : memref<2x4x8x32xbf16, #tpu.memory_space<vmem>>, vector<1x1x8x32xbf16>
    %370 = vector.shape_cast %369 : vector<1x1x8x32xbf16> to vector<8x32xbf16>
    %cst_241 = arith.constant dense<0.000000e+00> : vector<16x32xf32>
    %371 = tpu.matmul %368, %370, %cst_241 {dimension_numbers = #tpu.dot_dimension_numbers<[1], [0], [0], [1], [0, 0, 1, 1], [], []>} : vector<16x8xbf16>, vector<8x32xbf16>, vector<16x32xf32> -> vector<16x32xf32>
    %372 = arith.addf %326, %371 : vector<16x32xf32>
    %c1_242 = arith.constant 1 : index
    %c1_243 = arith.constant 1 : index
    %c0_244 = arith.constant 0 : index
    %c0_245 = arith.constant 0 : index
    %373 = vector.load %arg7[%c1_242, %c1_243, %c0_244, %c0_245] : memref<2x4x32x8xbf16, #tpu.memory_space<vmem>>, vector<1x1x32x8xbf16>
    %374 = vector.shape_cast %373 : vector<1x1x32x8xbf16> to vector<32x8xbf16>
    %cst_246 = arith.constant dense<0.000000e+00> : vector<16x8xf32>
    %375 = tpu.matmul %325, %374, %cst_246 {dimension_numbers = #tpu.dot_dimension_numbers<[1], [0], [0], [1], [0, 0, 1, 1], [], []>} : vector<16x32xbf16>, vector<32x8xbf16>, vector<16x8xf32> -> vector<16x8xf32>
    %c1_247 = arith.constant 1 : index
    %c1_248 = arith.constant 1 : index
    %c0_249 = arith.constant 0 : index
    %c0_250 = arith.constant 0 : index
    %376 = vector.load %arg10[%c1_247, %c1_248, %c0_249, %c0_250] : memref<2x4x1x8xf32, #tpu.memory_space<vmem>>, vector<1x1x1x8xf32>
    %377 = vector.shape_cast %376 : vector<1x1x1x8xf32> to vector<1x8xf32>
    %378 = vector.broadcast %377 : vector<1x8xf32> to vector<16x8xf32>
    %379 = arith.addf %375, %378 : vector<16x8xf32>
    %c1_251 = arith.constant 1 : index
    %c1_252 = arith.constant 1 : index
    %c0_253 = arith.constant 0 : index
    %c0_254 = arith.constant 0 : index
    %380 = vector.load %arg8[%c1_251, %c1_252, %c0_253, %c0_254] : memref<2x4x32x8xbf16, #tpu.memory_space<vmem>>, vector<1x1x32x8xbf16>
    %381 = vector.shape_cast %380 : vector<1x1x32x8xbf16> to vector<32x8xbf16>
    %cst_255 = arith.constant dense<0.000000e+00> : vector<16x8xf32>
    %382 = tpu.matmul %325, %381, %cst_255 {dimension_numbers = #tpu.dot_dimension_numbers<[1], [0], [0], [1], [0, 0, 1, 1], [], []>} : vector<16x32xbf16>, vector<32x8xbf16>, vector<16x8xf32> -> vector<16x8xf32>
    %c1_256 = arith.constant 1 : index
    %c1_257 = arith.constant 1 : index
    %c0_258 = arith.constant 0 : index
    %c0_259 = arith.constant 0 : index
    %383 = vector.load %arg11[%c1_256, %c1_257, %c0_258, %c0_259] : memref<2x4x1x8xf32, #tpu.memory_space<vmem>>, vector<1x1x1x8xf32>
    %384 = vector.shape_cast %383 : vector<1x1x1x8xf32> to vector<1x8xf32>
    %385 = vector.broadcast %384 : vector<1x8xf32> to vector<16x8xf32>
    %386 = arith.addf %382, %385 : vector<16x8xf32>
    %c1_260 = arith.constant 1 : index
    %c1_261 = arith.constant 1 : index
    %c0_262 = arith.constant 0 : index
    %c0_263 = arith.constant 0 : index
    %387 = vector.load %arg9[%c1_260, %c1_261, %c0_262, %c0_263] : memref<2x4x32x8xbf16, #tpu.memory_space<vmem>>, vector<1x1x32x8xbf16>
    %388 = vector.shape_cast %387 : vector<1x1x32x8xbf16> to vector<32x8xbf16>
    %cst_264 = arith.constant dense<0.000000e+00> : vector<16x8xf32>
    %389 = tpu.matmul %325, %388, %cst_264 {dimension_numbers = #tpu.dot_dimension_numbers<[1], [0], [0], [1], [0, 0, 1, 1], [], []>} : vector<16x32xbf16>, vector<32x8xbf16>, vector<16x8xf32> -> vector<16x8xf32>
    %c1_265 = arith.constant 1 : index
    %c1_266 = arith.constant 1 : index
    %c0_267 = arith.constant 0 : index
    %c0_268 = arith.constant 0 : index
    %390 = vector.load %arg12[%c1_265, %c1_266, %c0_267, %c0_268] : memref<2x4x1x8xf32, #tpu.memory_space<vmem>>, vector<1x1x1x8xf32>
    %391 = vector.shape_cast %390 : vector<1x1x1x8xf32> to vector<1x8xf32>
    %392 = vector.broadcast %391 : vector<1x8xf32> to vector<16x8xf32>
    %393 = arith.addf %389, %392 : vector<16x8xf32>
    %394 = arith.truncf %379 : vector<16x8xf32> to vector<16x8xbf16>
    %395 = vector.shape_cast %394 : vector<16x8xbf16> to vector<2x8x8xbf16>
    %396 = arith.truncf %386 : vector<16x8xf32> to vector<16x8xbf16>
    %397 = vector.shape_cast %396 : vector<16x8xbf16> to vector<2x8x8xbf16>
    %398 = arith.truncf %393 : vector<16x8xf32> to vector<16x8xbf16>
    %399 = vector.shape_cast %398 : vector<16x8xbf16> to vector<2x8x8xbf16>
    "tpu.trace_start"() <{level = 10 : i32, message = "bqd,bkd->bqk"}> : () -> ()
    %cst_269 = arith.constant dense<0.000000e+00> : vector<2x8x8xf32>
    %400 = tpu.matmul %395, %397, %cst_269 {dimension_numbers = #tpu.dot_dimension_numbers<[2], [2], [1], [1], [0, 0, 0, 1, 1, 1], [0], [0]>} : vector<2x8x8xbf16>, vector<2x8x8xbf16>, vector<2x8x8xf32> -> vector<2x8x8xf32>
    "tpu.trace_stop"() : () -> ()
    %401 = arith.addf %400, %51 : vector<2x8x8xf32>
    %cst_270 = arith.constant dense<0xFF800000> : vector<2x8xf32>
    %402 = vector.multi_reduction <maximumf>, %401, %cst_270 [2] : vector<2x8x8xf32> to vector<2x8xf32>
    %403 = vector.shape_cast %402 : vector<2x8xf32> to vector<2x8x1xf32>
    %404 = vector.broadcast %403 : vector<2x8x1xf32> to vector<2x8x8xf32>
    %405 = arith.subf %401, %404 : vector<2x8x8xf32>
    %406 = math.exp %405 : vector<2x8x8xf32>
    %cst_271 = arith.constant dense<0.000000e+00> : vector<2x8xf32>
    %407 = vector.multi_reduction <add>, %406, %cst_271 [2] : vector<2x8x8xf32> to vector<2x8xf32>
    %408 = vector.shape_cast %407 : vector<2x8xf32> to vector<2x8x1xf32>
    %409 = vector.broadcast %408 : vector<2x8x1xf32> to vector<2x8x8xf32>
    %410 = arith.divf %406, %409 : vector<2x8x8xf32>
    %411 = arith.truncf %410 : vector<2x8x8xf32> to vector<2x8x8xbf16>
    "tpu.trace_start"() <{level = 10 : i32, message = "bqk,bkd->bqd"}> : () -> ()
    %cst_272 = arith.constant dense<0.000000e+00> : vector<2x8x8xf32>
    %412 = tpu.matmul %411, %399, %cst_272 {dimension_numbers = #tpu.dot_dimension_numbers<[2], [1], [1], [2], [0, 0, 0, 1, 1, 2], [0], [0]>} : vector<2x8x8xbf16>, vector<2x8x8xbf16>, vector<2x8x8xf32> -> vector<2x8x8xf32>
    "tpu.trace_stop"() : () -> ()
    %413 = vector.shape_cast %412 : vector<2x8x8xf32> to vector<16x8xf32>
    %414 = arith.truncf %413 : vector<16x8xf32> to vector<16x8xbf16>
    %c1_273 = arith.constant 1 : index
    %c1_274 = arith.constant 1 : index
    %c0_275 = arith.constant 0 : index
    %c0_276 = arith.constant 0 : index
    %415 = vector.load %arg13[%c1_273, %c1_274, %c0_275, %c0_276] : memref<2x4x8x32xbf16, #tpu.memory_space<vmem>>, vector<1x1x8x32xbf16>
    %416 = vector.shape_cast %415 : vector<1x1x8x32xbf16> to vector<8x32xbf16>
    %cst_277 = arith.constant dense<0.000000e+00> : vector<16x32xf32>
    %417 = tpu.matmul %414, %416, %cst_277 {dimension_numbers = #tpu.dot_dimension_numbers<[1], [0], [0], [1], [0, 0, 1, 1], [], []>} : vector<16x8xbf16>, vector<8x32xbf16>, vector<16x32xf32> -> vector<16x32xf32>
    %418 = arith.addf %372, %417 : vector<16x32xf32>
    %c1_278 = arith.constant 1 : index
    %c2_279 = arith.constant 2 : index
    %c0_280 = arith.constant 0 : index
    %c0_281 = arith.constant 0 : index
    %419 = vector.load %arg7[%c1_278, %c2_279, %c0_280, %c0_281] : memref<2x4x32x8xbf16, #tpu.memory_space<vmem>>, vector<1x1x32x8xbf16>
    %420 = vector.shape_cast %419 : vector<1x1x32x8xbf16> to vector<32x8xbf16>
    %cst_282 = arith.constant dense<0.000000e+00> : vector<16x8xf32>
    %421 = tpu.matmul %325, %420, %cst_282 {dimension_numbers = #tpu.dot_dimension_numbers<[1], [0], [0], [1], [0, 0, 1, 1], [], []>} : vector<16x32xbf16>, vector<32x8xbf16>, vector<16x8xf32> -> vector<16x8xf32>
    %c1_283 = arith.constant 1 : index
    %c2_284 = arith.constant 2 : index
    %c0_285 = arith.constant 0 : index
    %c0_286 = arith.constant 0 : index
    %422 = vector.load %arg10[%c1_283, %c2_284, %c0_285, %c0_286] : memref<2x4x1x8xf32, #tpu.memory_space<vmem>>, vector<1x1x1x8xf32>
    %423 = vector.shape_cast %422 : vector<1x1x1x8xf32> to vector<1x8xf32>
    %424 = vector.broadcast %423 : vector<1x8xf32> to vector<16x8xf32>
    %425 = arith.addf %421, %424 : vector<16x8xf32>
    %c1_287 = arith.constant 1 : index
    %c2_288 = arith.constant 2 : index
    %c0_289 = arith.constant 0 : index
    %c0_290 = arith.constant 0 : index
    %426 = vector.load %arg8[%c1_287, %c2_288, %c0_289, %c0_290] : memref<2x4x32x8xbf16, #tpu.memory_space<vmem>>, vector<1x1x32x8xbf16>
    %427 = vector.shape_cast %426 : vector<1x1x32x8xbf16> to vector<32x8xbf16>
    %cst_291 = arith.constant dense<0.000000e+00> : vector<16x8xf32>
    %428 = tpu.matmul %325, %427, %cst_291 {dimension_numbers = #tpu.dot_dimension_numbers<[1], [0], [0], [1], [0, 0, 1, 1], [], []>} : vector<16x32xbf16>, vector<32x8xbf16>, vector<16x8xf32> -> vector<16x8xf32>
    %c1_292 = arith.constant 1 : index
    %c2_293 = arith.constant 2 : index
    %c0_294 = arith.constant 0 : index
    %c0_295 = arith.constant 0 : index
    %429 = vector.load %arg11[%c1_292, %c2_293, %c0_294, %c0_295] : memref<2x4x1x8xf32, #tpu.memory_space<vmem>>, vector<1x1x1x8xf32>
    %430 = vector.shape_cast %429 : vector<1x1x1x8xf32> to vector<1x8xf32>
    %431 = vector.broadcast %430 : vector<1x8xf32> to vector<16x8xf32>
    %432 = arith.addf %428, %431 : vector<16x8xf32>
    %c1_296 = arith.constant 1 : index
    %c2_297 = arith.constant 2 : index
    %c0_298 = arith.constant 0 : index
    %c0_299 = arith.constant 0 : index
    %433 = vector.load %arg9[%c1_296, %c2_297, %c0_298, %c0_299] : memref<2x4x32x8xbf16, #tpu.memory_space<vmem>>, vector<1x1x32x8xbf16>
    %434 = vector.shape_cast %433 : vector<1x1x32x8xbf16> to vector<32x8xbf16>
    %cst_300 = arith.constant dense<0.000000e+00> : vector<16x8xf32>
    %435 = tpu.matmul %325, %434, %cst_300 {dimension_numbers = #tpu.dot_dimension_numbers<[1], [0], [0], [1], [0, 0, 1, 1], [], []>} : vector<16x32xbf16>, vector<32x8xbf16>, vector<16x8xf32> -> vector<16x8xf32>
    %c1_301 = arith.constant 1 : index
    %c2_302 = arith.constant 2 : index
    %c0_303 = arith.constant 0 : index
    %c0_304 = arith.constant 0 : index
    %436 = vector.load %arg12[%c1_301, %c2_302, %c0_303, %c0_304] : memref<2x4x1x8xf32, #tpu.memory_space<vmem>>, vector<1x1x1x8xf32>
    %437 = vector.shape_cast %436 : vector<1x1x1x8xf32> to vector<1x8xf32>
    %438 = vector.broadcast %437 : vector<1x8xf32> to vector<16x8xf32>
    %439 = arith.addf %435, %438 : vector<16x8xf32>
    %440 = arith.truncf %425 : vector<16x8xf32> to vector<16x8xbf16>
    %441 = vector.shape_cast %440 : vector<16x8xbf16> to vector<2x8x8xbf16>
    %442 = arith.truncf %432 : vector<16x8xf32> to vector<16x8xbf16>
    %443 = vector.shape_cast %442 : vector<16x8xbf16> to vector<2x8x8xbf16>
    %444 = arith.truncf %439 : vector<16x8xf32> to vector<16x8xbf16>
    %445 = vector.shape_cast %444 : vector<16x8xbf16> to vector<2x8x8xbf16>
    "tpu.trace_start"() <{level = 10 : i32, message = "bqd,bkd->bqk"}> : () -> ()
    %cst_305 = arith.constant dense<0.000000e+00> : vector<2x8x8xf32>
    %446 = tpu.matmul %441, %443, %cst_305 {dimension_numbers = #tpu.dot_dimension_numbers<[2], [2], [1], [1], [0, 0, 0, 1, 1, 1], [0], [0]>} : vector<2x8x8xbf16>, vector<2x8x8xbf16>, vector<2x8x8xf32> -> vector<2x8x8xf32>
    "tpu.trace_stop"() : () -> ()
    %447 = arith.addf %446, %51 : vector<2x8x8xf32>
    %cst_306 = arith.constant dense<0xFF800000> : vector<2x8xf32>
    %448 = vector.multi_reduction <maximumf>, %447, %cst_306 [2] : vector<2x8x8xf32> to vector<2x8xf32>
    %449 = vector.shape_cast %448 : vector<2x8xf32> to vector<2x8x1xf32>
    %450 = vector.broadcast %449 : vector<2x8x1xf32> to vector<2x8x8xf32>
    %451 = arith.subf %447, %450 : vector<2x8x8xf32>
    %452 = math.exp %451 : vector<2x8x8xf32>
    %cst_307 = arith.constant dense<0.000000e+00> : vector<2x8xf32>
    %453 = vector.multi_reduction <add>, %452, %cst_307 [2] : vector<2x8x8xf32> to vector<2x8xf32>
    %454 = vector.shape_cast %453 : vector<2x8xf32> to vector<2x8x1xf32>
    %455 = vector.broadcast %454 : vector<2x8x1xf32> to vector<2x8x8xf32>
    %456 = arith.divf %452, %455 : vector<2x8x8xf32>
    %457 = arith.truncf %456 : vector<2x8x8xf32> to vector<2x8x8xbf16>
    "tpu.trace_start"() <{level = 10 : i32, message = "bqk,bkd->bqd"}> : () -> ()
    %cst_308 = arith.constant dense<0.000000e+00> : vector<2x8x8xf32>
    %458 = tpu.matmul %457, %445, %cst_308 {dimension_numbers = #tpu.dot_dimension_numbers<[2], [1], [1], [2], [0, 0, 0, 1, 1, 2], [0], [0]>} : vector<2x8x8xbf16>, vector<2x8x8xbf16>, vector<2x8x8xf32> -> vector<2x8x8xf32>
    "tpu.trace_stop"() : () -> ()
    %459 = vector.shape_cast %458 : vector<2x8x8xf32> to vector<16x8xf32>
    %460 = arith.truncf %459 : vector<16x8xf32> to vector<16x8xbf16>
    %c1_309 = arith.constant 1 : index
    %c2_310 = arith.constant 2 : index
    %c0_311 = arith.constant 0 : index
    %c0_312 = arith.constant 0 : index
    %461 = vector.load %arg13[%c1_309, %c2_310, %c0_311, %c0_312] : memref<2x4x8x32xbf16, #tpu.memory_space<vmem>>, vector<1x1x8x32xbf16>
    %462 = vector.shape_cast %461 : vector<1x1x8x32xbf16> to vector<8x32xbf16>
    %cst_313 = arith.constant dense<0.000000e+00> : vector<16x32xf32>
    %463 = tpu.matmul %460, %462, %cst_313 {dimension_numbers = #tpu.dot_dimension_numbers<[1], [0], [0], [1], [0, 0, 1, 1], [], []>} : vector<16x8xbf16>, vector<8x32xbf16>, vector<16x32xf32> -> vector<16x32xf32>
    %464 = arith.addf %418, %463 : vector<16x32xf32>
    %c1_314 = arith.constant 1 : index
    %c3_315 = arith.constant 3 : index
    %c0_316 = arith.constant 0 : index
    %c0_317 = arith.constant 0 : index
    %465 = vector.load %arg7[%c1_314, %c3_315, %c0_316, %c0_317] : memref<2x4x32x8xbf16, #tpu.memory_space<vmem>>, vector<1x1x32x8xbf16>
    %466 = vector.shape_cast %465 : vector<1x1x32x8xbf16> to vector<32x8xbf16>
    %cst_318 = arith.constant dense<0.000000e+00> : vector<16x8xf32>
    %467 = tpu.matmul %325, %466, %cst_318 {dimension_numbers = #tpu.dot_dimension_numbers<[1], [0], [0], [1], [0, 0, 1, 1], [], []>} : vector<16x32xbf16>, vector<32x8xbf16>, vector<16x8xf32> -> vector<16x8xf32>
    %c1_319 = arith.constant 1 : index
    %c3_320 = arith.constant 3 : index
    %c0_321 = arith.constant 0 : index
    %c0_322 = arith.constant 0 : index
    %468 = vector.load %arg10[%c1_319, %c3_320, %c0_321, %c0_322] : memref<2x4x1x8xf32, #tpu.memory_space<vmem>>, vector<1x1x1x8xf32>
    %469 = vector.shape_cast %468 : vector<1x1x1x8xf32> to vector<1x8xf32>
    %470 = vector.broadcast %469 : vector<1x8xf32> to vector<16x8xf32>
    %471 = arith.addf %467, %470 : vector<16x8xf32>
    %c1_323 = arith.constant 1 : index
    %c3_324 = arith.constant 3 : index
    %c0_325 = arith.constant 0 : index
    %c0_326 = arith.constant 0 : index
    %472 = vector.load %arg8[%c1_323, %c3_324, %c0_325, %c0_326] : memref<2x4x32x8xbf16, #tpu.memory_space<vmem>>, vector<1x1x32x8xbf16>
    %473 = vector.shape_cast %472 : vector<1x1x32x8xbf16> to vector<32x8xbf16>
    %cst_327 = arith.constant dense<0.000000e+00> : vector<16x8xf32>
    %474 = tpu.matmul %325, %473, %cst_327 {dimension_numbers = #tpu.dot_dimension_numbers<[1], [0], [0], [1], [0, 0, 1, 1], [], []>} : vector<16x32xbf16>, vector<32x8xbf16>, vector<16x8xf32> -> vector<16x8xf32>
    %c1_328 = arith.constant 1 : index
    %c3_329 = arith.constant 3 : index
    %c0_330 = arith.constant 0 : index
    %c0_331 = arith.constant 0 : index
    %475 = vector.load %arg11[%c1_328, %c3_329, %c0_330, %c0_331] : memref<2x4x1x8xf32, #tpu.memory_space<vmem>>, vector<1x1x1x8xf32>
    %476 = vector.shape_cast %475 : vector<1x1x1x8xf32> to vector<1x8xf32>
    %477 = vector.broadcast %476 : vector<1x8xf32> to vector<16x8xf32>
    %478 = arith.addf %474, %477 : vector<16x8xf32>
    %c1_332 = arith.constant 1 : index
    %c3_333 = arith.constant 3 : index
    %c0_334 = arith.constant 0 : index
    %c0_335 = arith.constant 0 : index
    %479 = vector.load %arg9[%c1_332, %c3_333, %c0_334, %c0_335] : memref<2x4x32x8xbf16, #tpu.memory_space<vmem>>, vector<1x1x32x8xbf16>
    %480 = vector.shape_cast %479 : vector<1x1x32x8xbf16> to vector<32x8xbf16>
    %cst_336 = arith.constant dense<0.000000e+00> : vector<16x8xf32>
    %481 = tpu.matmul %325, %480, %cst_336 {dimension_numbers = #tpu.dot_dimension_numbers<[1], [0], [0], [1], [0, 0, 1, 1], [], []>} : vector<16x32xbf16>, vector<32x8xbf16>, vector<16x8xf32> -> vector<16x8xf32>
    %c1_337 = arith.constant 1 : index
    %c3_338 = arith.constant 3 : index
    %c0_339 = arith.constant 0 : index
    %c0_340 = arith.constant 0 : index
    %482 = vector.load %arg12[%c1_337, %c3_338, %c0_339, %c0_340] : memref<2x4x1x8xf32, #tpu.memory_space<vmem>>, vector<1x1x1x8xf32>
    %483 = vector.shape_cast %482 : vector<1x1x1x8xf32> to vector<1x8xf32>
    %484 = vector.broadcast %483 : vector<1x8xf32> to vector<16x8xf32>
    %485 = arith.addf %481, %484 : vector<16x8xf32>
    %486 = arith.truncf %471 : vector<16x8xf32> to vector<16x8xbf16>
    %487 = vector.shape_cast %486 : vector<16x8xbf16> to vector<2x8x8xbf16>
    %488 = arith.truncf %478 : vector<16x8xf32> to vector<16x8xbf16>
    %489 = vector.shape_cast %488 : vector<16x8xbf16> to vector<2x8x8xbf16>
    %490 = arith.truncf %485 : vector<16x8xf32> to vector<16x8xbf16>
    %491 = vector.shape_cast %490 : vector<16x8xbf16> to vector<2x8x8xbf16>
    "tpu.trace_start"() <{level = 10 : i32, message = "bqd,bkd->bqk"}> : () -> ()
    %cst_341 = arith.constant dense<0.000000e+00> : vector<2x8x8xf32>
    %492 = tpu.matmul %487, %489, %cst_341 {dimension_numbers = #tpu.dot_dimension_numbers<[2], [2], [1], [1], [0, 0, 0, 1, 1, 1], [0], [0]>} : vector<2x8x8xbf16>, vector<2x8x8xbf16>, vector<2x8x8xf32> -> vector<2x8x8xf32>
    "tpu.trace_stop"() : () -> ()
    %493 = arith.addf %492, %51 : vector<2x8x8xf32>
    %cst_342 = arith.constant dense<0xFF800000> : vector<2x8xf32>
    %494 = vector.multi_reduction <maximumf>, %493, %cst_342 [2] : vector<2x8x8xf32> to vector<2x8xf32>
    %495 = vector.shape_cast %494 : vector<2x8xf32> to vector<2x8x1xf32>
    %496 = vector.broadcast %495 : vector<2x8x1xf32> to vector<2x8x8xf32>
    %497 = arith.subf %493, %496 : vector<2x8x8xf32>
    %498 = math.exp %497 : vector<2x8x8xf32>
    %cst_343 = arith.constant dense<0.000000e+00> : vector<2x8xf32>
    %499 = vector.multi_reduction <add>, %498, %cst_343 [2] : vector<2x8x8xf32> to vector<2x8xf32>
    %500 = vector.shape_cast %499 : vector<2x8xf32> to vector<2x8x1xf32>
    %501 = vector.broadcast %500 : vector<2x8x1xf32> to vector<2x8x8xf32>
    %502 = arith.divf %498, %501 : vector<2x8x8xf32>
    %503 = arith.truncf %502 : vector<2x8x8xf32> to vector<2x8x8xbf16>
    "tpu.trace_start"() <{level = 10 : i32, message = "bqk,bkd->bqd"}> : () -> ()
    %cst_344 = arith.constant dense<0.000000e+00> : vector<2x8x8xf32>
    %504 = tpu.matmul %503, %491, %cst_344 {dimension_numbers = #tpu.dot_dimension_numbers<[2], [1], [1], [2], [0, 0, 0, 1, 1, 2], [0], [0]>} : vector<2x8x8xbf16>, vector<2x8x8xbf16>, vector<2x8x8xf32> -> vector<2x8x8xf32>
    "tpu.trace_stop"() : () -> ()
    %505 = vector.shape_cast %504 : vector<2x8x8xf32> to vector<16x8xf32>
    %506 = arith.truncf %505 : vector<16x8xf32> to vector<16x8xbf16>
    %c1_345 = arith.constant 1 : index
    %c3_346 = arith.constant 3 : index
    %c0_347 = arith.constant 0 : index
    %c0_348 = arith.constant 0 : index
    %507 = vector.load %arg13[%c1_345, %c3_346, %c0_347, %c0_348] : memref<2x4x8x32xbf16, #tpu.memory_space<vmem>>, vector<1x1x8x32xbf16>
    %508 = vector.shape_cast %507 : vector<1x1x8x32xbf16> to vector<8x32xbf16>
    %cst_349 = arith.constant dense<0.000000e+00> : vector<16x32xf32>
    %509 = tpu.matmul %506, %508, %cst_349 {dimension_numbers = #tpu.dot_dimension_numbers<[1], [0], [0], [1], [0, 0, 1, 1], [], []>} : vector<16x8xbf16>, vector<8x32xbf16>, vector<16x32xf32> -> vector<16x32xf32>
    %510 = arith.addf %464, %509 : vector<16x32xf32>
    %c1_350 = arith.constant 1 : index
    %c0_351 = arith.constant 0 : index
    %c0_352 = arith.constant 0 : index
    %511 = vector.load %arg14[%c1_350, %c0_351, %c0_352] : memref<2x1x32xf32, #tpu.memory_space<vmem>>, vector<1x1x32xf32>
    %512 = vector.shape_cast %511 : vector<1x1x32xf32> to vector<1x32xf32>
    %513 = vector.broadcast %512 : vector<1x32xf32> to vector<16x32xf32>
    %514 = arith.addf %510, %513 : vector<16x32xf32>
    %515 = arith.addf %514, %324 : vector<16x32xf32>
    %c1_353 = arith.constant 1 : index
    %c0_354 = arith.constant 0 : index
    %c0_355 = arith.constant 0 : index
    %516 = vector.load %arg15[%c1_353, %c0_354, %c0_355] : memref<2x1x32xf32, #tpu.memory_space<vmem>>, vector<1x1x32xf32>
    %517 = vector.shape_cast %516 : vector<1x1x32xf32> to vector<1x32xf32>
    %c1_356 = arith.constant 1 : index
    %c0_357 = arith.constant 0 : index
    %c0_358 = arith.constant 0 : index
    %518 = vector.load %arg16[%c1_356, %c0_357, %c0_358] : memref<2x1x32xf32, #tpu.memory_space<vmem>>, vector<1x1x32xf32>
    %519 = vector.shape_cast %518 : vector<1x1x32xf32> to vector<1x32xf32>
    %cst_359 = arith.constant dense<0.000000e+00> : vector<16xf32>
    %520 = vector.multi_reduction <add>, %515, %cst_359 [1] : vector<16x32xf32> to vector<16xf32>
    %521 = vector.shape_cast %520 : vector<16xf32> to vector<16x1xf32>
    %cst_360 = arith.constant 3.200000e+01 : f32
    %522 = vector.broadcast %cst_360 : f32 to vector<16x1xf32>
    %523 = arith.divf %521, %522 : vector<16x1xf32>
    %524 = vector.broadcast %523 : vector<16x1xf32> to vector<16x32xf32>
    %525 = arith.subf %515, %524 : vector<16x32xf32>
    %526 = arith.mulf %525, %525 : vector<16x32xf32>
    %cst_361 = arith.constant dense<0.000000e+00> : vector<16xf32>
    %527 = vector.multi_reduction <add>, %526, %cst_361 [1] : vector<16x32xf32> to vector<16xf32>
    %528 = vector.shape_cast %527 : vector<16xf32> to vector<16x1xf32>
    %cst_362 = arith.constant 3.200000e+01 : f32
    %529 = vector.broadcast %cst_362 : f32 to vector<16x1xf32>
    %530 = arith.divf %528, %529 : vector<16x1xf32>
    %531 = vector.broadcast %523 : vector<16x1xf32> to vector<16x32xf32>
    %532 = arith.subf %515, %531 : vector<16x32xf32>
    %cst_363 = arith.constant 9.99999996E-13 : f32
    %533 = vector.broadcast %cst_363 : f32 to vector<16x1xf32>
    %534 = arith.addf %530, %533 : vector<16x1xf32>
    %535 = math.rsqrt %534 : vector<16x1xf32>
    %536 = vector.broadcast %535 : vector<16x1xf32> to vector<16x32xf32>
    %537 = arith.mulf %532, %536 : vector<16x32xf32>
    %538 = vector.broadcast %517 : vector<1x32xf32> to vector<16x32xf32>
    %539 = arith.mulf %537, %538 : vector<16x32xf32>
    %540 = vector.broadcast %519 : vector<1x32xf32> to vector<16x32xf32>
    %541 = arith.addf %539, %540 : vector<16x32xf32>
    %542 = arith.truncf %541 : vector<16x32xf32> to vector<16x32xbf16>
    %c1_364 = arith.constant 1 : index
    %c0_365 = arith.constant 0 : index
    %c0_366 = arith.constant 0 : index
    %543 = vector.load %arg17[%c1_364, %c0_365, %c0_366] : memref<2x32x64xbf16, #tpu.memory_space<vmem>>, vector<1x32x64xbf16>
    %544 = vector.shape_cast %543 : vector<1x32x64xbf16> to vector<32x64xbf16>
    %cst_367 = arith.constant dense<0.000000e+00> : vector<16x64xf32>
    %545 = tpu.matmul %542, %544, %cst_367 {dimension_numbers = #tpu.dot_dimension_numbers<[1], [0], [0], [1], [0, 0, 1, 1], [], []>} : vector<16x32xbf16>, vector<32x64xbf16>, vector<16x64xf32> -> vector<16x64xf32>
    %c1_368 = arith.constant 1 : index
    %c0_369 = arith.constant 0 : index
    %c0_370 = arith.constant 0 : index
    %546 = vector.load %arg18[%c1_368, %c0_369, %c0_370] : memref<2x1x64xf32, #tpu.memory_space<vmem>>, vector<1x1x64xf32>
    %547 = vector.shape_cast %546 : vector<1x1x64xf32> to vector<1x64xf32>
    %548 = vector.broadcast %547 : vector<1x64xf32> to vector<16x64xf32>
    %549 = arith.addf %545, %548 : vector<16x64xf32>
    %550 = arith.mulf %549, %549 : vector<16x64xf32>
    %551 = arith.mulf %549, %550 : vector<16x64xf32>
    %cst_371 = arith.constant 4.471500e-02 : f32
    %552 = vector.broadcast %cst_371 : f32 to vector<16x64xf32>
    %553 = arith.mulf %552, %551 : vector<16x64xf32>
    %554 = arith.addf %549, %553 : vector<16x64xf32>
    %cst_372 = arith.constant 0.797884583 : f32
    %555 = vector.broadcast %cst_372 : f32 to vector<16x64xf32>
    %556 = arith.mulf %555, %554 : vector<16x64xf32>
    %557 = math.tanh %556 : vector<16x64xf32>
    %cst_373 = arith.constant 1.000000e+00 : f32
    %558 = vector.broadcast %cst_373 : f32 to vector<16x64xf32>
    %559 = arith.addf %558, %557 : vector<16x64xf32>
    %cst_374 = arith.constant 5.000000e-01 : f32
    %560 = vector.broadcast %cst_374 : f32 to vector<16x64xf32>
    %561 = arith.mulf %560, %559 : vector<16x64xf32>
    %562 = arith.mulf %549, %561 : vector<16x64xf32>
    %563 = arith.truncf %562 : vector<16x64xf32> to vector<16x64xbf16>
    %c1_375 = arith.constant 1 : index
    %c0_376 = arith.constant 0 : index
    %c0_377 = arith.constant 0 : index
    %564 = vector.load %arg19[%c1_375, %c0_376, %c0_377] : memref<2x64x32xbf16, #tpu.memory_space<vmem>>, vector<1x64x32xbf16>
    %565 = vector.shape_cast %564 : vector<1x64x32xbf16> to vector<64x32xbf16>
    %cst_378 = arith.constant dense<0.000000e+00> : vector<16x32xf32>
    %566 = tpu.matmul %563, %565, %cst_378 {dimension_numbers = #tpu.dot_dimension_numbers<[1], [0], [0], [1], [0, 0, 1, 1], [], []>} : vector<16x64xbf16>, vector<64x32xbf16>, vector<16x32xf32> -> vector<16x32xf32>
    %c1_379 = arith.constant 1 : index
    %c0_380 = arith.constant 0 : index
    %c0_381 = arith.constant 0 : index
    %567 = vector.load %arg20[%c1_379, %c0_380, %c0_381] : memref<2x1x32xf32, #tpu.memory_space<vmem>>, vector<1x1x32xf32>
    %568 = vector.shape_cast %567 : vector<1x1x32xf32> to vector<1x32xf32>
    %569 = vector.broadcast %568 : vector<1x32xf32> to vector<16x32xf32>
    %570 = arith.addf %566, %569 : vector<16x32xf32>
    %571 = arith.addf %570, %541 : vector<16x32xf32>
    %c1_382 = arith.constant 1 : index
    %c0_383 = arith.constant 0 : index
    %c0_384 = arith.constant 0 : index
    %572 = vector.load %arg21[%c1_382, %c0_383, %c0_384] : memref<2x1x32xf32, #tpu.memory_space<vmem>>, vector<1x1x32xf32>
    %573 = vector.shape_cast %572 : vector<1x1x32xf32> to vector<1x32xf32>
    %c1_385 = arith.constant 1 : index
    %c0_386 = arith.constant 0 : index
    %c0_387 = arith.constant 0 : index
    %574 = vector.load %arg22[%c1_385, %c0_386, %c0_387] : memref<2x1x32xf32, #tpu.memory_space<vmem>>, vector<1x1x32xf32>
    %575 = vector.shape_cast %574 : vector<1x1x32xf32> to vector<1x32xf32>
    %cst_388 = arith.constant dense<0.000000e+00> : vector<16xf32>
    %576 = vector.multi_reduction <add>, %571, %cst_388 [1] : vector<16x32xf32> to vector<16xf32>
    %577 = vector.shape_cast %576 : vector<16xf32> to vector<16x1xf32>
    %cst_389 = arith.constant 3.200000e+01 : f32
    %578 = vector.broadcast %cst_389 : f32 to vector<16x1xf32>
    %579 = arith.divf %577, %578 : vector<16x1xf32>
    %580 = vector.broadcast %579 : vector<16x1xf32> to vector<16x32xf32>
    %581 = arith.subf %571, %580 : vector<16x32xf32>
    %582 = arith.mulf %581, %581 : vector<16x32xf32>
    %cst_390 = arith.constant dense<0.000000e+00> : vector<16xf32>
    %583 = vector.multi_reduction <add>, %582, %cst_390 [1] : vector<16x32xf32> to vector<16xf32>
    %584 = vector.shape_cast %583 : vector<16xf32> to vector<16x1xf32>
    %cst_391 = arith.constant 3.200000e+01 : f32
    %585 = vector.broadcast %cst_391 : f32 to vector<16x1xf32>
    %586 = arith.divf %584, %585 : vector<16x1xf32>
    %587 = vector.broadcast %579 : vector<16x1xf32> to vector<16x32xf32>
    %588 = arith.subf %571, %587 : vector<16x32xf32>
    %cst_392 = arith.constant 9.99999996E-13 : f32
    %589 = vector.broadcast %cst_392 : f32 to vector<16x1xf32>
    %590 = arith.addf %586, %589 : vector<16x1xf32>
    %591 = math.rsqrt %590 : vector<16x1xf32>
    %592 = vector.broadcast %591 : vector<16x1xf32> to vector<16x32xf32>
    %593 = arith.mulf %588, %592 : vector<16x32xf32>
    %594 = vector.broadcast %573 : vector<1x32xf32> to vector<16x32xf32>
    %595 = arith.mulf %593, %594 : vector<16x32xf32>
    %596 = vector.broadcast %575 : vector<1x32xf32> to vector<16x32xf32>
    %597 = arith.addf %595, %596 : vector<16x32xf32>
    %598 = vector.shape_cast %597 : vector<16x32xf32> to vector<2x8x32xf32>
    %599 = vector.extract_strided_slice %598 {offsets = [0, 0, 0], sizes = [2, 1, 32], strides = [1, 1, 1]} : vector<2x8x32xf32> to vector<2x1x32xf32>
    %600 = vector.shape_cast %599 : vector<2x1x32xf32> to vector<2x32xf32>
    %601 = arith.truncf %600 : vector<2x32xf32> to vector<2x32xbf16>
    %c0_393 = arith.constant 0 : index
    %c0_394 = arith.constant 0 : index
    %602 = vector.load %arg23[%c0_393, %c0_394] : memref<32x3xbf16, #tpu.memory_space<vmem>>, vector<32x3xbf16>
    %cst_395 = arith.constant dense<0.000000e+00> : vector<2x3xf32>
    %603 = tpu.matmul %601, %602, %cst_395 {dimension_numbers = #tpu.dot_dimension_numbers<[1], [0], [0], [1], [0, 0, 1, 1], [], []>} : vector<2x32xbf16>, vector<32x3xbf16>, vector<2x3xf32> -> vector<2x3xf32>
    %c0_396 = arith.constant 0 : index
    %c0_397 = arith.constant 0 : index
    %604 = vector.load %arg24[%c0_396, %c0_397] : memref<1x3xf32, #tpu.memory_space<vmem>>, vector<1x3xf32>
    %605 = vector.broadcast %604 : vector<1x3xf32> to vector<2x3xf32>
    %606 = arith.addf %603, %605 : vector<2x3xf32>
    %c0_398 = arith.constant 0 : index
    %c0_399 = arith.constant 0 : index
    %607 = vector.load %arg25[%c0_398, %c0_399] : memref<2x3xf32, #tpu.memory_space<vmem>>, vector<2x3xf32>
    tpu.vector_store %arg25[%c0_398, %c0_399], %606 {strides = array<i32>} : memref<2x3xf32, #tpu.memory_space<vmem>>, vector<2x3xf32>,
    return
  }
}

</mosaic_0001>

<llo_original>
// kernel: forward.1
$region0: #{forward.1}
  #allocation0 [shape = 'u32[]', space=smem, size = 0x4, offset = 0x4, fixed_abs, tag = 'smem constant byte address 0x4 - core index']
  #allocation1 [shape = 'u32[72,128]{1,0:T(1,128)}', space=vmem, size = 0x9000, scoped, tag = 'internal scratch']
  %s0 = inlined_call_operand.vmem [shape: s32[16,1], index: 0, kind: input, shape index: {}]
  %s1 = inlined_call_operand.vmem [shape: s32[2,8], index: 1, kind: input, shape index: {}]
  %s2 = inlined_call_operand.vmem [shape: bf16[100,32], index: 2, kind: input, shape index: {}]
  %s3 = inlined_call_operand.vmem [shape: f32[16,32], index: 3, kind: input, shape index: {}]
  %s4 = inlined_call_operand.vmem [shape: f32[2,32], index: 4, kind: input, shape index: {}]
  %s5 = inlined_call_operand.vmem [shape: f32[1,32], index: 5, kind: input, shape index: {}]
  %s6 = inlined_call_operand.vmem [shape: f32[1,32], index: 6, kind: input, shape index: {}]
  %s7 = inlined_call_operand.vmem [shape: bf16[2,4,32,8], index: 7, kind: input, shape index: {}]
  %s8 = inlined_call_operand.vmem [shape: bf16[2,4,32,8], index: 8, kind: input, shape index: {}]
  %s9 = inlined_call_operand.vmem [shape: bf16[2,4,32,8], index: 9, kind: input, shape index: {}]
  %s10 = inlined_call_operand.vmem [shape: f32[2,4,1,8], index: 10, kind: input, shape index: {}]
  %s11 = inlined_call_operand.vmem [shape: f32[2,4,1,8], index: 11, kind: input, shape index: {}]
  %s12 = inlined_call_operand.vmem [shape: f32[2,4,1,8], index: 12, kind: input, shape index: {}]
  %s13 = inlined_call_operand.vmem [shape: bf16[2,4,8,32], index: 13, kind: input, shape index: {}]
  %s14 = inlined_call_operand.vmem [shape: f32[2,1,32], index: 14, kind: input, shape index: {}]
  %s15 = inlined_call_operand.vmem [shape: f32[2,1,32], index: 15, kind: input, shape index: {}]
  %s16 = inlined_call_operand.vmem [shape: f32[2,1,32], index: 16, kind: input, shape index: {}]
  %s17 = inlined_call_operand.vmem [shape: bf16[2,32,64], index: 17, kind: input, shape index: {}]
  %s18 = inlined_call_operand.vmem [shape: f32[2,1,64], index: 18, kind: input, shape index: {}]
  %s19 = inlined_call_operand.vmem [shape: bf16[2,64,32], index: 19, kind: input, shape index: {}]
  %s20 = inlined_call_operand.vmem [shape: f32[2,1,32], index: 20, kind: input, shape index: {}]
  %s21 = inlined_call_operand.vmem [shape: f32[2,1,32], index: 21, kind: input, shape index: {}]
  %s22 = inlined_call_operand.vmem [shape: f32[2,1,32], index: 22, kind: input, shape index: {}]
  %s23 = inlined_call_operand.vmem [shape: bf16[32,3], index: 23, kind: input, shape index: {}]
  %s24 = inlined_call_operand.vmem [shape: f32[1,3], index: 24, kind: input, shape index: {}]
  %s25 = inlined_call_operand.hbm [shape: f32[2,3], index: 25, kind: output, shape index: {}]
  %s26 = sld [smem:[#allocation0]]
  $region110: #{forward.1} parent=0
    _
  %s28 = ssub.s32 1, %s26
  %s29 = scalar_select 0, %s28, %s26
  $region1: #{forward.1} parent=0
    #allocation2 [shape = 'u8[1024]{0}', space=vmem, size = 0x400, scoped, tag = 'output window, operand 0, single buffered']
    #allocation3 [shape = 's32[1]{0}', space=sflag, size = 0x4, scoped, tag = 'scoped memory for forward.1']
    %30 = vsyncpa [#allocation3], 0
    // Predicated region
    $region2: #{forward.1} parent=1 // pred_check
      _
    $region3: #{forward.1} parent=1 // pred_check_branch
      %32 = sbr.rel (0) target = $region5
    $region4: #{forward.1} parent=1 // pred_region
      _
    $region5: #{forward.1} parent=1 // pred_fallthru
      _
    // Predicated region
    $region6: #{forward.1} parent=1 // pred_check
      _
    $region7: #{forward.1} parent=1 // pred_check_branch
      %34 = sbr.rel (0) target = $region9
    $region8: #{forward.1} parent=1 // pred_region
      _
    $region9: #{forward.1} parent=1 // pred_fallthru
      _
    // Predicated region
    $region10: #{forward.1} parent=1 // pred_check
      _
    $region11: #{forward.1} parent=1 // pred_check_branch
      %36 = sbr.rel (0) target = $region13
    $region12: #{forward.1} parent=1 // pred_region
      _
    $region13: #{forward.1} parent=1 // pred_fallthru
      _
    // Predicated region
    $region14: #{forward.1} parent=1 // pred_check
      _
    $region15: #{forward.1} parent=1 // pred_check_branch
      %38 = sbr.rel (0) target = $region17
    $region16: #{forward.1} parent=1 // pred_region
      _
    $region17: #{forward.1} parent=1 // pred_fallthru
      _
    // Predicated region
    $region18: #{forward.1} parent=1 // pred_check
      _
    $region19: #{forward.1} parent=1 // pred_check_branch
      %40 = sbr.rel (0) target = $region21
    $region20: #{forward.1} parent=1 // pred_region
      _
    $region21: #{forward.1} parent=1 // pred_fallthru
      _
    // Predicated region
    $region22: #{forward.1} parent=1 // pred_check
      _
    $region23: #{forward.1} parent=1 // pred_check_branch
      %42 = sbr.rel (0) target = $region25
    $region24: #{forward.1} parent=1 // pred_region
      _
    $region25: #{forward.1} parent=1 // pred_fallthru
      _
    // Predicated region
    $region26: #{forward.1} parent=1 // pred_check
      _
    $region27: #{forward.1} parent=1 // pred_check_branch
      %44 = sbr.rel (0) target = $region29
    $region28: #{forward.1} parent=1 // pred_region
      _
    $region29: #{forward.1} parent=1 // pred_fallthru
      _
    // Predicated region
    $region30: #{forward.1} parent=1 // pred_check
      _
    $region31: #{forward.1} parent=1 // pred_check_branch
      %46 = sbr.rel (0) target = $region33
    $region32: #{forward.1} parent=1 // pred_region
      _
    $region33: #{forward.1} parent=1 // pred_fallthru
      _
    // Predicated region
    $region34: #{forward.1} parent=1 // pred_check
      _
    $region35: #{forward.1} parent=1 // pred_check_branch
      %48 = sbr.rel (0) target = $region37
    $region36: #{forward.1} parent=1 // pred_region
      _
    $region37: #{forward.1} parent=1 // pred_fallthru
      _
    // Predicated region
    $region38: #{forward.1} parent=1 // pred_check
      _
    $region39: #{forward.1} parent=1 // pred_check_branch
      %50 = sbr.rel (0) target = $region41
    $region40: #{forward.1} parent=1 // pred_region
      _
    $region41: #{forward.1} parent=1 // pred_fallthru
      _
    // Predicated region
    $region42: #{forward.1} parent=1 // pred_check
      _
    $region43: #{forward.1} parent=1 // pred_check_branch
      %52 = sbr.rel (0) target = $region45
    $region44: #{forward.1} parent=1 // pred_region
      _
    $region45: #{forward.1} parent=1 // pred_fallthru
      _
    // Predicated region
    $region46: #{forward.1} parent=1 // pred_check
      _
    $region47: #{forward.1} parent=1 // pred_check_branch
      %54 = sbr.rel (0) target = $region49
    $region48: #{forward.1} parent=1 // pred_region
      _
    $region49: #{forward.1} parent=1 // pred_fallthru
      _
    // Predicated region
    $region50: #{forward.1} parent=1 // pred_check
      _
    $region51: #{forward.1} parent=1 // pred_check_branch
      %56 = sbr.rel (0) target = $region53
    $region52: #{forward.1} parent=1 // pred_region
      _
    $region53: #{forward.1} parent=1 // pred_fallthru
      _
    // Predicated region
    $region54: #{forward.1} parent=1 // pred_check
      _
    $region55: #{forward.1} parent=1 // pred_check_branch
      %58 = sbr.rel (0) target = $region57
    $region56: #{forward.1} parent=1 // pred_region
      _
    $region57: #{forward.1} parent=1 // pred_fallthru
      _
    // Predicated region
    $region58: #{forward.1} parent=1 // pred_check
      _
    $region59: #{forward.1} parent=1 // pred_check_branch
      %60 = sbr.rel (0) target = $region61
    $region60: #{forward.1} parent=1 // pred_region
      _
    $region61: #{forward.1} parent=1 // pred_fallthru
      _
    // Predicated region
    $region62: #{forward.1} parent=1 // pred_check
      _
    $region63: #{forward.1} parent=1 // pred_check_branch
      %62 = sbr.rel (0) target = $region65
    $region64: #{forward.1} parent=1 // pred_region
      _
    $region65: #{forward.1} parent=1 // pred_fallthru
      _
    // Predicated region
    $region66: #{forward.1} parent=1 // pred_check
      _
    $region67: #{forward.1} parent=1 // pred_check_branch
      %64 = sbr.rel (0) target = $region69
    $region68: #{forward.1} parent=1 // pred_region
      _
    $region69: #{forward.1} parent=1 // pred_fallthru
      _
    // Predicated region
    $region70: #{forward.1} parent=1 // pred_check
      _
    $region71: #{forward.1} parent=1 // pred_check_branch
      %66 = sbr.rel (0) target = $region73
    $region72: #{forward.1} parent=1 // pred_region
      _
    $region73: #{forward.1} parent=1 // pred_fallthru
      _
    // Predicated region
    $region74: #{forward.1} parent=1 // pred_check
      _
    $region75: #{forward.1} parent=1 // pred_check_branch
      %68 = sbr.rel (0) target = $region77
    $region76: #{forward.1} parent=1 // pred_region
      _
    $region77: #{forward.1} parent=1 // pred_fallthru
      _
    // Predicated region
    $region78: #{forward.1} parent=1 // pred_check
      _
    $region79: #{forward.1} parent=1 // pred_check_branch
      %70 = sbr.rel (0) target = $region81
    $region80: #{forward.1} parent=1 // pred_region
      _
    $region81: #{forward.1} parent=1 // pred_fallthru
      _
    // Predicated region
    $region82: #{forward.1} parent=1 // pred_check
      _
    $region83: #{forward.1} parent=1 // pred_check_branch
      %72 = sbr.rel (0) target = $region85
    $region84: #{forward.1} parent=1 // pred_region
      _
    $region85: #{forward.1} parent=1 // pred_fallthru
      _
    // Predicated region
    $region86: #{forward.1} parent=1 // pred_check
      _
    $region87: #{forward.1} parent=1 // pred_check_branch
      %74 = sbr.rel (0) target = $region89
    $region88: #{forward.1} parent=1 // pred_region
      _
    $region89: #{forward.1} parent=1 // pred_fallthru
      _
    // Predicated region
    $region90: #{forward.1} parent=1 // pred_check
      _
    $region91: #{forward.1} parent=1 // pred_check_branch
      %76 = sbr.rel (0) target = $region93
    $region92: #{forward.1} parent=1 // pred_region
      _
    $region93: #{forward.1} parent=1 // pred_fallthru
      _
    // Predicated region
    $region94: #{forward.1} parent=1 // pred_check
      _
    $region95: #{forward.1} parent=1 // pred_check_branch
      %78 = sbr.rel (0) target = $region97
    $region96: #{forward.1} parent=1 // pred_region
      _
    $region97: #{forward.1} parent=1 // pred_fallthru
      _
    // Predicated region
    $region98: #{forward.1} parent=1 // pred_check
      _
    $region99: #{forward.1} parent=1 // pred_check_branch
      %80 = sbr.rel (0) target = $region101
    $region100: #{forward.1} parent=1 // pred_region
      _
    $region101: #{forward.1} parent=1 // pred_fallthru
      _
    %v82 = vld [vmem:[%s0] sm:$0xff]
    %v83 = vld [vmem:[%s0 + $0x8] sm:$0xff]
    %v84 = vlaneseq
    %v85 = vand.u32 %v84, 127
    %86 = vset.pattern.permute.xlu0 0
    %87 = vperm.xlu0 %86, %v82
    %v88 = vpop.permute.xlu0 %87
    %89 = vset.pattern.permute.xlu0 0
    %90 = vperm.xlu0 %89, %v83
    %v91 = vpop.permute.xlu0 %90
    %vm92 = vcmp.eq.s32.totalorder %v88, %v85
    %vm93 = vcmp.eq.s32.totalorder %v91, %v85
    %v94 = vsel %vm92, 1, 0
    %v95 = vsel %vm93, 1, 0
    %v96 = vcvt.s32.f32 %v94
    %v97 = vcvt.s32.f32 %v95
    %v98 = vpack.c.bf16 %v97, %v96
    %v99 = vld [vmem:[%s2] sm:$0xf]
    %v100 = vld [vmem:[%s2 + $0x4] sm:$0xf]
    %v101 = vld [vmem:[%s2 + $0x8] sm:$0xf]
    %v102 = vld [vmem:[%s2 + $0xc] sm:$0xf]
    %v103 = vld [vmem:[%s2 + $0x10] sm:$0xf]
    %v104 = vld [vmem:[%s2 + $0x14] sm:$0xf]
    %v105 = vld [vmem:[%s2 + $0x18] sm:$0xf]
    %v106 = vld [vmem:[%s2 + $0x1c] sm:$0xf]
    %v107 = vld [vmem:[%s2 + $0x20] sm:$0xf]
    %v108 = vld [vmem:[%s2 + $0x24] sm:$0xf]
    %v109 = vld [vmem:[%s2 + $0x28] sm:$0xf]
    %v110 = vld [vmem:[%s2 + $0x2c] sm:$0xf]
    %v111 = vld [vmem:[%s2 + $0x30] sm:$0x3]
    %v125 = vunpack.c.l.b16 %v99
    %v126 = vunpack.c.l.b16 %v100
    %v127 = vunpack.c.l.b16 %v101
    %v128 = vunpack.c.l.b16 %v102
    %v129 = vunpack.c.l.b16 %v103
    %v130 = vunpack.c.l.b16 %v104
    %v131 = vunpack.c.l.b16 %v105
    %v132 = vunpack.c.l.b16 %v106
    %v133 = vunpack.c.l.b16 %v107
    %v134 = vunpack.c.l.b16 %v108
    %v135 = vunpack.c.l.b16 %v109
    %v136 = vunpack.c.l.b16 %v110
    %v137 = vunpack.c.l.b16 %v111
    %v138 = vpack.c.b16 %v126, %v125
    %v139 = vpack.c.b16 %v128, %v127
    %v140 = vpack.c.b16 %v130, %v129
    %v141 = vpack.c.b16 %v132, %v131
    %v142 = vpack.c.b16 %v134, %v133
    %v143 = vpack.c.b16 %v136, %v135
    %v144 = vpack.c.b16 %v137, %v137
    %vm151 = vcmask 818176
    %v153 = vsel %vm151, %v98, 0
    %vm155 = vcmask 1041408
    %v157 = vsel %vm155, %v144, 0
    %159 = vmatpush.bf16.msra.mxu0 0
    %160 = vmatpush.bf16.msra.mxu0 %v157
    %161 = vmatpush.bf16.msra.mxu0 %v143
    %162 = vmatpush.bf16.msra.mxu0 %v142
    %163 = vmatpush.bf16.msra.mxu0 %v141
    %164 = vmatpush.bf16.msra.mxu0 %v140
    %165 = vmatpush.bf16.msra.mxu0 %v139
    %166 = vmatpush.bf16.msra.mxu0 %v138
    %167 = vmatmul.bf16.gmra.mxu0 %v153
    %v168 = vpop.f32.mrf.mxu0
    %v169 = vadd.f32 0.0, %v168
    %v170 = vpop.f32.mrf.mxu0
    %v171 = vadd.f32 0.0, %v170
    %172 = vdwg.mxu0
    %v173 = vld [vmem:[%s3] sm:$0xff]
    %v174 = vld [vmem:[%s4] sm:$0x1]
    %v175 = vadd.f32 %v169, %v173
    %v176 = vadd.f32 %v171, %v173
    %v177 = vperm.slane %v174, 0
    %v178 = vadd.f32 %v175, %v177
    %v179 = vadd.f32 %v176, %v177
    %v180 = vld [vmem:[%s5] sm:$0x1]
    %v181 = vld [vmem:[%s6] sm:$0x1]
    %vm182 = vcmask 261120
    %v183 = vsel %vm182, %v178, 0.0
    %184 = vadd.xlane.f32.xlu0 %v183
    %v185 = vpop.xlane.xlu0 %184
    %v186 = vsel %vm182, %v179, 0.0
    %187 = vadd.xlane.f32.xlu0 %v186
    %v188 = vpop.xlane.xlu0 %187
    %v189 = vrcp.pop 32.0
    %v190 = vmul.f32 32.0, %v189
    %v191 = vsub.f32 1.0, %v190
    %v192 = vmul.f32 %v189, %v191
    %v193 = vadd.f32 %v189, %v192
    %vm194 = vweird.f32 %v189
    %v195 = vsel %vm194, %v189, %v193
    %v196 = vmul.f32 %v185, %v195
    %v197 = vmul.f32 %v188, %v195
    %v198 = vsub.f32 %v178, %v196
    %v199 = vsub.f32 %v179, %v197
    %v200 = vmul.f32 %v198, %v198
    %v201 = vmul.f32 %v199, %v199
    %v202 = vsel %vm182, %v200, 0.0
    %203 = vadd.xlane.f32.xlu0 %v202
    %v204 = vpop.xlane.xlu0 %203
    %v205 = vsel %vm182, %v201, 0.0
    %206 = vadd.xlane.f32.xlu0 %v205
    %v207 = vpop.xlane.xlu0 %206
    %v208 = vmul.f32 %v204, %v195
    %v209 = vmul.f32 %v207, %v195
    %v210 = vadd.f32 %v208, 1e-12
    %v211 = vadd.f32 %v209, 1e-12
    %v212 = vrsqrt.pop %v210
    %v213 = vmul.f32 %v212, %v210
    %v214 = vmul.f32 %v213, %v212
    %v215 = vmul.f32 0.5, %v214
    %v216 = vsub.f32 1.5, %v215
    %v217 = vmul.f32 %v212, %v216
    %vm218 = vweird.f32 %v210
    %vm219 = vweird.f32 %v212
    %vm220 = vmor %vm218, %vm219
    %v221 = vsel %vm220, %v212, %v217
    %v222 = vrsqrt.pop %v211
    %v223 = vmul.f32 %v222, %v211
    %v224 = vmul.f32 %v223, %v222
    %v225 = vmul.f32 0.5, %v224
    %v226 = vsub.f32 1.5, %v225
    %v227 = vmul.f32 %v222, %v226
    %vm228 = vweird.f32 %v211
    %vm229 = vweird.f32 %v222
    %vm230 = vmor %vm228, %vm229
    %v231 = vsel %vm230, %v222, %v227
    %v232 = vmul.f32 %v198, %v221
    %v233 = vmul.f32 %v199, %v231
    %v235 = vperm.slane %v180, 0
    %v237 = vmul.f32 %v232, %v235
    %v238 = vmul.f32 %v233, %v235
    %v240 = vperm.slane %v181, 0
    %v242 = vadd.f32 %v237, %v240
    %v243 = vadd.f32 %v238, %v240
    %v244 = vld [vmem:[%s1] sm:$0x3]
    %v245 = vcvt.s32.f32 %v244
    %v246 = vsub.f32 1.0, %v245
    %v247 = vmul.f32 %v246, -1e+09
    %v249 = vrot.slane %v247, 1
    %v250 = vperm.slane %v247, 0
    %v251 = vperm.slane %v249, 0
    %v254 = vpack.c.bf16 %v243, %v242
    %v255 = vld [vmem:[%s7] sm:$0xf]
    %v256 = vld [vmem:[%s7 + $0x4] sm:$0xf]
    %v257 = vld [vmem:[%s7 + $0x8] sm:$0xf]
    %v258 = vld [vmem:[%s7 + $0xc] sm:$0xf]
    %v259 = vld [vmem:[%s10] sm:$0x1]
    %v261 = vperm.slane %v259, 0
    %v267 = vunpack.c.l.b16 %v255
    %v268 = vunpack.c.l.b16 %v256
    %v269 = vunpack.c.l.b16 %v257
    %v270 = vunpack.c.l.b16 %v258
    %v271 = vpack.c.b16 %v268, %v267
    %v272 = vpack.c.b16 %v270, %v269
    %v276 = vsel %vm182, %v254, 0
    %278 = vmatpush.bf16.msra.mxu0 0
    %279 = vmatpush.bf16.msra.mxu0 0
    %280 = vmatpush.bf16.msra.mxu0 0
    %281 = vmatpush.bf16.msra.mxu0 0
    %282 = vmatpush.bf16.msra.mxu0 0
    %283 = vmatpush.bf16.msra.mxu0 0
    %284 = vmatpush.bf16.msra.mxu0 %v272
    %285 = vmatpush.bf16.msra.mxu0 %v271
    %286 = vmatmul.bf16.gmra.mxu0 %v276
    %v287 = vpop.f32.mrf.mxu0
    %v288 = vadd.f32 %v261, %v287
    %v289 = vpop.f32.mrf.mxu0
    %v290 = vadd.f32 %v261, %v289
    %291 = vdwg.mxu0
    %v292 = vld [vmem:[%s8] sm:$0xf]
    %v293 = vld [vmem:[%s8 + $0x4] sm:$0xf]
    %v294 = vld [vmem:[%s8 + $0x8] sm:$0xf]
    %v295 = vld [vmem:[%s8 + $0xc] sm:$0xf]
    %v296 = vld [vmem:[%s11] sm:$0x1]
    %v298 = vperm.slane %v296, 0
    %v304 = vunpack.c.l.b16 %v292
    %v305 = vunpack.c.l.b16 %v293
    %v306 = vunpack.c.l.b16 %v294
    %v307 = vunpack.c.l.b16 %v295
    %v308 = vpack.c.b16 %v305, %v304
    %v309 = vpack.c.b16 %v307, %v306
    %312 = vmatpush.bf16.msra.mxu0 0
    %313 = vmatpush.bf16.msra.mxu0 0
    %314 = vmatpush.bf16.msra.mxu0 0
    %315 = vmatpush.bf16.msra.mxu0 0
    %316 = vmatpush.bf16.msra.mxu0 0
    %317 = vmatpush.bf16.msra.mxu0 0
    %318 = vmatpush.bf16.msra.mxu0 %v309
    %319 = vmatpush.bf16.msra.mxu0 %v308
    %320 = vmatmul.bf16.gmra.mxu0 %v276
    %v321 = vpop.f32.mrf.mxu0
    %v322 = vadd.f32 %v298, %v321
    %v323 = vpop.f32.mrf.mxu0
    %v324 = vadd.f32 %v298, %v323
    %325 = vdwg.mxu0
    %v326 = vld [vmem:[%s9] sm:$0xf]
    %v327 = vld [vmem:[%s9 + $0x4] sm:$0xf]
    %v328 = vld [vmem:[%s9 + $0x8] sm:$0xf]
    %v329 = vld [vmem:[%s9 + $0xc] sm:$0xf]
    %v330 = vld [vmem:[%s12] sm:$0x1]
    %v332 = vperm.slane %v330, 0
    %v338 = vunpack.c.l.b16 %v326
    %v339 = vunpack.c.l.b16 %v327
    %v340 = vunpack.c.l.b16 %v328
    %v341 = vunpack.c.l.b16 %v329
    %v342 = vpack.c.b16 %v339, %v338
    %v343 = vpack.c.b16 %v341, %v340
    %346 = vmatpush.bf16.msra.mxu0 0
    %347 = vmatpush.bf16.msra.mxu0 0
    %348 = vmatpush.bf16.msra.mxu0 0
    %349 = vmatpush.bf16.msra.mxu0 0
    %350 = vmatpush.bf16.msra.mxu0 0
    %351 = vmatpush.bf16.msra.mxu0 0
    %352 = vmatpush.bf16.msra.mxu0 %v343
    %353 = vmatpush.bf16.msra.mxu0 %v342
    %354 = vmatmul.bf16.gmra.mxu0 %v276
    %v355 = vpop.f32.mrf.mxu0
    %v356 = vadd.f32 %v332, %v355
    %v357 = vpop.f32.mrf.mxu0
    %v358 = vadd.f32 %v332, %v357
    %359 = vdwg.mxu0
    %v360 = vpack.c.bf16 %v288, %v288
    %v361 = vpack.c.bf16 %v290, %v290
    %v362 = vpack.c.bf16 %v322, %v322
    %v363 = vpack.c.bf16 %v324, %v324
    %v364 = vpack.c.bf16 %v356, %v356
    %v365 = vpack.c.bf16 %v358, %v358
    %vm366 = vcmask 64512
    %v368 = vsel %vm366, %v360, 0
    %v371 = vsel %vm366, %v362, 0
    %373 = vmatpush.bf16.xpose.msra.mxu0 0
    %374 = vmatpush.bf16.xpose.msra.mxu0 0
    %375 = vmatpush.bf16.xpose.msra.mxu0 0
    %376 = vmatpush.bf16.xpose.msra.mxu0 0
    %377 = vmatpush.bf16.xpose.msra.mxu0 0
    %378 = vmatpush.bf16.xpose.msra.mxu0 0
    %379 = vmatpush.bf16.xpose.msra.mxu0 0
    %380 = vmatpush.bf16.xpose.msra.mxu0 %v371
    %381 = vmatmul.bf16.gmra.mxu0 %v368
    %v382 = vpop.f32.mrf.mxu0
    %v383 = vadd.f32 %v250, %v382
    %v384 = vpop.f32.mrf.mxu0
    %385 = vdwg.mxu0
    %v387 = vsel %vm366, %v361, 0
    %v390 = vsel %vm366, %v363, 0
    %392 = vmatpush.bf16.xpose.msra.mxu0 0
    %393 = vmatpush.bf16.xpose.msra.mxu0 0
    %394 = vmatpush.bf16.xpose.msra.mxu0 0
    %395 = vmatpush.bf16.xpose.msra.mxu0 0
    %396 = vmatpush.bf16.xpose.msra.mxu0 0
    %397 = vmatpush.bf16.xpose.msra.mxu0 0
    %398 = vmatpush.bf16.xpose.msra.mxu0 0
    %399 = vmatpush.bf16.xpose.msra.mxu0 %v390
    %400 = vmatmul.bf16.gmra.mxu0 %v387
    %v401 = vpop.f32.mrf.mxu0
    %v402 = vadd.f32 %v251, %v401
    %v403 = vpop.f32.mrf.mxu0
    %404 = vdwg.mxu0
    %v405 = vsel %vm366, %v383, -inf
    %406 = vmax.xlane.f32.xlu0 %v405
    %v407 = vpop.xlane.xlu0 %406
    %v408 = vsel %vm366, %v402, -inf
    %409 = vmax.xlane.f32.xlu0 %v408
    %v410 = vpop.xlane.xlu0 %409
    %v411 = vsub.f32 %v383, %v407
    %v412 = vsub.f32 %v402, %v410
    %v413 = vmul.f32 %v411, 1.442695
    %v414 = vpow.pop %v413
    %v415 = vmul.f32 %v412, 1.442695
    %v416 = vpow.pop %v415
    %v417 = vsel %vm366, %v414, 0.0
    %418 = vadd.xlane.f32.xlu0 %v417
    %v419 = vpop.xlane.xlu0 %418
    %v420 = vsel %vm366, %v416, 0.0
    %421 = vadd.xlane.f32.xlu0 %v420
    %v422 = vpop.xlane.xlu0 %421
    %v423 = vrcp.pop %v419
    %v424 = vmul.f32 %v419, %v423
    %v425 = vsub.f32 1.0, %v424
    %v426 = vmul.f32 %v423, %v425
    %v427 = vadd.f32 %v423, %v426
    %vm428 = vweird.f32 %v419
    %vm429 = vweird.f32 %v423
    %vm430 = vmor %vm428, %vm429
    %v431 = vsel %vm430, %v423, %v427
    %v432 = vand.u32 2147483647, %v419
    %vm433 = vcmp.eq.f32.partialorder %v432, 8.507059e+37
    %v434 = vand.u32 %v419, 2147483648
    %v435 = vor.u32 1.1754944e-38, %v434
    %v436 = vsel %vm433, %v435, %v431
    %v437 = vmul.f32 %v414, %v436
    %v438 = vrcp.pop %v422
    %v439 = vmul.f32 %v422, %v438
    %v440 = vsub.f32 1.0, %v439
    %v441 = vmul.f32 %v438, %v440
    %v442 = vadd.f32 %v438, %v441
    %vm443 = vweird.f32 %v422
    %vm444 = vweird.f32 %v438
    %vm445 = vmor %vm443, %vm444
    %v446 = vsel %vm445, %v438, %v442
    %v447 = vand.u32 2147483647, %v422
    %vm448 = vcmp.eq.f32.partialorder %v447, 8.507059e+37
    %v449 = vand.u32 %v422, 2147483648
    %v450 = vor.u32 1.1754944e-38, %v449
    %v451 = vsel %vm448, %v450, %v446
    %v452 = vmul.f32 %v416, %v451
    %v453 = vpack.c.bf16 %v437, %v437
    %v454 = vpack.c.bf16 %v452, %v452
    %v456 = vsel %vm366, %v453, 0
    %vm458 = vcmask 1043456
    %v460 = vsel %vm458, %v364, 0
    %462 = vmatpush.bf16.msra.mxu0 0
    %463 = vmatpush.bf16.msra.mxu0 0
    %464 = vmatpush.bf16.msra.mxu0 0
    %465 = vmatpush.bf16.msra.mxu0 0
    %466 = vmatpush.bf16.msra.mxu0 0
    %467 = vmatpush.bf16.msra.mxu0 0
    %468 = vmatpush.bf16.msra.mxu0 0
    %469 = vmatpush.bf16.msra.mxu0 %v460
    %470 = vmatmul.bf16.gmra.mxu0 %v456
    %v471 = vpop.f32.mrf.mxu0
    %v472 = vadd.f32 0.0, %v471
    %v473 = vpop.f32.mrf.mxu0
    %474 = vdwg.mxu0
    %v476 = vsel %vm366, %v454, 0
    %v479 = vsel %vm458, %v365, 0
    %481 = vmatpush.bf16.msra.mxu0 0
    %482 = vmatpush.bf16.msra.mxu0 0
    %483 = vmatpush.bf16.msra.mxu0 0
    %484 = vmatpush.bf16.msra.mxu0 0
    %485 = vmatpush.bf16.msra.mxu0 0
    %486 = vmatpush.bf16.msra.mxu0 0
    %487 = vmatpush.bf16.msra.mxu0 0
    %488 = vmatpush.bf16.msra.mxu0 %v479
    %489 = vmatmul.bf16.gmra.mxu0 %v476
    %v490 = vpop.f32.mrf.mxu0
    %v491 = vadd.f32 0.0, %v490
    %v492 = vpop.f32.mrf.mxu0
    %493 = vdwg.mxu0
    %v494 = vpack.c.bf16 %v491, %v472
    %v495 = vld [vmem:[%s13] sm:$0xf]
    %s496 = scalar_lea.vmem %s7, 16
    %v497 = vld [vmem:[%s496] sm:$0xf]
    %v498 = vld [vmem:[%s496 + $0x4] sm:$0xf]
    %v499 = vld [vmem:[%s496 + $0x8] sm:$0xf]
    %v500 = vld [vmem:[%s496 + $0xc] sm:$0xf]
    %s501 = scalar_lea.vmem %s10, 1
    %v502 = vld [vmem:[%s501] sm:$0x1]
    %v504 = vperm.slane %v502, 0
    %v510 = vunpack.c.l.b16 %v497
    %v511 = vunpack.c.l.b16 %v498
    %v512 = vunpack.c.l.b16 %v499
    %v513 = vunpack.c.l.b16 %v500
    %v514 = vpack.c.b16 %v511, %v510
    %v515 = vpack.c.b16 %v513, %v512
    %518 = vmatpush.bf16.msra.mxu0 0
    %519 = vmatpush.bf16.msra.mxu0 0
    %520 = vmatpush.bf16.msra.mxu0 0
    %521 = vmatpush.bf16.msra.mxu0 0
    %522 = vmatpush.bf16.msra.mxu0 0
    %523 = vmatpush.bf16.msra.mxu0 0
    %524 = vmatpush.bf16.msra.mxu0 %v515
    %525 = vmatpush.bf16.msra.mxu0 %v514
    %526 = vmatmul.bf16.gmra.mxu0 %v276
    %v527 = vpop.f32.mrf.mxu0
    %v528 = vadd.f32 %v504, %v527
    %v529 = vpop.f32.mrf.mxu0
    %v530 = vadd.f32 %v504, %v529
    %531 = vdwg.mxu0
    %s532 = scalar_lea.vmem %s8, 16
    %v533 = vld [vmem:[%s532] sm:$0xf]
    %v534 = vld [vmem:[%s532 + $0x4] sm:$0xf]
    %v535 = vld [vmem:[%s532 + $0x8] sm:$0xf]
    %v536 = vld [vmem:[%s532 + $0xc] sm:$0xf]
    %s537 = scalar_lea.vmem %s11, 1
    %v538 = vld [vmem:[%s537] sm:$0x1]
    %v540 = vperm.slane %v538, 0
    %v546 = vunpack.c.l.b16 %v533
    %v547 = vunpack.c.l.b16 %v534
    %v548 = vunpack.c.l.b16 %v535
    %v549 = vunpack.c.l.b16 %v536
    %v550 = vpack.c.b16 %v547, %v546
    %v551 = vpack.c.b16 %v549, %v548
    %554 = vmatpush.bf16.msra.mxu0 0
    %555 = vmatpush.bf16.msra.mxu0 0
    %556 = vmatpush.bf16.msra.mxu0 0
    %557 = vmatpush.bf16.msra.mxu0 0
    %558 = vmatpush.bf16.msra.mxu0 0
    %559 = vmatpush.bf16.msra.mxu0 0
    %560 = vmatpush.bf16.msra.mxu0 %v551
    %561 = vmatpush.bf16.msra.mxu0 %v550
    %562 = vmatmul.bf16.gmra.mxu0 %v276
    %v563 = vpop.f32.mrf.mxu0
    %v564 = vadd.f32 %v540, %v563
    %v565 = vpop.f32.mrf.mxu0
    %v566 = vadd.f32 %v540, %v565
    %567 = vdwg.mxu0
    %s568 = scalar_lea.vmem %s9, 16
    %v569 = vld [vmem:[%s568] sm:$0xf]
    %v570 = vld [vmem:[%s568 + $0x4] sm:$0xf]
    %v571 = vld [vmem:[%s568 + $0x8] sm:$0xf]
    %v572 = vld [vmem:[%s568 + $0xc] sm:$0xf]
    %s573 = scalar_lea.vmem %s12, 1
    %v574 = vld [vmem:[%s573] sm:$0x1]
    %v576 = vperm.slane %v574, 0
    %v582 = vunpack.c.l.b16 %v569
    %v583 = vunpack.c.l.b16 %v570
    %v584 = vunpack.c.l.b16 %v571
    %v585 = vunpack.c.l.b16 %v572
    %v586 = vpack.c.b16 %v583, %v582
    %v587 = vpack.c.b16 %v585, %v584
    %590 = vmatpush.bf16.msra.mxu0 0
    %591 = vmatpush.bf16.msra.mxu0 0
    %592 = vmatpush.bf16.msra.mxu0 0
    %593 = vmatpush.bf16.msra.mxu0 0
    %594 = vmatpush.bf16.msra.mxu0 0
    %595 = vmatpush.bf16.msra.mxu0 0
    %596 = vmatpush.bf16.msra.mxu0 %v587
    %597 = vmatpush.bf16.msra.mxu0 %v586
    %598 = vmatmul.bf16.gmra.mxu0 %v276
    %v599 = vpop.f32.mrf.mxu0
    %v600 = vadd.f32 %v576, %v599
    %v601 = vpop.f32.mrf.mxu0
    %v602 = vadd.f32 %v576, %v601
    %603 = vdwg.mxu0
    %v604 = vpack.c.bf16 %v528, %v528
    %v605 = vpack.c.bf16 %v530, %v530
    %v606 = vpack.c.bf16 %v564, %v564
    %v607 = vpack.c.bf16 %v566, %v566
    %v608 = vpack.c.bf16 %v600, %v600
    %v609 = vpack.c.bf16 %v602, %v602
    %v611 = vsel %vm366, %v604, 0
    %v614 = vsel %vm366, %v606, 0
    %616 = vmatpush.bf16.xpose.msra.mxu0 0
    %617 = vmatpush.bf16.xpose.msra.mxu0 0
    %618 = vmatpush.bf16.xpose.msra.mxu0 0
    %619 = vmatpush.bf16.xpose.msra.mxu0 0
    %620 = vmatpush.bf16.xpose.msra.mxu0 0
    %621 = vmatpush.bf16.xpose.msra.mxu0 0
    %622 = vmatpush.bf16.xpose.msra.mxu0 0
    %623 = vmatpush.bf16.xpose.msra.mxu0 %v614
    %624 = vmatmul.bf16.gmra.mxu0 %v611
    %v625 = vpop.f32.mrf.mxu0
    %v626 = vadd.f32 %v250, %v625
    %v627 = vpop.f32.mrf.mxu0
    %628 = vdwg.mxu0
    %v630 = vsel %vm366, %v605, 0
    %v633 = vsel %vm366, %v607, 0
    %635 = vmatpush.bf16.xpose.msra.mxu0 0
    %636 = vmatpush.bf16.xpose.msra.mxu0 0
    %637 = vmatpush.bf16.xpose.msra.mxu0 0
    %638 = vmatpush.bf16.xpose.msra.mxu0 0
    %639 = vmatpush.bf16.xpose.msra.mxu0 0
    %640 = vmatpush.bf16.xpose.msra.mxu0 0
    %641 = vmatpush.bf16.xpose.msra.mxu0 0
    %642 = vmatpush.bf16.xpose.msra.mxu0 %v633
    %643 = vmatmul.bf16.gmra.mxu0 %v630
    %v644 = vpop.f32.mrf.mxu0
    %v645 = vadd.f32 %v251, %v644
    %v646 = vpop.f32.mrf.mxu0
    %647 = vdwg.mxu0
    %v648 = vsel %vm366, %v626, -inf
    %649 = vmax.xlane.f32.xlu0 %v648
    %v650 = vpop.xlane.xlu0 %649
    %v651 = vsel %vm366, %v645, -inf
    %652 = vmax.xlane.f32.xlu0 %v651
    %v653 = vpop.xlane.xlu0 %652
    %v654 = vsub.f32 %v626, %v650
    %v655 = vsub.f32 %v645, %v653
    %v656 = vmul.f32 %v654, 1.442695
    %v657 = vpow.pop %v656
    %v658 = vmul.f32 %v655, 1.442695
    %v659 = vpow.pop %v658
    %v660 = vsel %vm366, %v657, 0.0
    %661 = vadd.xlane.f32.xlu0 %v660
    %v662 = vpop.xlane.xlu0 %661
    %v663 = vsel %vm366, %v659, 0.0
    %664 = vadd.xlane.f32.xlu0 %v663
    %v665 = vpop.xlane.xlu0 %664
    %v666 = vrcp.pop %v662
    %v667 = vmul.f32 %v662, %v666
    %v668 = vsub.f32 1.0, %v667
    %v669 = vmul.f32 %v666, %v668
    %v670 = vadd.f32 %v666, %v669
    %vm671 = vweird.f32 %v662
    %vm672 = vweird.f32 %v666
    %vm673 = vmor %vm671, %vm672
    %v674 = vsel %vm673, %v666, %v670
    %v675 = vand.u32 2147483647, %v662
    %vm676 = vcmp.eq.f32.partialorder %v675, 8.507059e+37
    %v677 = vand.u32 %v662, 2147483648
    %v678 = vor.u32 1.1754944e-38, %v677
    %v679 = vsel %vm676, %v678, %v674
    %v680 = vmul.f32 %v657, %v679
    %v681 = vrcp.pop %v665
    %v682 = vmul.f32 %v665, %v681
    %v683 = vsub.f32 1.0, %v682
    %v684 = vmul.f32 %v681, %v683
    %v685 = vadd.f32 %v681, %v684
    %vm686 = vweird.f32 %v665
    %vm687 = vweird.f32 %v681
    %vm688 = vmor %vm686, %vm687
    %v689 = vsel %vm688, %v681, %v685
    %v690 = vand.u32 2147483647, %v665
    %vm691 = vcmp.eq.f32.partialorder %v690, 8.507059e+37
    %v692 = vand.u32 %v665, 2147483648
    %v693 = vor.u32 1.1754944e-38, %v692
    %v694 = vsel %vm691, %v693, %v689
    %v695 = vmul.f32 %v659, %v694
    %v696 = vpack.c.bf16 %v680, %v680
    %v697 = vpack.c.bf16 %v695, %v695
    %v699 = vsel %vm366, %v696, 0
    %v702 = vsel %vm458, %v608, 0
    %704 = vmatpush.bf16.msra.mxu0 0
    %705 = vmatpush.bf16.msra.mxu0 0
    %706 = vmatpush.bf16.msra.mxu0 0
    %707 = vmatpush.bf16.msra.mxu0 0
    %708 = vmatpush.bf16.msra.mxu0 0
    %709 = vmatpush.bf16.msra.mxu0 0
    %710 = vmatpush.bf16.msra.mxu0 0
    %711 = vmatpush.bf16.msra.mxu0 %v702
    %712 = vmatmul.bf16.gmra.mxu0 %v699
    %v713 = vpop.f32.mrf.mxu0
    %v714 = vadd.f32 0.0, %v713
    %v715 = vpop.f32.mrf.mxu0
    %716 = vdwg.mxu0
    %v718 = vsel %vm366, %v697, 0
    %v721 = vsel %vm458, %v609, 0
    %723 = vmatpush.bf16.msra.mxu0 0
    %724 = vmatpush.bf16.msra.mxu0 0
    %725 = vmatpush.bf16.msra.mxu0 0
    %726 = vmatpush.bf16.msra.mxu0 0
    %727 = vmatpush.bf16.msra.mxu0 0
    %728 = vmatpush.bf16.msra.mxu0 0
    %729 = vmatpush.bf16.msra.mxu0 0
    %730 = vmatpush.bf16.msra.mxu0 %v721
    %731 = vmatmul.bf16.gmra.mxu0 %v718
    %v732 = vpop.f32.mrf.mxu0
    %v733 = vadd.f32 0.0, %v732
    %v734 = vpop.f32.mrf.mxu0
    %735 = vdwg.mxu0
    %v736 = vpack.c.bf16 %v733, %v714
    %s737 = scalar_lea.vmem %s13, 4
    %v738 = vld [vmem:[%s737] sm:$0xf]
    %v740 = vsel %vm366, %v736, 0
    %v743 = vsel %vm458, %v738, 0
    %745 = vmatpush.bf16.msra.mxu0 0
    %746 = vmatpush.bf16.msra.mxu0 0
    %747 = vmatpush.bf16.msra.mxu0 0
    %748 = vmatpush.bf16.msra.mxu0 0
    %749 = vmatpush.bf16.msra.mxu0 0
    %750 = vmatpush.bf16.msra.mxu0 0
    %751 = vmatpush.bf16.msra.mxu0 0
    %752 = vmatpush.bf16.msra.mxu0 %v743
    %753 = vmatmul.bf16.gmra.mxu0 %v740
    %v754 = vpop.f32.mrf.mxu0
    %v755 = vadd.f32 0.0, %v754
    %v756 = vpop.f32.mrf.mxu0
    %v757 = vadd.f32 0.0, %v756
    %758 = vdwg.mxu0
    %v760 = vsel %vm366, %v494, 0
    %v763 = vsel %vm458, %v495, 0
    %765 = vmatpush.bf16.msra.mxu0 0
    %766 = vmatpush.bf16.msra.mxu0 0
    %767 = vmatpush.bf16.msra.mxu0 0
    %768 = vmatpush.bf16.msra.mxu0 0
    %769 = vmatpush.bf16.msra.mxu0 0
    %770 = vmatpush.bf16.msra.mxu0 0
    %771 = vmatpush.bf16.msra.mxu0 0
    %772 = vmatpush.bf16.msra.mxu0 %v763
    %773 = vmatmul.bf16.gmra.mxu0 %v760
    %v774 = vpop.f32.mrf.mxu0
    %v775 = vadd.f32 %v755, %v774
    %v776 = vpop.f32.mrf.mxu0
    %v777 = vadd.f32 %v757, %v776
    %778 = vdwg.mxu0
    %s779 = scalar_lea.vmem %s7, 32
    %v780 = vld [vmem:[%s779] sm:$0xf]
    %v781 = vld [vmem:[%s779 + $0x4] sm:$0xf]
    %v782 = vld [vmem:[%s779 + $0x8] sm:$0xf]
    %v783 = vld [vmem:[%s779 + $0xc] sm:$0xf]
    %s784 = scalar_lea.vmem %s10, 2
    %v785 = vld [vmem:[%s784] sm:$0x1]
    %v787 = vperm.slane %v785, 0
    %v793 = vunpack.c.l.b16 %v780
    %v794 = vunpack.c.l.b16 %v781
    %v795 = vunpack.c.l.b16 %v782
    %v796 = vunpack.c.l.b16 %v783
    %v797 = vpack.c.b16 %v794, %v793
    %v798 = vpack.c.b16 %v796, %v795
    %801 = vmatpush.bf16.msra.mxu0 0
    %802 = vmatpush.bf16.msra.mxu0 0
    %803 = vmatpush.bf16.msra.mxu0 0
    %804 = vmatpush.bf16.msra.mxu0 0
    %805 = vmatpush.bf16.msra.mxu0 0
    %806 = vmatpush.bf16.msra.mxu0 0
    %807 = vmatpush.bf16.msra.mxu0 %v798
    %808 = vmatpush.bf16.msra.mxu0 %v797
    %809 = vmatmul.bf16.gmra.mxu0 %v276
    %v810 = vpop.f32.mrf.mxu0
    %v811 = vadd.f32 %v787, %v810
    %v812 = vpop.f32.mrf.mxu0
    %v813 = vadd.f32 %v787, %v812
    %814 = vdwg.mxu0
    %s815 = scalar_lea.vmem %s8, 32
    %v816 = vld [vmem:[%s815] sm:$0xf]
    %v817 = vld [vmem:[%s815 + $0x4] sm:$0xf]
    %v818 = vld [vmem:[%s815 + $0x8] sm:$0xf]
    %v819 = vld [vmem:[%s815 + $0xc] sm:$0xf]
    %s820 = scalar_lea.vmem %s11, 2
    %v821 = vld [vmem:[%s820] sm:$0x1]
    %v823 = vperm.slane %v821, 0
    %v829 = vunpack.c.l.b16 %v816
    %v830 = vunpack.c.l.b16 %v817
    %v831 = vunpack.c.l.b16 %v818
    %v832 = vunpack.c.l.b16 %v819
    %v833 = vpack.c.b16 %v830, %v829
    %v834 = vpack.c.b16 %v832, %v831
    %837 = vmatpush.bf16.msra.mxu0 0
    %838 = vmatpush.bf16.msra.mxu0 0
    %839 = vmatpush.bf16.msra.mxu0 0
    %840 = vmatpush.bf16.msra.mxu0 0
    %841 = vmatpush.bf16.msra.mxu0 0
    %842 = vmatpush.bf16.msra.mxu0 0
    %843 = vmatpush.bf16.msra.mxu0 %v834
    %844 = vmatpush.bf16.msra.mxu0 %v833
    %845 = vmatmul.bf16.gmra.mxu0 %v276
    %v846 = vpop.f32.mrf.mxu0
    %v847 = vadd.f32 %v823, %v846
    %v848 = vpop.f32.mrf.mxu0
    %v849 = vadd.f32 %v823, %v848
    %850 = vdwg.mxu0
    %s851 = scalar_lea.vmem %s9, 32
    %v852 = vld [vmem:[%s851] sm:$0xf]
    %v853 = vld [vmem:[%s851 + $0x4] sm:$0xf]
    %v854 = vld [vmem:[%s851 + $0x8] sm:$0xf]
    %v855 = vld [vmem:[%s851 + $0xc] sm:$0xf]
    %s856 = scalar_lea.vmem %s12, 2
    %v857 = vld [vmem:[%s856] sm:$0x1]
    %v859 = vperm.slane %v857, 0
    %v865 = vunpack.c.l.b16 %v852
    %v866 = vunpack.c.l.b16 %v853
    %v867 = vunpack.c.l.b16 %v854
    %v868 = vunpack.c.l.b16 %v855
    %v869 = vpack.c.b16 %v866, %v865
    %v870 = vpack.c.b16 %v868, %v867
    %873 = vmatpush.bf16.msra.mxu0 0
    %874 = vmatpush.bf16.msra.mxu0 0
    %875 = vmatpush.bf16.msra.mxu0 0
    %876 = vmatpush.bf16.msra.mxu0 0
    %877 = vmatpush.bf16.msra.mxu0 0
    %878 = vmatpush.bf16.msra.mxu0 0
    %879 = vmatpush.bf16.msra.mxu0 %v870
    %880 = vmatpush.bf16.msra.mxu0 %v869
    %881 = vmatmul.bf16.gmra.mxu0 %v276
    %v882 = vpop.f32.mrf.mxu0
    %v883 = vadd.f32 %v859, %v882
    %v884 = vpop.f32.mrf.mxu0
    %v885 = vadd.f32 %v859, %v884
    %886 = vdwg.mxu0
    %v887 = vpack.c.bf16 %v811, %v811
    %v888 = vpack.c.bf16 %v813, %v813
    %v889 = vpack.c.bf16 %v847, %v847
    %v890 = vpack.c.bf16 %v849, %v849
    %v891 = vpack.c.bf16 %v883, %v883
    %v892 = vpack.c.bf16 %v885, %v885
    %v894 = vsel %vm366, %v887, 0
    %v897 = vsel %vm366, %v889, 0
    %899 = vmatpush.bf16.xpose.msra.mxu0 0
    %900 = vmatpush.bf16.xpose.msra.mxu0 0
    %901 = vmatpush.bf16.xpose.msra.mxu0 0
    %902 = vmatpush.bf16.xpose.msra.mxu0 0
    %903 = vmatpush.bf16.xpose.msra.mxu0 0
    %904 = vmatpush.bf16.xpose.msra.mxu0 0
    %905 = vmatpush.bf16.xpose.msra.mxu0 0
    %906 = vmatpush.bf16.xpose.msra.mxu0 %v897
    %907 = vmatmul.bf16.gmra.mxu0 %v894
    %v908 = vpop.f32.mrf.mxu0
    %v909 = vadd.f32 %v250, %v908
    %v910 = vpop.f32.mrf.mxu0
    %911 = vdwg.mxu0
    %v913 = vsel %vm366, %v888, 0
    %v916 = vsel %vm366, %v890, 0
    %918 = vmatpush.bf16.xpose.msra.mxu0 0
    %919 = vmatpush.bf16.xpose.msra.mxu0 0
    %920 = vmatpush.bf16.xpose.msra.mxu0 0
    %921 = vmatpush.bf16.xpose.msra.mxu0 0
    %922 = vmatpush.bf16.xpose.msra.mxu0 0
    %923 = vmatpush.bf16.xpose.msra.mxu0 0
    %924 = vmatpush.bf16.xpose.msra.mxu0 0
    %925 = vmatpush.bf16.xpose.msra.mxu0 %v916
    %926 = vmatmul.bf16.gmra.mxu0 %v913
    %v927 = vpop.f32.mrf.mxu0
    %v928 = vadd.f32 %v251, %v927
    %v929 = vpop.f32.mrf.mxu0
    %930 = vdwg.mxu0
    %v931 = vsel %vm366, %v909, -inf
    %932 = vmax.xlane.f32.xlu0 %v931
    %v933 = vpop.xlane.xlu0 %932
    %v934 = vsel %vm366, %v928, -inf
    %935 = vmax.xlane.f32.xlu0 %v934
    %v936 = vpop.xlane.xlu0 %935
    %v937 = vsub.f32 %v909, %v933
    %v938 = vsub.f32 %v928, %v936
    %v939 = vmul.f32 %v937, 1.442695
    %v940 = vpow.pop %v939
    %v941 = vmul.f32 %v938, 1.442695
    %v942 = vpow.pop %v941
    %v943 = vsel %vm366, %v940, 0.0
    %944 = vadd.xlane.f32.xlu0 %v943
    %v945 = vpop.xlane.xlu0 %944
    %v946 = vsel %vm366, %v942, 0.0
    %947 = vadd.xlane.f32.xlu0 %v946
    %v948 = vpop.xlane.xlu0 %947
    %v949 = vrcp.pop %v945
    %v950 = vmul.f32 %v945, %v949
    %v951 = vsub.f32 1.0, %v950
    %v952 = vmul.f32 %v949, %v951
    %v953 = vadd.f32 %v949, %v952
    %vm954 = vweird.f32 %v945
    %vm955 = vweird.f32 %v949
    %vm956 = vmor %vm954, %vm955
    %v957 = vsel %vm956, %v949, %v953
    %v958 = vand.u32 2147483647, %v945
    %vm959 = vcmp.eq.f32.partialorder %v958, 8.507059e+37
    %v960 = vand.u32 %v945, 2147483648
    %v961 = vor.u32 1.1754944e-38, %v960
    %v962 = vsel %vm959, %v961, %v957
    %v963 = vmul.f32 %v940, %v962
    %v964 = vrcp.pop %v948
    %v965 = vmul.f32 %v948, %v964
    %v966 = vsub.f32 1.0, %v965
    %v967 = vmul.f32 %v964, %v966
    %v968 = vadd.f32 %v964, %v967
    %vm969 = vweird.f32 %v948
    %vm970 = vweird.f32 %v964
    %vm971 = vmor %vm969, %vm970
    %v972 = vsel %vm971, %v964, %v968
    %v973 = vand.u32 2147483647, %v948
    %vm974 = vcmp.eq.f32.partialorder %v973, 8.507059e+37
    %v975 = vand.u32 %v948, 2147483648
    %v976 = vor.u32 1.1754944e-38, %v975
    %v977 = vsel %vm974, %v976, %v972
    %v978 = vmul.f32 %v942, %v977
    %v979 = vpack.c.bf16 %v963, %v963
    %v980 = vpack.c.bf16 %v978, %v978
    %v982 = vsel %vm366, %v979, 0
    %v985 = vsel %vm458, %v891, 0
    %987 = vmatpush.bf16.msra.mxu0 0
    %988 = vmatpush.bf16.msra.mxu0 0
    %989 = vmatpush.bf16.msra.mxu0 0
    %990 = vmatpush.bf16.msra.mxu0 0
    %991 = vmatpush.bf16.msra.mxu0 0
    %992 = vmatpush.bf16.msra.mxu0 0
    %993 = vmatpush.bf16.msra.mxu0 0
    %994 = vmatpush.bf16.msra.mxu0 %v985
    %995 = vmatmul.bf16.gmra.mxu0 %v982
    %v996 = vpop.f32.mrf.mxu0
    %v997 = vadd.f32 0.0, %v996
    %v998 = vpop.f32.mrf.mxu0
    %999 = vdwg.mxu0
    %v1001 = vsel %vm366, %v980, 0
    %v1004 = vsel %vm458, %v892, 0
    %1006 = vmatpush.bf16.msra.mxu0 0
    %1007 = vmatpush.bf16.msra.mxu0 0
    %1008 = vmatpush.bf16.msra.mxu0 0
    %1009 = vmatpush.bf16.msra.mxu0 0
    %1010 = vmatpush.bf16.msra.mxu0 0
    %1011 = vmatpush.bf16.msra.mxu0 0
    %1012 = vmatpush.bf16.msra.mxu0 0
    %1013 = vmatpush.bf16.msra.mxu0 %v1004
    %1014 = vmatmul.bf16.gmra.mxu0 %v1001
    %v1015 = vpop.f32.mrf.mxu0
    %v1016 = vadd.f32 0.0, %v1015
    %v1017 = vpop.f32.mrf.mxu0
    %1018 = vdwg.mxu0
    %v1019 = vpack.c.bf16 %v1016, %v997
    %s1020 = scalar_lea.vmem %s13, 8
    %v1021 = vld [vmem:[%s1020] sm:$0xf]
    %v1023 = vsel %vm366, %v1019, 0
    %v1026 = vsel %vm458, %v1021, 0
    %1028 = vmatpush.bf16.msra.mxu0 0
    %1029 = vmatpush.bf16.msra.mxu0 0
    %1030 = vmatpush.bf16.msra.mxu0 0
    %1031 = vmatpush.bf16.msra.mxu0 0
    %1032 = vmatpush.bf16.msra.mxu0 0
    %1033 = vmatpush.bf16.msra.mxu0 0
    %1034 = vmatpush.bf16.msra.mxu0 0
    %1035 = vmatpush.bf16.msra.mxu0 %v1026
    %1036 = vmatmul.bf16.gmra.mxu0 %v1023
    %v1037 = vpop.f32.mrf.mxu0
    %v1038 = vadd.f32 0.0, %v1037
    %v1039 = vpop.f32.mrf.mxu0
    %v1040 = vadd.f32 0.0, %v1039
    %1041 = vdwg.mxu0
    %v1042 = vadd.f32 %v775, %v1038
    %v1043 = vadd.f32 %v777, %v1040
    %s1044 = scalar_lea.vmem %s7, 48
    %v1045 = vld [vmem:[%s1044] sm:$0xf]
    %v1046 = vld [vmem:[%s1044 + $0x4] sm:$0xf]
    %v1047 = vld [vmem:[%s1044 + $0x8] sm:$0xf]
    %v1048 = vld [vmem:[%s1044 + $0xc] sm:$0xf]
    %s1049 = scalar_lea.vmem %s10, 3
    %v1050 = vld [vmem:[%s1049] sm:$0x1]
    %v1052 = vperm.slane %v1050, 0
    %v1058 = vunpack.c.l.b16 %v1045
    %v1059 = vunpack.c.l.b16 %v1046
    %v1060 = vunpack.c.l.b16 %v1047
    %v1061 = vunpack.c.l.b16 %v1048
    %v1062 = vpack.c.b16 %v1059, %v1058
    %v1063 = vpack.c.b16 %v1061, %v1060
    %1066 = vmatpush.bf16.msra.mxu0 0
    %1067 = vmatpush.bf16.msra.mxu0 0
    %1068 = vmatpush.bf16.msra.mxu0 0
    %1069 = vmatpush.bf16.msra.mxu0 0
    %1070 = vmatpush.bf16.msra.mxu0 0
    %1071 = vmatpush.bf16.msra.mxu0 0
    %1072 = vmatpush.bf16.msra.mxu0 %v1063
    %1073 = vmatpush.bf16.msra.mxu0 %v1062
    %1074 = vmatmul.bf16.gmra.mxu0 %v276
    %v1075 = vpop.f32.mrf.mxu0
    %v1076 = vadd.f32 %v1052, %v1075
    %v1077 = vpop.f32.mrf.mxu0
    %v1078 = vadd.f32 %v1052, %v1077
    %1079 = vdwg.mxu0
    %s1080 = scalar_lea.vmem %s8, 48
    %v1081 = vld [vmem:[%s1080] sm:$0xf]
    %v1082 = vld [vmem:[%s1080 + $0x4] sm:$0xf]
    %v1083 = vld [vmem:[%s1080 + $0x8] sm:$0xf]
    %v1084 = vld [vmem:[%s1080 + $0xc] sm:$0xf]
    %s1085 = scalar_lea.vmem %s11, 3
    %v1086 = vld [vmem:[%s1085] sm:$0x1]
    %v1088 = vperm.slane %v1086, 0
    %v1094 = vunpack.c.l.b16 %v1081
    %v1095 = vunpack.c.l.b16 %v1082
    %v1096 = vunpack.c.l.b16 %v1083
    %v1097 = vunpack.c.l.b16 %v1084
    %v1098 = vpack.c.b16 %v1095, %v1094
    %v1099 = vpack.c.b16 %v1097, %v1096
    %1102 = vmatpush.bf16.msra.mxu0 0
    %1103 = vmatpush.bf16.msra.mxu0 0
    %1104 = vmatpush.bf16.msra.mxu0 0
    %1105 = vmatpush.bf16.msra.mxu0 0
    %1106 = vmatpush.bf16.msra.mxu0 0
    %1107 = vmatpush.bf16.msra.mxu0 0
    %1108 = vmatpush.bf16.msra.mxu0 %v1099
    %1109 = vmatpush.bf16.msra.mxu0 %v1098
    %1110 = vmatmul.bf16.gmra.mxu0 %v276
    %v1111 = vpop.f32.mrf.mxu0
    %v1112 = vadd.f32 %v1088, %v1111
    %v1113 = vpop.f32.mrf.mxu0
    %v1114 = vadd.f32 %v1088, %v1113
    %1115 = vdwg.mxu0
    %s1116 = scalar_lea.vmem %s9, 48
    %v1117 = vld [vmem:[%s1116] sm:$0xf]
    %v1118 = vld [vmem:[%s1116 + $0x4] sm:$0xf]
    %v1119 = vld [vmem:[%s1116 + $0x8] sm:$0xf]
    %v1120 = vld [vmem:[%s1116 + $0xc] sm:$0xf]
    %s1121 = scalar_lea.vmem %s12, 3
    %v1122 = vld [vmem:[%s1121] sm:$0x1]
    %v1124 = vperm.slane %v1122, 0
    %v1130 = vunpack.c.l.b16 %v1117
    %v1131 = vunpack.c.l.b16 %v1118
    %v1132 = vunpack.c.l.b16 %v1119
    %v1133 = vunpack.c.l.b16 %v1120
    %v1134 = vpack.c.b16 %v1131, %v1130
    %v1135 = vpack.c.b16 %v1133, %v1132
    %1138 = vmatpush.bf16.msra.mxu0 0
    %1139 = vmatpush.bf16.msra.mxu0 0
    %1140 = vmatpush.bf16.msra.mxu0 0
    %1141 = vmatpush.bf16.msra.mxu0 0
    %1142 = vmatpush.bf16.msra.mxu0 0
    %1143 = vmatpush.bf16.msra.mxu0 0
    %1144 = vmatpush.bf16.msra.mxu0 %v1135
    %1145 = vmatpush.bf16.msra.mxu0 %v1134
    %1146 = vmatmul.bf16.gmra.mxu0 %v276
    %v1147 = vpop.f32.mrf.mxu0
    %v1148 = vadd.f32 %v1124, %v1147
    %v1149 = vpop.f32.mrf.mxu0
    %v1150 = vadd.f32 %v1124, %v1149
    %1151 = vdwg.mxu0
    %v1152 = vpack.c.bf16 %v1076, %v1076
    %v1153 = vpack.c.bf16 %v1078, %v1078
    %v1154 = vpack.c.bf16 %v1112, %v1112
    %v1155 = vpack.c.bf16 %v1114, %v1114
    %v1156 = vpack.c.bf16 %v1148, %v1148
    %v1157 = vpack.c.bf16 %v1150, %v1150
    %v1159 = vsel %vm366, %v1152, 0
    %v1162 = vsel %vm366, %v1154, 0
    %1164 = vmatpush.bf16.xpose.msra.mxu0 0
    %1165 = vmatpush.bf16.xpose.msra.mxu0 0
    %1166 = vmatpush.bf16.xpose.msra.mxu0 0
    %1167 = vmatpush.bf16.xpose.msra.mxu0 0
    %1168 = vmatpush.bf16.xpose.msra.mxu0 0
    %1169 = vmatpush.bf16.xpose.msra.mxu0 0
    %1170 = vmatpush.bf16.xpose.msra.mxu0 0
    %1171 = vmatpush.bf16.xpose.msra.mxu0 %v1162
    %1172 = vmatmul.bf16.gmra.mxu0 %v1159
    %v1173 = vpop.f32.mrf.mxu0
    %v1174 = vadd.f32 %v250, %v1173
    %v1175 = vpop.f32.mrf.mxu0
    %1176 = vdwg.mxu0
    %v1178 = vsel %vm366, %v1153, 0
    %v1181 = vsel %vm366, %v1155, 0
    %1183 = vmatpush.bf16.xpose.msra.mxu0 0
    %1184 = vmatpush.bf16.xpose.msra.mxu0 0
    %1185 = vmatpush.bf16.xpose.msra.mxu0 0
    %1186 = vmatpush.bf16.xpose.msra.mxu0 0
    %1187 = vmatpush.bf16.xpose.msra.mxu0 0
    %1188 = vmatpush.bf16.xpose.msra.mxu0 0
    %1189 = vmatpush.bf16.xpose.msra.mxu0 0
    %1190 = vmatpush.bf16.xpose.msra.mxu0 %v1181
    %1191 = vmatmul.bf16.gmra.mxu0 %v1178
    %v1192 = vpop.f32.mrf.mxu0
    %v1193 = vadd.f32 %v251, %v1192
    %v1194 = vpop.f32.mrf.mxu0
    %1195 = vdwg.mxu0
    %v1196 = vsel %vm366, %v1174, -inf
    %1197 = vmax.xlane.f32.xlu0 %v1196
    %v1198 = vpop.xlane.xlu0 %1197
    %v1199 = vsel %vm366, %v1193, -inf
    %1200 = vmax.xlane.f32.xlu0 %v1199
    %v1201 = vpop.xlane.xlu0 %1200
    %v1202 = vsub.f32 %v1174, %v1198
    %v1203 = vsub.f32 %v1193, %v1201
    %v1204 = vmul.f32 %v1202, 1.442695
    %v1205 = vpow.pop %v1204
    %v1206 = vmul.f32 %v1203, 1.442695
    %v1207 = vpow.pop %v1206
    %v1208 = vsel %vm366, %v1205, 0.0
    %1209 = vadd.xlane.f32.xlu0 %v1208
    %v1210 = vpop.xlane.xlu0 %1209
    %v1211 = vsel %vm366, %v1207, 0.0
    %1212 = vadd.xlane.f32.xlu0 %v1211
    %v1213 = vpop.xlane.xlu0 %1212
    %v1214 = vrcp.pop %v1210
    %v1215 = vmul.f32 %v1210, %v1214
    %v1216 = vsub.f32 1.0, %v1215
    %v1217 = vmul.f32 %v1214, %v1216
    %v1218 = vadd.f32 %v1214, %v1217
    %vm1219 = vweird.f32 %v1210
    %vm1220 = vweird.f32 %v1214
    %vm1221 = vmor %vm1219, %vm1220
    %v1222 = vsel %vm1221, %v1214, %v1218
    %v1223 = vand.u32 2147483647, %v1210
    %vm1224 = vcmp.eq.f32.partialorder %v1223, 8.507059e+37
    %v1225 = vand.u32 %v1210, 2147483648
    %v1226 = vor.u32 1.1754944e-38, %v1225
    %v1227 = vsel %vm1224, %v1226, %v1222
    %v1228 = vmul.f32 %v1205, %v1227
    %v1229 = vrcp.pop %v1213
    %v1230 = vmul.f32 %v1213, %v1229
    %v1231 = vsub.f32 1.0, %v1230
    %v1232 = vmul.f32 %v1229, %v1231
    %v1233 = vadd.f32 %v1229, %v1232
    %vm1234 = vweird.f32 %v1213
    %vm1235 = vweird.f32 %v1229
    %vm1236 = vmor %vm1234, %vm1235
    %v1237 = vsel %vm1236, %v1229, %v1233
    %v1238 = vand.u32 2147483647, %v1213
    %vm1239 = vcmp.eq.f32.partialorder %v1238, 8.507059e+37
    %v1240 = vand.u32 %v1213, 2147483648
    %v1241 = vor.u32 1.1754944e-38, %v1240
    %v1242 = vsel %vm1239, %v1241, %v1237
    %v1243 = vmul.f32 %v1207, %v1242
    %v1244 = vpack.c.bf16 %v1228, %v1228
    %v1245 = vpack.c.bf16 %v1243, %v1243
    %v1247 = vsel %vm366, %v1244, 0
    %v1250 = vsel %vm458, %v1156, 0
    %1252 = vmatpush.bf16.msra.mxu0 0
    %1253 = vmatpush.bf16.msra.mxu0 0
    %1254 = vmatpush.bf16.msra.mxu0 0
    %1255 = vmatpush.bf16.msra.mxu0 0
    %1256 = vmatpush.bf16.msra.mxu0 0
    %1257 = vmatpush.bf16.msra.mxu0 0
    %1258 = vmatpush.bf16.msra.mxu0 0
    %1259 = vmatpush.bf16.msra.mxu0 %v1250
    %1260 = vmatmul.bf16.gmra.mxu0 %v1247
    %v1261 = vpop.f32.mrf.mxu0
    %v1262 = vadd.f32 0.0, %v1261
    %v1263 = vpop.f32.mrf.mxu0
    %1264 = vdwg.mxu0
    %v1266 = vsel %vm366, %v1245, 0
    %v1269 = vsel %vm458, %v1157, 0
    %1271 = vmatpush.bf16.msra.mxu0 0
    %1272 = vmatpush.bf16.msra.mxu0 0
    %1273 = vmatpush.bf16.msra.mxu0 0
    %1274 = vmatpush.bf16.msra.mxu0 0
    %1275 = vmatpush.bf16.msra.mxu0 0
    %1276 = vmatpush.bf16.msra.mxu0 0
    %1277 = vmatpush.bf16.msra.mxu0 0
    %1278 = vmatpush.bf16.msra.mxu0 %v1269
    %1279 = vmatmul.bf16.gmra.mxu0 %v1266
    %v1280 = vpop.f32.mrf.mxu0
    %v1281 = vadd.f32 0.0, %v1280
    %v1282 = vpop.f32.mrf.mxu0
    %1283 = vdwg.mxu0
    %v1284 = vpack.c.bf16 %v1281, %v1262
    %s1285 = scalar_lea.vmem %s13, 12
    %v1286 = vld [vmem:[%s1285] sm:$0xf]
    %v1288 = vsel %vm366, %v1284, 0
    %v1291 = vsel %vm458, %v1286, 0
    %1293 = vmatpush.bf16.msra.mxu0 0
    %1294 = vmatpush.bf16.msra.mxu0 0
    %1295 = vmatpush.bf16.msra.mxu0 0
    %1296 = vmatpush.bf16.msra.mxu0 0
    %1297 = vmatpush.bf16.msra.mxu0 0
    %1298 = vmatpush.bf16.msra.mxu0 0
    %1299 = vmatpush.bf16.msra.mxu0 0
    %1300 = vmatpush.bf16.msra.mxu0 %v1291
    %1301 = vmatmul.bf16.gmra.mxu0 %v1288
    %v1302 = vpop.f32.mrf.mxu0
    %v1303 = vadd.f32 0.0, %v1302
    %v1304 = vpop.f32.mrf.mxu0
    %v1305 = vadd.f32 0.0, %v1304
    %1306 = vdwg.mxu0
    %v1307 = vadd.f32 %v1042, %v1303
    %v1308 = vadd.f32 %v1043, %v1305
    %v1309 = vld [vmem:[%s14] sm:$0x1]
    %v1311 = vperm.slane %v1309, 0
    %v1313 = vadd.f32 %v1307, %v1311
    %v1314 = vadd.f32 %v1308, %v1311
    %v1315 = vadd.f32 %v1313, %v242
    %v1316 = vadd.f32 %v1314, %v243
    %v1317 = vld [vmem:[%s15] sm:$0x1]
    %v1318 = vld [vmem:[%s16] sm:$0x1]
    %v1319 = vsel %vm182, %v1315, 0.0
    %1320 = vadd.xlane.f32.xlu0 %v1319
    %v1321 = vpop.xlane.xlu0 %1320
    %v1322 = vsel %vm182, %v1316, 0.0
    %1323 = vadd.xlane.f32.xlu0 %v1322
    %v1324 = vpop.xlane.xlu0 %1323
    %v1325 = vmul.f32 %v1321, %v195
    %v1326 = vmul.f32 %v1324, %v195
    %v1327 = vsub.f32 %v1315, %v1325
    %v1328 = vsub.f32 %v1316, %v1326
    %v1329 = vmul.f32 %v1327, %v1327
    %v1330 = vmul.f32 %v1328, %v1328
    %v1331 = vsel %vm182, %v1329, 0.0
    %1332 = vadd.xlane.f32.xlu0 %v1331
    %v1333 = vpop.xlane.xlu0 %1332
    %v1334 = vsel %vm182, %v1330, 0.0
    %1335 = vadd.xlane.f32.xlu0 %v1334
    %v1336 = vpop.xlane.xlu0 %1335
    %v1337 = vmul.f32 %v1333, %v195
    %v1338 = vmul.f32 %v1336, %v195
    %v1339 = vadd.f32 %v1337, 1e-12
    %v1340 = vadd.f32 %v1338, 1e-12
    %v1341 = vrsqrt.pop %v1339
    %v1342 = vmul.f32 %v1341, %v1339
    %v1343 = vmul.f32 %v1342, %v1341
    %v1344 = vmul.f32 0.5, %v1343
    %v1345 = vsub.f32 1.5, %v1344
    %v1346 = vmul.f32 %v1341, %v1345
    %vm1347 = vweird.f32 %v1339
    %vm1348 = vweird.f32 %v1341
    %vm1349 = vmor %vm1347, %vm1348
    %v1350 = vsel %vm1349, %v1341, %v1346
    %v1351 = vrsqrt.pop %v1340
    %v1352 = vmul.f32 %v1351, %v1340
    %v1353 = vmul.f32 %v1352, %v1351
    %v1354 = vmul.f32 0.5, %v1353
    %v1355 = vsub.f32 1.5, %v1354
    %v1356 = vmul.f32 %v1351, %v1355
    %vm1357 = vweird.f32 %v1340
    %vm1358 = vweird.f32 %v1351
    %vm1359 = vmor %vm1357, %vm1358
    %v1360 = vsel %vm1359, %v1351, %v1356
    %v1361 = vmul.f32 %v1327, %v1350
    %v1362 = vmul.f32 %v1328, %v1360
    %v1364 = vperm.slane %v1317, 0
    %v1366 = vmul.f32 %v1361, %v1364
    %v1367 = vmul.f32 %v1362, %v1364
    %v1369 = vperm.slane %v1318, 0
    %v1371 = vadd.f32 %v1366, %v1369
    %v1372 = vadd.f32 %v1367, %v1369
    %v1373 = vpack.c.bf16 %v1372, %v1371
    %v1374 = vld [vmem:[%s17] sm:$0xf]
    %v1375 = vld [vmem:[%s17 + $0x4] sm:$0xf]
    %v1376 = vld [vmem:[%s17 + $0x8] sm:$0xf]
    %v1377 = vld [vmem:[%s17 + $0xc] sm:$0xf]
    %v1378 = vld [vmem:[%s18] sm:$0x1]
    %v1380 = vperm.slane %v1378, 0
    %v1386 = vunpack.c.l.b16 %v1374
    %v1387 = vunpack.c.l.b16 %v1375
    %v1388 = vunpack.c.l.b16 %v1376
    %v1389 = vunpack.c.l.b16 %v1377
    %v1390 = vpack.c.b16 %v1387, %v1386
    %v1391 = vpack.c.b16 %v1389, %v1388
    %v1395 = vsel %vm182, %v1373, 0
    %1397 = vmatpush.bf16.msra.mxu0 0
    %1398 = vmatpush.bf16.msra.mxu0 0
    %1399 = vmatpush.bf16.msra.mxu0 0
    %1400 = vmatpush.bf16.msra.mxu0 0
    %1401 = vmatpush.bf16.msra.mxu0 0
    %1402 = vmatpush.bf16.msra.mxu0 0
    %1403 = vmatpush.bf16.msra.mxu0 %v1391
    %1404 = vmatpush.bf16.msra.mxu0 %v1390
    %1405 = vmatmul.bf16.gmra.mxu0 %v1395
    %v1406 = vpop.f32.mrf.mxu0
    %v1407 = vadd.f32 %v1380, %v1406
    %v1408 = vpop.f32.mrf.mxu0
    %v1409 = vadd.f32 %v1380, %v1408
    %1410 = vdwg.mxu0
    %v1411 = vmul.f32 %v1407, %v1407
    %v1412 = vmul.f32 %v1409, %v1409
    %v1413 = vmul.f32 %v1407, %v1411
    %v1414 = vmul.f32 %v1409, %v1412
    %v1415 = vmul.f32 %v1413, 0.044715
    %v1416 = vmul.f32 %v1414, 0.044715
    %v1417 = vadd.f32 %v1407, %v1415
    %v1418 = vadd.f32 %v1409, %v1416
    %v1419 = vmul.f32 %v1417, 0.7978846
    %v1420 = vmul.f32 %v1418, 0.7978846
    %v1421 = vtanh.pop %v1419
    %v1422 = vtanh.pop %v1420
    %v1423 = vadd.f32 %v1421, 1.0
    %v1424 = vadd.f32 %v1422, 1.0
    %v1425 = vmul.f32 %v1423, 0.5
    %v1426 = vmul.f32 %v1424, 0.5
    %v1427 = vmul.f32 %v1407, %v1425
    %v1428 = vmul.f32 %v1409, %v1426
    %v1429 = vpack.c.bf16 %v1428, %v1427
    %v1430 = vld [vmem:[%s19] sm:$0xf]
    %v1431 = vld [vmem:[%s19 + $0x4] sm:$0xf]
    %v1432 = vld [vmem:[%s19 + $0x8] sm:$0xf]
    %v1433 = vld [vmem:[%s19 + $0xc] sm:$0xf]
    %v1434 = vld [vmem:[%s19 + $0x10] sm:$0xf]
    %v1435 = vld [vmem:[%s19 + $0x14] sm:$0xf]
    %v1436 = vld [vmem:[%s19 + $0x18] sm:$0xf]
    %v1437 = vld [vmem:[%s19 + $0x1c] sm:$0xf]
    %v1438 = vld [vmem:[%s20] sm:$0x1]
    %v1440 = vperm.slane %v1438, 0
    %v1450 = vunpack.c.l.b16 %v1430
    %v1451 = vunpack.c.l.b16 %v1431
    %v1452 = vunpack.c.l.b16 %v1432
    %v1453 = vunpack.c.l.b16 %v1433
    %v1454 = vunpack.c.l.b16 %v1434
    %v1455 = vunpack.c.l.b16 %v1435
    %v1456 = vunpack.c.l.b16 %v1436
    %v1457 = vunpack.c.l.b16 %v1437
    %v1458 = vpack.c.b16 %v1451, %v1450
    %v1459 = vpack.c.b16 %v1453, %v1452
    %v1460 = vpack.c.b16 %v1455, %v1454
    %v1461 = vpack.c.b16 %v1457, %v1456
    %vm1466 = vcmask 523264
    %v1468 = vsel %vm1466, %v1429, 0
    %1470 = vmatpush.bf16.msra.mxu0 0
    %1471 = vmatpush.bf16.msra.mxu0 0
    %1472 = vmatpush.bf16.msra.mxu0 0
    %1473 = vmatpush.bf16.msra.mxu0 0
    %1474 = vmatpush.bf16.msra.mxu0 %v1461
    %1475 = vmatpush.bf16.msra.mxu0 %v1460
    %1476 = vmatpush.bf16.msra.mxu0 %v1459
    %1477 = vmatpush.bf16.msra.mxu0 %v1458
    %1478 = vmatmul.bf16.gmra.mxu0 %v1468
    %v1479 = vpop.f32.mrf.mxu0
    %v1480 = vadd.f32 %v1440, %v1479
    %v1481 = vpop.f32.mrf.mxu0
    %v1482 = vadd.f32 %v1440, %v1481
    %1483 = vdwg.mxu0
    %v1484 = vadd.f32 %v1480, %v1371
    %v1485 = vadd.f32 %v1482, %v1372
    %v1486 = vld [vmem:[%s21] sm:$0x1]
    %v1487 = vld [vmem:[%s22] sm:$0x1]
    %v1488 = vsel %vm182, %v1484, 0.0
    %1489 = vadd.xlane.f32.xlu0 %v1488
    %v1490 = vpop.xlane.xlu0 %1489
    %v1491 = vsel %vm182, %v1485, 0.0
    %1492 = vadd.xlane.f32.xlu0 %v1491
    %v1493 = vpop.xlane.xlu0 %1492
    %v1494 = vmul.f32 %v1490, %v195
    %v1495 = vmul.f32 %v1493, %v195
    %v1496 = vsub.f32 %v1484, %v1494
    %v1497 = vsub.f32 %v1485, %v1495
    %v1498 = vmul.f32 %v1496, %v1496
    %v1499 = vmul.f32 %v1497, %v1497
    %v1500 = vsel %vm182, %v1498, 0.0
    %1501 = vadd.xlane.f32.xlu0 %v1500
    %v1502 = vpop.xlane.xlu0 %1501
    %v1503 = vsel %vm182, %v1499, 0.0
    %1504 = vadd.xlane.f32.xlu0 %v1503
    %v1505 = vpop.xlane.xlu0 %1504
    %v1506 = vmul.f32 %v1502, %v195
    %v1507 = vmul.f32 %v1505, %v195
    %v1508 = vadd.f32 %v1506, 1e-12
    %v1509 = vadd.f32 %v1507, 1e-12
    %v1510 = vrsqrt.pop %v1508
    %v1511 = vmul.f32 %v1510, %v1508
    %v1512 = vmul.f32 %v1511, %v1510
    %v1513 = vmul.f32 0.5, %v1512
    %v1514 = vsub.f32 1.5, %v1513
    %v1515 = vmul.f32 %v1510, %v1514
    %vm1516 = vweird.f32 %v1508
    %vm1517 = vweird.f32 %v1510
    %vm1518 = vmor %vm1516, %vm1517
    %v1519 = vsel %vm1518, %v1510, %v1515
    %v1520 = vrsqrt.pop %v1509
    %v1521 = vmul.f32 %v1520, %v1509
    %v1522 = vmul.f32 %v1521, %v1520
    %v1523 = vmul.f32 0.5, %v1522
    %v1524 = vsub.f32 1.5, %v1523
    %v1525 = vmul.f32 %v1520, %v1524
    %vm1526 = vweird.f32 %v1509
    %vm1527 = vweird.f32 %v1520
    %vm1528 = vmor %vm1526, %vm1527
    %v1529 = vsel %vm1528, %v1520, %v1525
    %v1530 = vmul.f32 %v1496, %v1519
    %v1531 = vmul.f32 %v1497, %v1529
    %v1533 = vperm.slane %v1486, 0
    %v1535 = vmul.f32 %v1530, %v1533
    %v1536 = vmul.f32 %v1531, %v1533
    %v1538 = vperm.slane %v1487, 0
    %v1540 = vadd.f32 %v1535, %v1538
    %v1541 = vadd.f32 %v1536, %v1538
    %v1542 = vpack.c.bf16 %v1541, %v1540
    %s1543 = scalar_lea.vmem %s7, 64
    %v1544 = vld [vmem:[%s1543] sm:$0xf]
    %v1545 = vld [vmem:[%s1543 + $0x4] sm:$0xf]
    %v1546 = vld [vmem:[%s1543 + $0x8] sm:$0xf]
    %v1547 = vld [vmem:[%s1543 + $0xc] sm:$0xf]
    %s1548 = scalar_lea.vmem %s10, 4
    %v1549 = vld [vmem:[%s1548] sm:$0x1]
    %v1551 = vperm.slane %v1549, 0
    %v1557 = vunpack.c.l.b16 %v1544
    %v1558 = vunpack.c.l.b16 %v1545
    %v1559 = vunpack.c.l.b16 %v1546
    %v1560 = vunpack.c.l.b16 %v1547
    %v1561 = vpack.c.b16 %v1558, %v1557
    %v1562 = vpack.c.b16 %v1560, %v1559
    %v1566 = vsel %vm182, %v1542, 0
    %1568 = vmatpush.bf16.msra.mxu0 0
    %1569 = vmatpush.bf16.msra.mxu0 0
    %1570 = vmatpush.bf16.msra.mxu0 0
    %1571 = vmatpush.bf16.msra.mxu0 0
    %1572 = vmatpush.bf16.msra.mxu0 0
    %1573 = vmatpush.bf16.msra.mxu0 0
    %1574 = vmatpush.bf16.msra.mxu0 %v1562
    %1575 = vmatpush.bf16.msra.mxu0 %v1561
    %1576 = vmatmul.bf16.gmra.mxu0 %v1566
    %v1577 = vpop.f32.mrf.mxu0
    %v1578 = vadd.f32 %v1551, %v1577
    %v1579 = vpop.f32.mrf.mxu0
    %v1580 = vadd.f32 %v1551, %v1579
    %1581 = vdwg.mxu0
    %s1582 = scalar_lea.vmem %s8, 64
    %v1583 = vld [vmem:[%s1582] sm:$0xf]
    %v1584 = vld [vmem:[%s1582 + $0x4] sm:$0xf]
    %v1585 = vld [vmem:[%s1582 + $0x8] sm:$0xf]
    %v1586 = vld [vmem:[%s1582 + $0xc] sm:$0xf]
    %s1587 = scalar_lea.vmem %s11, 4
    %v1588 = vld [vmem:[%s1587] sm:$0x1]
    %v1590 = vperm.slane %v1588, 0
    %v1596 = vunpack.c.l.b16 %v1583
    %v1597 = vunpack.c.l.b16 %v1584
    %v1598 = vunpack.c.l.b16 %v1585
    %v1599 = vunpack.c.l.b16 %v1586
    %v1600 = vpack.c.b16 %v1597, %v1596
    %v1601 = vpack.c.b16 %v1599, %v1598
    %1604 = vmatpush.bf16.msra.mxu0 0
    %1605 = vmatpush.bf16.msra.mxu0 0
    %1606 = vmatpush.bf16.msra.mxu0 0
    %1607 = vmatpush.bf16.msra.mxu0 0
    %1608 = vmatpush.bf16.msra.mxu0 0
    %1609 = vmatpush.bf16.msra.mxu0 0
    %1610 = vmatpush.bf16.msra.mxu0 %v1601
    %1611 = vmatpush.bf16.msra.mxu0 %v1600
    %1612 = vmatmul.bf16.gmra.mxu0 %v1566
    %v1613 = vpop.f32.mrf.mxu0
    %v1614 = vadd.f32 %v1590, %v1613
    %v1615 = vpop.f32.mrf.mxu0
    %v1616 = vadd.f32 %v1590, %v1615
    %1617 = vdwg.mxu0
    %s1618 = scalar_lea.vmem %s9, 64
    %v1619 = vld [vmem:[%s1618] sm:$0xf]
    %v1620 = vld [vmem:[%s1618 + $0x4] sm:$0xf]
    %v1621 = vld [vmem:[%s1618 + $0x8] sm:$0xf]
    %v1622 = vld [vmem:[%s1618 + $0xc] sm:$0xf]
    %s1623 = scalar_lea.vmem %s12, 4
    %v1624 = vld [vmem:[%s1623] sm:$0x1]
    %v1626 = vperm.slane %v1624, 0
    %v1632 = vunpack.c.l.b16 %v1619
    %v1633 = vunpack.c.l.b16 %v1620
    %v1634 = vunpack.c.l.b16 %v1621
    %v1635 = vunpack.c.l.b16 %v1622
    %v1636 = vpack.c.b16 %v1633, %v1632
    %v1637 = vpack.c.b16 %v1635, %v1634
    %1640 = vmatpush.bf16.msra.mxu0 0
    %1641 = vmatpush.bf16.msra.mxu0 0
    %1642 = vmatpush.bf16.msra.mxu0 0
    %1643 = vmatpush.bf16.msra.mxu0 0
    %1644 = vmatpush.bf16.msra.mxu0 0
    %1645 = vmatpush.bf16.msra.mxu0 0
    %1646 = vmatpush.bf16.msra.mxu0 %v1637
    %1647 = vmatpush.bf16.msra.mxu0 %v1636
    %1648 = vmatmul.bf16.gmra.mxu0 %v1566
    %v1649 = vpop.f32.mrf.mxu0
    %v1650 = vadd.f32 %v1626, %v1649
    %v1651 = vpop.f32.mrf.mxu0
    %v1652 = vadd.f32 %v1626, %v1651
    %1653 = vdwg.mxu0
    %v1654 = vpack.c.bf16 %v1578, %v1578
    %v1655 = vpack.c.bf16 %v1580, %v1580
    %v1656 = vpack.c.bf16 %v1614, %v1614
    %v1657 = vpack.c.bf16 %v1616, %v1616
    %v1658 = vpack.c.bf16 %v1650, %v1650
    %v1659 = vpack.c.bf16 %v1652, %v1652
    %v1661 = vsel %vm366, %v1654, 0
    %v1664 = vsel %vm366, %v1656, 0
    %1666 = vmatpush.bf16.xpose.msra.mxu0 0
    %1667 = vmatpush.bf16.xpose.msra.mxu0 0
    %1668 = vmatpush.bf16.xpose.msra.mxu0 0
    %1669 = vmatpush.bf16.xpose.msra.mxu0 0
    %1670 = vmatpush.bf16.xpose.msra.mxu0 0
    %1671 = vmatpush.bf16.xpose.msra.mxu0 0
    %1672 = vmatpush.bf16.xpose.msra.mxu0 0
    %1673 = vmatpush.bf16.xpose.msra.mxu0 %v1664
    %1674 = vmatmul.bf16.gmra.mxu0 %v1661
    %v1675 = vpop.f32.mrf.mxu0
    %v1676 = vadd.f32 %v250, %v1675
    %v1677 = vpop.f32.mrf.mxu0
    %1678 = vdwg.mxu0
    %v1680 = vsel %vm366, %v1655, 0
    %v1683 = vsel %vm366, %v1657, 0
    %1685 = vmatpush.bf16.xpose.msra.mxu0 0
    %1686 = vmatpush.bf16.xpose.msra.mxu0 0
    %1687 = vmatpush.bf16.xpose.msra.mxu0 0
    %1688 = vmatpush.bf16.xpose.msra.mxu0 0
    %1689 = vmatpush.bf16.xpose.msra.mxu0 0
    %1690 = vmatpush.bf16.xpose.msra.mxu0 0
    %1691 = vmatpush.bf16.xpose.msra.mxu0 0
    %1692 = vmatpush.bf16.xpose.msra.mxu0 %v1683
    %1693 = vmatmul.bf16.gmra.mxu0 %v1680
    %v1694 = vpop.f32.mrf.mxu0
    %v1695 = vadd.f32 %v251, %v1694
    %v1696 = vpop.f32.mrf.mxu0
    %1697 = vdwg.mxu0
    %v1698 = vsel %vm366, %v1676, -inf
    %1699 = vmax.xlane.f32.xlu0 %v1698
    %v1700 = vpop.xlane.xlu0 %1699
    %v1701 = vsel %vm366, %v1695, -inf
    %1702 = vmax.xlane.f32.xlu0 %v1701
    %v1703 = vpop.xlane.xlu0 %1702
    %v1704 = vsub.f32 %v1676, %v1700
    %v1705 = vsub.f32 %v1695, %v1703
    %v1706 = vmul.f32 %v1704, 1.442695
    %v1707 = vpow.pop %v1706
    %v1708 = vmul.f32 %v1705, 1.442695
    %v1709 = vpow.pop %v1708
    %v1710 = vsel %vm366, %v1707, 0.0
    %1711 = vadd.xlane.f32.xlu0 %v1710
    %v1712 = vpop.xlane.xlu0 %1711
    %v1713 = vsel %vm366, %v1709, 0.0
    %1714 = vadd.xlane.f32.xlu0 %v1713
    %v1715 = vpop.xlane.xlu0 %1714
    %v1716 = vrcp.pop %v1712
    %v1717 = vmul.f32 %v1712, %v1716
    %v1718 = vsub.f32 1.0, %v1717
    %v1719 = vmul.f32 %v1716, %v1718
    %v1720 = vadd.f32 %v1716, %v1719
    %vm1721 = vweird.f32 %v1712
    %vm1722 = vweird.f32 %v1716
    %vm1723 = vmor %vm1721, %vm1722
    %v1724 = vsel %vm1723, %v1716, %v1720
    %v1725 = vand.u32 2147483647, %v1712
    %vm1726 = vcmp.eq.f32.partialorder %v1725, 8.507059e+37
    %v1727 = vand.u32 %v1712, 2147483648
    %v1728 = vor.u32 1.1754944e-38, %v1727
    %v1729 = vsel %vm1726, %v1728, %v1724
    %v1730 = vmul.f32 %v1707, %v1729
    %v1731 = vrcp.pop %v1715
    %v1732 = vmul.f32 %v1715, %v1731
    %v1733 = vsub.f32 1.0, %v1732
    %v1734 = vmul.f32 %v1731, %v1733
    %v1735 = vadd.f32 %v1731, %v1734
    %vm1736 = vweird.f32 %v1715
    %vm1737 = vweird.f32 %v1731
    %vm1738 = vmor %vm1736, %vm1737
    %v1739 = vsel %vm1738, %v1731, %v1735
    %v1740 = vand.u32 2147483647, %v1715
    %vm1741 = vcmp.eq.f32.partialorder %v1740, 8.507059e+37
    %v1742 = vand.u32 %v1715, 2147483648
    %v1743 = vor.u32 1.1754944e-38, %v1742
    %v1744 = vsel %vm1741, %v1743, %v1739
    %v1745 = vmul.f32 %v1709, %v1744
    %v1746 = vpack.c.bf16 %v1730, %v1730
    %v1747 = vpack.c.bf16 %v1745, %v1745
    %v1749 = vsel %vm366, %v1746, 0
    %v1752 = vsel %vm458, %v1658, 0
    %1754 = vmatpush.bf16.msra.mxu0 0
    %1755 = vmatpush.bf16.msra.mxu0 0
    %1756 = vmatpush.bf16.msra.mxu0 0
    %1757 = vmatpush.bf16.msra.mxu0 0
    %1758 = vmatpush.bf16.msra.mxu0 0
    %1759 = vmatpush.bf16.msra.mxu0 0
    %1760 = vmatpush.bf16.msra.mxu0 0
    %1761 = vmatpush.bf16.msra.mxu0 %v1752
    %1762 = vmatmul.bf16.gmra.mxu0 %v1749
    %v1763 = vpop.f32.mrf.mxu0
    %v1764 = vadd.f32 0.0, %v1763
    %v1765 = vpop.f32.mrf.mxu0
    %1766 = vdwg.mxu0
    %v1768 = vsel %vm366, %v1747, 0
    %v1771 = vsel %vm458, %v1659, 0
    %1773 = vmatpush.bf16.msra.mxu0 0
    %1774 = vmatpush.bf16.msra.mxu0 0
    %1775 = vmatpush.bf16.msra.mxu0 0
    %1776 = vmatpush.bf16.msra.mxu0 0
    %1777 = vmatpush.bf16.msra.mxu0 0
    %1778 = vmatpush.bf16.msra.mxu0 0
    %1779 = vmatpush.bf16.msra.mxu0 0
    %1780 = vmatpush.bf16.msra.mxu0 %v1771
    %1781 = vmatmul.bf16.gmra.mxu0 %v1768
    %v1782 = vpop.f32.mrf.mxu0
    %v1783 = vadd.f32 0.0, %v1782
    %v1784 = vpop.f32.mrf.mxu0
    %1785 = vdwg.mxu0
    %v1786 = vpack.c.bf16 %v1783, %v1764
    %s1787 = scalar_lea.vmem %s13, 16
    %v1788 = vld [vmem:[%s1787] sm:$0xf]
    %s1789 = scalar_lea.vmem %s7, 80
    %v1790 = vld [vmem:[%s1789] sm:$0xf]
    %v1791 = vld [vmem:[%s1789 + $0x4] sm:$0xf]
    %v1792 = vld [vmem:[%s1789 + $0x8] sm:$0xf]
    %v1793 = vld [vmem:[%s1789 + $0xc] sm:$0xf]
    %s1794 = scalar_lea.vmem %s10, 5
    %v1795 = vld [vmem:[%s1794] sm:$0x1]
    %v1797 = vperm.slane %v1795, 0
    %v1803 = vunpack.c.l.b16 %v1790
    %v1804 = vunpack.c.l.b16 %v1791
    %v1805 = vunpack.c.l.b16 %v1792
    %v1806 = vunpack.c.l.b16 %v1793
    %v1807 = vpack.c.b16 %v1804, %v1803
    %v1808 = vpack.c.b16 %v1806, %v1805
    %1811 = vmatpush.bf16.msra.mxu0 0
    %1812 = vmatpush.bf16.msra.mxu0 0
    %1813 = vmatpush.bf16.msra.mxu0 0
    %1814 = vmatpush.bf16.msra.mxu0 0
    %1815 = vmatpush.bf16.msra.mxu0 0
    %1816 = vmatpush.bf16.msra.mxu0 0
    %1817 = vmatpush.bf16.msra.mxu0 %v1808
    %1818 = vmatpush.bf16.msra.mxu0 %v1807
    %1819 = vmatmul.bf16.gmra.mxu0 %v1566
    %v1820 = vpop.f32.mrf.mxu0
    %v1821 = vadd.f32 %v1797, %v1820
    %v1822 = vpop.f32.mrf.mxu0
    %v1823 = vadd.f32 %v1797, %v1822
    %1824 = vdwg.mxu0
    %s1825 = scalar_lea.vmem %s8, 80
    %v1826 = vld [vmem:[%s1825] sm:$0xf]
    %v1827 = vld [vmem:[%s1825 + $0x4] sm:$0xf]
    %v1828 = vld [vmem:[%s1825 + $0x8] sm:$0xf]
    %v1829 = vld [vmem:[%s1825 + $0xc] sm:$0xf]
    %s1830 = scalar_lea.vmem %s11, 5
    %v1831 = vld [vmem:[%s1830] sm:$0x1]
    %v1833 = vperm.slane %v1831, 0
    %v1839 = vunpack.c.l.b16 %v1826
    %v1840 = vunpack.c.l.b16 %v1827
    %v1841 = vunpack.c.l.b16 %v1828
    %v1842 = vunpack.c.l.b16 %v1829
    %v1843 = vpack.c.b16 %v1840, %v1839
    %v1844 = vpack.c.b16 %v1842, %v1841
    %1847 = vmatpush.bf16.msra.mxu0 0
    %1848 = vmatpush.bf16.msra.mxu0 0
    %1849 = vmatpush.bf16.msra.mxu0 0
    %1850 = vmatpush.bf16.msra.mxu0 0
    %1851 = vmatpush.bf16.msra.mxu0 0
    %1852 = vmatpush.bf16.msra.mxu0 0
    %1853 = vmatpush.bf16.msra.mxu0 %v1844
    %1854 = vmatpush.bf16.msra.mxu0 %v1843
    %1855 = vmatmul.bf16.gmra.mxu0 %v1566
    %v1856 = vpop.f32.mrf.mxu0
    %v1857 = vadd.f32 %v1833, %v1856
    %v1858 = vpop.f32.mrf.mxu0
    %v1859 = vadd.f32 %v1833, %v1858
    %1860 = vdwg.mxu0
    %s1861 = scalar_lea.vmem %s9, 80
    %v1862 = vld [vmem:[%s1861] sm:$0xf]
    %v1863 = vld [vmem:[%s1861 + $0x4] sm:$0xf]
    %v1864 = vld [vmem:[%s1861 + $0x8] sm:$0xf]
    %v1865 = vld [vmem:[%s1861 + $0xc] sm:$0xf]
    %s1866 = scalar_lea.vmem %s12, 5
    %v1867 = vld [vmem:[%s1866] sm:$0x1]
    %v1869 = vperm.slane %v1867, 0
    %v1875 = vunpack.c.l.b16 %v1862
    %v1876 = vunpack.c.l.b16 %v1863
    %v1877 = vunpack.c.l.b16 %v1864
    %v1878 = vunpack.c.l.b16 %v1865
    %v1879 = vpack.c.b16 %v1876, %v1875
    %v1880 = vpack.c.b16 %v1878, %v1877
    %1883 = vmatpush.bf16.msra.mxu0 0
    %1884 = vmatpush.bf16.msra.mxu0 0
    %1885 = vmatpush.bf16.msra.mxu0 0
    %1886 = vmatpush.bf16.msra.mxu0 0
    %1887 = vmatpush.bf16.msra.mxu0 0
    %1888 = vmatpush.bf16.msra.mxu0 0
    %1889 = vmatpush.bf16.msra.mxu0 %v1880
    %1890 = vmatpush.bf16.msra.mxu0 %v1879
    %1891 = vmatmul.bf16.gmra.mxu0 %v1566
    %v1892 = vpop.f32.mrf.mxu0
    %v1893 = vadd.f32 %v1869, %v1892
    %v1894 = vpop.f32.mrf.mxu0
    %v1895 = vadd.f32 %v1869, %v1894
    %1896 = vdwg.mxu0
    %v1897 = vpack.c.bf16 %v1821, %v1821
    %v1898 = vpack.c.bf16 %v1823, %v1823
    %v1899 = vpack.c.bf16 %v1857, %v1857
    %v1900 = vpack.c.bf16 %v1859, %v1859
    %v1901 = vpack.c.bf16 %v1893, %v1893
    %v1902 = vpack.c.bf16 %v1895, %v1895
    %v1904 = vsel %vm366, %v1897, 0
    %v1907 = vsel %vm366, %v1899, 0
    %1909 = vmatpush.bf16.xpose.msra.mxu0 0
    %1910 = vmatpush.bf16.xpose.msra.mxu0 0
    %1911 = vmatpush.bf16.xpose.msra.mxu0 0
    %1912 = vmatpush.bf16.xpose.msra.mxu0 0
    %1913 = vmatpush.bf16.xpose.msra.mxu0 0
    %1914 = vmatpush.bf16.xpose.msra.mxu0 0
    %1915 = vmatpush.bf16.xpose.msra.mxu0 0
    %1916 = vmatpush.bf16.xpose.msra.mxu0 %v1907
    %1917 = vmatmul.bf16.gmra.mxu0 %v1904
    %v1918 = vpop.f32.mrf.mxu0
    %v1919 = vadd.f32 %v250, %v1918
    %v1920 = vpop.f32.mrf.mxu0
    %1921 = vdwg.mxu0
    %v1923 = vsel %vm366, %v1898, 0
    %v1926 = vsel %vm366, %v1900, 0
    %1928 = vmatpush.bf16.xpose.msra.mxu0 0
    %1929 = vmatpush.bf16.xpose.msra.mxu0 0
    %1930 = vmatpush.bf16.xpose.msra.mxu0 0
    %1931 = vmatpush.bf16.xpose.msra.mxu0 0
    %1932 = vmatpush.bf16.xpose.msra.mxu0 0
    %1933 = vmatpush.bf16.xpose.msra.mxu0 0
    %1934 = vmatpush.bf16.xpose.msra.mxu0 0
    %1935 = vmatpush.bf16.xpose.msra.mxu0 %v1926
    %1936 = vmatmul.bf16.gmra.mxu0 %v1923
    %v1937 = vpop.f32.mrf.mxu0
    %v1938 = vadd.f32 %v251, %v1937
    %v1939 = vpop.f32.mrf.mxu0
    %1940 = vdwg.mxu0
    %v1941 = vsel %vm366, %v1919, -inf
    %1942 = vmax.xlane.f32.xlu0 %v1941
    %v1943 = vpop.xlane.xlu0 %1942
    %v1944 = vsel %vm366, %v1938, -inf
    %1945 = vmax.xlane.f32.xlu0 %v1944
    %v1946 = vpop.xlane.xlu0 %1945
    %v1947 = vsub.f32 %v1919, %v1943
    %v1948 = vsub.f32 %v1938, %v1946
    %v1949 = vmul.f32 %v1947, 1.442695
    %v1950 = vpow.pop %v1949
    %v1951 = vmul.f32 %v1948, 1.442695
    %v1952 = vpow.pop %v1951
    %v1953 = vsel %vm366, %v1950, 0.0
    %1954 = vadd.xlane.f32.xlu0 %v1953
    %v1955 = vpop.xlane.xlu0 %1954
    %v1956 = vsel %vm366, %v1952, 0.0
    %1957 = vadd.xlane.f32.xlu0 %v1956
    %v1958 = vpop.xlane.xlu0 %1957
    %v1959 = vrcp.pop %v1955
    %v1960 = vmul.f32 %v1955, %v1959
    %v1961 = vsub.f32 1.0, %v1960
    %v1962 = vmul.f32 %v1959, %v1961
    %v1963 = vadd.f32 %v1959, %v1962
    %vm1964 = vweird.f32 %v1955
    %vm1965 = vweird.f32 %v1959
    %vm1966 = vmor %vm1964, %vm1965
    %v1967 = vsel %vm1966, %v1959, %v1963
    %v1968 = vand.u32 2147483647, %v1955
    %vm1969 = vcmp.eq.f32.partialorder %v1968, 8.507059e+37
    %v1970 = vand.u32 %v1955, 2147483648
    %v1971 = vor.u32 1.1754944e-38, %v1970
    %v1972 = vsel %vm1969, %v1971, %v1967
    %v1973 = vmul.f32 %v1950, %v1972
    %v1974 = vrcp.pop %v1958
    %v1975 = vmul.f32 %v1958, %v1974
    %v1976 = vsub.f32 1.0, %v1975
    %v1977 = vmul.f32 %v1974, %v1976
    %v1978 = vadd.f32 %v1974, %v1977
    %vm1979 = vweird.f32 %v1958
    %vm1980 = vweird.f32 %v1974
    %vm1981 = vmor %vm1979, %vm1980
    %v1982 = vsel %vm1981, %v1974, %v1978
    %v1983 = vand.u32 2147483647, %v1958
    %vm1984 = vcmp.eq.f32.partialorder %v1983, 8.507059e+37
    %v1985 = vand.u32 %v1958, 2147483648
    %v1986 = vor.u32 1.1754944e-38, %v1985
    %v1987 = vsel %vm1984, %v1986, %v1982
    %v1988 = vmul.f32 %v1952, %v1987
    %v1989 = vpack.c.bf16 %v1973, %v1973
    %v1990 = vpack.c.bf16 %v1988, %v1988
    %v1992 = vsel %vm366, %v1989, 0
    %v1995 = vsel %vm458, %v1901, 0
    %1997 = vmatpush.bf16.msra.mxu0 0
    %1998 = vmatpush.bf16.msra.mxu0 0
    %1999 = vmatpush.bf16.msra.mxu0 0
    %2000 = vmatpush.bf16.msra.mxu0 0
    %2001 = vmatpush.bf16.msra.mxu0 0
    %2002 = vmatpush.bf16.msra.mxu0 0
    %2003 = vmatpush.bf16.msra.mxu0 0
    %2004 = vmatpush.bf16.msra.mxu0 %v1995
    %2005 = vmatmul.bf16.gmra.mxu0 %v1992
    %v2006 = vpop.f32.mrf.mxu0
    %v2007 = vadd.f32 0.0, %v2006
    %v2008 = vpop.f32.mrf.mxu0
    %2009 = vdwg.mxu0
    %v2011 = vsel %vm366, %v1990, 0
    %v2014 = vsel %vm458, %v1902, 0
    %2016 = vmatpush.bf16.msra.mxu0 0
    %2017 = vmatpush.bf16.msra.mxu0 0
    %2018 = vmatpush.bf16.msra.mxu0 0
    %2019 = vmatpush.bf16.msra.mxu0 0
    %2020 = vmatpush.bf16.msra.mxu0 0
    %2021 = vmatpush.bf16.msra.mxu0 0
    %2022 = vmatpush.bf16.msra.mxu0 0
    %2023 = vmatpush.bf16.msra.mxu0 %v2014
    %2024 = vmatmul.bf16.gmra.mxu0 %v2011
    %v2025 = vpop.f32.mrf.mxu0
    %v2026 = vadd.f32 0.0, %v2025
    %v2027 = vpop.f32.mrf.mxu0
    %2028 = vdwg.mxu0
    %v2029 = vpack.c.bf16 %v2026, %v2007
    %s2030 = scalar_lea.vmem %s13, 20
    %v2031 = vld [vmem:[%s2030] sm:$0xf]
    %v2033 = vsel %vm366, %v2029, 0
    %v2036 = vsel %vm458, %v2031, 0
    %2038 = vmatpush.bf16.msra.mxu0 0
    %2039 = vmatpush.bf16.msra.mxu0 0
    %2040 = vmatpush.bf16.msra.mxu0 0
    %2041 = vmatpush.bf16.msra.mxu0 0
    %2042 = vmatpush.bf16.msra.mxu0 0
    %2043 = vmatpush.bf16.msra.mxu0 0
    %2044 = vmatpush.bf16.msra.mxu0 0
    %2045 = vmatpush.bf16.msra.mxu0 %v2036
    %2046 = vmatmul.bf16.gmra.mxu0 %v2033
    %v2047 = vpop.f32.mrf.mxu0
    %v2048 = vadd.f32 0.0, %v2047
    %v2049 = vpop.f32.mrf.mxu0
    %v2050 = vadd.f32 0.0, %v2049
    %2051 = vdwg.mxu0
    %v2053 = vsel %vm366, %v1786, 0
    %v2056 = vsel %vm458, %v1788, 0
    %2058 = vmatpush.bf16.msra.mxu0 0
    %2059 = vmatpush.bf16.msra.mxu0 0
    %2060 = vmatpush.bf16.msra.mxu0 0
    %2061 = vmatpush.bf16.msra.mxu0 0
    %2062 = vmatpush.bf16.msra.mxu0 0
    %2063 = vmatpush.bf16.msra.mxu0 0
    %2064 = vmatpush.bf16.msra.mxu0 0
    %2065 = vmatpush.bf16.msra.mxu0 %v2056
    %2066 = vmatmul.bf16.gmra.mxu0 %v2053
    %v2067 = vpop.f32.mrf.mxu0
    %v2068 = vadd.f32 %v2048, %v2067
    %v2069 = vpop.f32.mrf.mxu0
    %v2070 = vadd.f32 %v2050, %v2069
    %2071 = vdwg.mxu0
    %s2072 = scalar_lea.vmem %s7, 96
    %v2073 = vld [vmem:[%s2072] sm:$0xf]
    %v2074 = vld [vmem:[%s2072 + $0x4] sm:$0xf]
    %v2075 = vld [vmem:[%s2072 + $0x8] sm:$0xf]
    %v2076 = vld [vmem:[%s2072 + $0xc] sm:$0xf]
    %s2077 = scalar_lea.vmem %s10, 6
    %v2078 = vld [vmem:[%s2077] sm:$0x1]
    %v2080 = vperm.slane %v2078, 0
    %v2086 = vunpack.c.l.b16 %v2073
    %v2087 = vunpack.c.l.b16 %v2074
    %v2088 = vunpack.c.l.b16 %v2075
    %v2089 = vunpack.c.l.b16 %v2076
    %v2090 = vpack.c.b16 %v2087, %v2086
    %v2091 = vpack.c.b16 %v2089, %v2088
    %2094 = vmatpush.bf16.msra.mxu0 0
    %2095 = vmatpush.bf16.msra.mxu0 0
    %2096 = vmatpush.bf16.msra.mxu0 0
    %2097 = vmatpush.bf16.msra.mxu0 0
    %2098 = vmatpush.bf16.msra.mxu0 0
    %2099 = vmatpush.bf16.msra.mxu0 0
    %2100 = vmatpush.bf16.msra.mxu0 %v2091
    %2101 = vmatpush.bf16.msra.mxu0 %v2090
    %2102 = vmatmul.bf16.gmra.mxu0 %v1566
    %v2103 = vpop.f32.mrf.mxu0
    %v2104 = vadd.f32 %v2080, %v2103
    %v2105 = vpop.f32.mrf.mxu0
    %v2106 = vadd.f32 %v2080, %v2105
    %2107 = vdwg.mxu0
    %s2108 = scalar_lea.vmem %s8, 96
    %v2109 = vld [vmem:[%s2108] sm:$0xf]
    %v2110 = vld [vmem:[%s2108 + $0x4] sm:$0xf]
    %v2111 = vld [vmem:[%s2108 + $0x8] sm:$0xf]
    %v2112 = vld [vmem:[%s2108 + $0xc] sm:$0xf]
    %s2113 = scalar_lea.vmem %s11, 6
    %v2114 = vld [vmem:[%s2113] sm:$0x1]
    %v2116 = vperm.slane %v2114, 0
    %v2122 = vunpack.c.l.b16 %v2109
    %v2123 = vunpack.c.l.b16 %v2110
    %v2124 = vunpack.c.l.b16 %v2111
    %v2125 = vunpack.c.l.b16 %v2112
    %v2126 = vpack.c.b16 %v2123, %v2122
    %v2127 = vpack.c.b16 %v2125, %v2124
    %2130 = vmatpush.bf16.msra.mxu0 0
    %2131 = vmatpush.bf16.msra.mxu0 0
    %2132 = vmatpush.bf16.msra.mxu0 0
    %2133 = vmatpush.bf16.msra.mxu0 0
    %2134 = vmatpush.bf16.msra.mxu0 0
    %2135 = vmatpush.bf16.msra.mxu0 0
    %2136 = vmatpush.bf16.msra.mxu0 %v2127
    %2137 = vmatpush.bf16.msra.mxu0 %v2126
    %2138 = vmatmul.bf16.gmra.mxu0 %v1566
    %v2139 = vpop.f32.mrf.mxu0
    %v2140 = vadd.f32 %v2116, %v2139
    %v2141 = vpop.f32.mrf.mxu0
    %v2142 = vadd.f32 %v2116, %v2141
    %2143 = vdwg.mxu0
    %s2144 = scalar_lea.vmem %s9, 96
    %v2145 = vld [vmem:[%s2144] sm:$0xf]
    %v2146 = vld [vmem:[%s2144 + $0x4] sm:$0xf]
    %v2147 = vld [vmem:[%s2144 + $0x8] sm:$0xf]
    %v2148 = vld [vmem:[%s2144 + $0xc] sm:$0xf]
    %s2149 = scalar_lea.vmem %s12, 6
    %v2150 = vld [vmem:[%s2149] sm:$0x1]
    %v2152 = vperm.slane %v2150, 0
    %v2158 = vunpack.c.l.b16 %v2145
    %v2159 = vunpack.c.l.b16 %v2146
    %v2160 = vunpack.c.l.b16 %v2147
    %v2161 = vunpack.c.l.b16 %v2148
    %v2162 = vpack.c.b16 %v2159, %v2158
    %v2163 = vpack.c.b16 %v2161, %v2160
    %2166 = vmatpush.bf16.msra.mxu0 0
    %2167 = vmatpush.bf16.msra.mxu0 0
    %2168 = vmatpush.bf16.msra.mxu0 0
    %2169 = vmatpush.bf16.msra.mxu0 0
    %2170 = vmatpush.bf16.msra.mxu0 0
    %2171 = vmatpush.bf16.msra.mxu0 0
    %2172 = vmatpush.bf16.msra.mxu0 %v2163
    %2173 = vmatpush.bf16.msra.mxu0 %v2162
    %2174 = vmatmul.bf16.gmra.mxu0 %v1566
    %v2175 = vpop.f32.mrf.mxu0
    %v2176 = vadd.f32 %v2152, %v2175
    %v2177 = vpop.f32.mrf.mxu0
    %v2178 = vadd.f32 %v2152, %v2177
    %2179 = vdwg.mxu0
    %v2180 = vpack.c.bf16 %v2104, %v2104
    %v2181 = vpack.c.bf16 %v2106, %v2106
    %v2182 = vpack.c.bf16 %v2140, %v2140
    %v2183 = vpack.c.bf16 %v2142, %v2142
    %v2184 = vpack.c.bf16 %v2176, %v2176
    %v2185 = vpack.c.bf16 %v2178, %v2178
    %v2187 = vsel %vm366, %v2180, 0
    %v2190 = vsel %vm366, %v2182, 0
    %2192 = vmatpush.bf16.xpose.msra.mxu0 0
    %2193 = vmatpush.bf16.xpose.msra.mxu0 0
    %2194 = vmatpush.bf16.xpose.msra.mxu0 0
    %2195 = vmatpush.bf16.xpose.msra.mxu0 0
    %2196 = vmatpush.bf16.xpose.msra.mxu0 0
    %2197 = vmatpush.bf16.xpose.msra.mxu0 0
    %2198 = vmatpush.bf16.xpose.msra.mxu0 0
    %2199 = vmatpush.bf16.xpose.msra.mxu0 %v2190
    %2200 = vmatmul.bf16.gmra.mxu0 %v2187
    %v2201 = vpop.f32.mrf.mxu0
    %v2202 = vadd.f32 %v250, %v2201
    %v2203 = vpop.f32.mrf.mxu0
    %2204 = vdwg.mxu0
    %v2206 = vsel %vm366, %v2181, 0
    %v2209 = vsel %vm366, %v2183, 0
    %2211 = vmatpush.bf16.xpose.msra.mxu0 0
    %2212 = vmatpush.bf16.xpose.msra.mxu0 0
    %2213 = vmatpush.bf16.xpose.msra.mxu0 0
    %2214 = vmatpush.bf16.xpose.msra.mxu0 0
    %2215 = vmatpush.bf16.xpose.msra.mxu0 0
    %2216 = vmatpush.bf16.xpose.msra.mxu0 0
    %2217 = vmatpush.bf16.xpose.msra.mxu0 0
    %2218 = vmatpush.bf16.xpose.msra.mxu0 %v2209
    %2219 = vmatmul.bf16.gmra.mxu0 %v2206
    %v2220 = vpop.f32.mrf.mxu0
    %v2221 = vadd.f32 %v251, %v2220
    %v2222 = vpop.f32.mrf.mxu0
    %2223 = vdwg.mxu0
    %v2224 = vsel %vm366, %v2202, -inf
    %2225 = vmax.xlane.f32.xlu0 %v2224
    %v2226 = vpop.xlane.xlu0 %2225
    %v2227 = vsel %vm366, %v2221, -inf
    %2228 = vmax.xlane.f32.xlu0 %v2227
    %v2229 = vpop.xlane.xlu0 %2228
    %v2230 = vsub.f32 %v2202, %v2226
    %v2231 = vsub.f32 %v2221, %v2229
    %v2232 = vmul.f32 %v2230, 1.442695
    %v2233 = vpow.pop %v2232
    %v2234 = vmul.f32 %v2231, 1.442695
    %v2235 = vpow.pop %v2234
    %v2236 = vsel %vm366, %v2233, 0.0
    %2237 = vadd.xlane.f32.xlu0 %v2236
    %v2238 = vpop.xlane.xlu0 %2237
    %v2239 = vsel %vm366, %v2235, 0.0
    %2240 = vadd.xlane.f32.xlu0 %v2239
    %v2241 = vpop.xlane.xlu0 %2240
    %v2242 = vrcp.pop %v2238
    %v2243 = vmul.f32 %v2238, %v2242
    %v2244 = vsub.f32 1.0, %v2243
    %v2245 = vmul.f32 %v2242, %v2244
    %v2246 = vadd.f32 %v2242, %v2245
    %vm2247 = vweird.f32 %v2238
    %vm2248 = vweird.f32 %v2242
    %vm2249 = vmor %vm2247, %vm2248
    %v2250 = vsel %vm2249, %v2242, %v2246
    %v2251 = vand.u32 2147483647, %v2238
    %vm2252 = vcmp.eq.f32.partialorder %v2251, 8.507059e+37
    %v2253 = vand.u32 %v2238, 2147483648
    %v2254 = vor.u32 1.1754944e-38, %v2253
    %v2255 = vsel %vm2252, %v2254, %v2250
    %v2256 = vmul.f32 %v2233, %v2255
    %v2257 = vrcp.pop %v2241
    %v2258 = vmul.f32 %v2241, %v2257
    %v2259 = vsub.f32 1.0, %v2258
    %v2260 = vmul.f32 %v2257, %v2259
    %v2261 = vadd.f32 %v2257, %v2260
    %vm2262 = vweird.f32 %v2241
    %vm2263 = vweird.f32 %v2257
    %vm2264 = vmor %vm2262, %vm2263
    %v2265 = vsel %vm2264, %v2257, %v2261
    %v2266 = vand.u32 2147483647, %v2241
    %vm2267 = vcmp.eq.f32.partialorder %v2266, 8.507059e+37
    %v2268 = vand.u32 %v2241, 2147483648
    %v2269 = vor.u32 1.1754944e-38, %v2268
    %v2270 = vsel %vm2267, %v2269, %v2265
    %v2271 = vmul.f32 %v2235, %v2270
    %v2272 = vpack.c.bf16 %v2256, %v2256
    %v2273 = vpack.c.bf16 %v2271, %v2271
    %v2275 = vsel %vm366, %v2272, 0
    %v2278 = vsel %vm458, %v2184, 0
    %2280 = vmatpush.bf16.msra.mxu0 0
    %2281 = vmatpush.bf16.msra.mxu0 0
    %2282 = vmatpush.bf16.msra.mxu0 0
    %2283 = vmatpush.bf16.msra.mxu0 0
    %2284 = vmatpush.bf16.msra.mxu0 0
    %2285 = vmatpush.bf16.msra.mxu0 0
    %2286 = vmatpush.bf16.msra.mxu0 0
    %2287 = vmatpush.bf16.msra.mxu0 %v2278
    %2288 = vmatmul.bf16.gmra.mxu0 %v2275
    %v2289 = vpop.f32.mrf.mxu0
    %v2290 = vadd.f32 0.0, %v2289
    %v2291 = vpop.f32.mrf.mxu0
    %2292 = vdwg.mxu0
    %v2294 = vsel %vm366, %v2273, 0
    %v2297 = vsel %vm458, %v2185, 0
    %2299 = vmatpush.bf16.msra.mxu0 0
    %2300 = vmatpush.bf16.msra.mxu0 0
    %2301 = vmatpush.bf16.msra.mxu0 0
    %2302 = vmatpush.bf16.msra.mxu0 0
    %2303 = vmatpush.bf16.msra.mxu0 0
    %2304 = vmatpush.bf16.msra.mxu0 0
    %2305 = vmatpush.bf16.msra.mxu0 0
    %2306 = vmatpush.bf16.msra.mxu0 %v2297
    %2307 = vmatmul.bf16.gmra.mxu0 %v2294
    %v2308 = vpop.f32.mrf.mxu0
    %v2309 = vadd.f32 0.0, %v2308
    %v2310 = vpop.f32.mrf.mxu0
    %2311 = vdwg.mxu0
    %v2312 = vpack.c.bf16 %v2309, %v2290
    %s2313 = scalar_lea.vmem %s13, 24
    %v2314 = vld [vmem:[%s2313] sm:$0xf]
    %v2316 = vsel %vm366, %v2312, 0
    %v2319 = vsel %vm458, %v2314, 0
    %2321 = vmatpush.bf16.msra.mxu0 0
    %2322 = vmatpush.bf16.msra.mxu0 0
    %2323 = vmatpush.bf16.msra.mxu0 0
    %2324 = vmatpush.bf16.msra.mxu0 0
    %2325 = vmatpush.bf16.msra.mxu0 0
    %2326 = vmatpush.bf16.msra.mxu0 0
    %2327 = vmatpush.bf16.msra.mxu0 0
    %2328 = vmatpush.bf16.msra.mxu0 %v2319
    %2329 = vmatmul.bf16.gmra.mxu0 %v2316
    %v2330 = vpop.f32.mrf.mxu0
    %v2331 = vadd.f32 0.0, %v2330
    %v2332 = vpop.f32.mrf.mxu0
    %v2333 = vadd.f32 0.0, %v2332
    %2334 = vdwg.mxu0
    %v2335 = vadd.f32 %v2068, %v2331
    %v2336 = vadd.f32 %v2070, %v2333
    %s2337 = scalar_lea.vmem %s7, 112
    %v2338 = vld [vmem:[%s2337] sm:$0xf]
    %v2339 = vld [vmem:[%s2337 + $0x4] sm:$0xf]
    %v2340 = vld [vmem:[%s2337 + $0x8] sm:$0xf]
    %v2341 = vld [vmem:[%s2337 + $0xc] sm:$0xf]
    %s2342 = scalar_lea.vmem %s10, 7
    %v2343 = vld [vmem:[%s2342] sm:$0x1]
    %v2345 = vperm.slane %v2343, 0
    %v2351 = vunpack.c.l.b16 %v2338
    %v2352 = vunpack.c.l.b16 %v2339
    %v2353 = vunpack.c.l.b16 %v2340
    %v2354 = vunpack.c.l.b16 %v2341
    %v2355 = vpack.c.b16 %v2352, %v2351
    %v2356 = vpack.c.b16 %v2354, %v2353
    %2359 = vmatpush.bf16.msra.mxu0 0
    %2360 = vmatpush.bf16.msra.mxu0 0
    %2361 = vmatpush.bf16.msra.mxu0 0
    %2362 = vmatpush.bf16.msra.mxu0 0
    %2363 = vmatpush.bf16.msra.mxu0 0
    %2364 = vmatpush.bf16.msra.mxu0 0
    %2365 = vmatpush.bf16.msra.mxu0 %v2356
    %2366 = vmatpush.bf16.msra.mxu0 %v2355
    %2367 = vmatmul.bf16.gmra.mxu0 %v1566
    %v2368 = vpop.f32.mrf.mxu0
    %v2369 = vadd.f32 %v2345, %v2368
    %v2370 = vpop.f32.mrf.mxu0
    %v2371 = vadd.f32 %v2345, %v2370
    %2372 = vdwg.mxu0
    %s2373 = scalar_lea.vmem %s8, 112
    %v2374 = vld [vmem:[%s2373] sm:$0xf]
    %v2375 = vld [vmem:[%s2373 + $0x4] sm:$0xf]
    %v2376 = vld [vmem:[%s2373 + $0x8] sm:$0xf]
    %v2377 = vld [vmem:[%s2373 + $0xc] sm:$0xf]
    %s2378 = scalar_lea.vmem %s11, 7
    %v2379 = vld [vmem:[%s2378] sm:$0x1]
    %v2381 = vperm.slane %v2379, 0
    %v2387 = vunpack.c.l.b16 %v2374
    %v2388 = vunpack.c.l.b16 %v2375
    %v2389 = vunpack.c.l.b16 %v2376
    %v2390 = vunpack.c.l.b16 %v2377
    %v2391 = vpack.c.b16 %v2388, %v2387
    %v2392 = vpack.c.b16 %v2390, %v2389
    %2395 = vmatpush.bf16.msra.mxu0 0
    %2396 = vmatpush.bf16.msra.mxu0 0
    %2397 = vmatpush.bf16.msra.mxu0 0
    %2398 = vmatpush.bf16.msra.mxu0 0
    %2399 = vmatpush.bf16.msra.mxu0 0
    %2400 = vmatpush.bf16.msra.mxu0 0
    %2401 = vmatpush.bf16.msra.mxu0 %v2392
    %2402 = vmatpush.bf16.msra.mxu0 %v2391
    %2403 = vmatmul.bf16.gmra.mxu0 %v1566
    %v2404 = vpop.f32.mrf.mxu0
    %v2405 = vadd.f32 %v2381, %v2404
    %v2406 = vpop.f32.mrf.mxu0
    %v2407 = vadd.f32 %v2381, %v2406
    %2408 = vdwg.mxu0
    %s2409 = scalar_lea.vmem %s9, 112
    %v2410 = vld [vmem:[%s2409] sm:$0xf]
    %v2411 = vld [vmem:[%s2409 + $0x4] sm:$0xf]
    %v2412 = vld [vmem:[%s2409 + $0x8] sm:$0xf]
    %v2413 = vld [vmem:[%s2409 + $0xc] sm:$0xf]
    %s2414 = scalar_lea.vmem %s12, 7
    %v2415 = vld [vmem:[%s2414] sm:$0x1]
    %v2417 = vperm.slane %v2415, 0
    %v2423 = vunpack.c.l.b16 %v2410
    %v2424 = vunpack.c.l.b16 %v2411
    %v2425 = vunpack.c.l.b16 %v2412
    %v2426 = vunpack.c.l.b16 %v2413
    %v2427 = vpack.c.b16 %v2424, %v2423
    %v2428 = vpack.c.b16 %v2426, %v2425
    %2431 = vmatpush.bf16.msra.mxu0 0
    %2432 = vmatpush.bf16.msra.mxu0 0
    %2433 = vmatpush.bf16.msra.mxu0 0
    %2434 = vmatpush.bf16.msra.mxu0 0
    %2435 = vmatpush.bf16.msra.mxu0 0
    %2436 = vmatpush.bf16.msra.mxu0 0
    %2437 = vmatpush.bf16.msra.mxu0 %v2428
    %2438 = vmatpush.bf16.msra.mxu0 %v2427
    %2439 = vmatmul.bf16.gmra.mxu0 %v1566
    %v2440 = vpop.f32.mrf.mxu0
    %v2441 = vadd.f32 %v2417, %v2440
    %v2442 = vpop.f32.mrf.mxu0
    %v2443 = vadd.f32 %v2417, %v2442
    %2444 = vdwg.mxu0
    %v2445 = vpack.c.bf16 %v2369, %v2369
    %v2446 = vpack.c.bf16 %v2371, %v2371
    %v2447 = vpack.c.bf16 %v2405, %v2405
    %v2448 = vpack.c.bf16 %v2407, %v2407
    %v2449 = vpack.c.bf16 %v2441, %v2441
    %v2450 = vpack.c.bf16 %v2443, %v2443
    %v2452 = vsel %vm366, %v2445, 0
    %v2455 = vsel %vm366, %v2447, 0
    %2457 = vmatpush.bf16.xpose.msra.mxu0 0
    %2458 = vmatpush.bf16.xpose.msra.mxu0 0
    %2459 = vmatpush.bf16.xpose.msra.mxu0 0
    %2460 = vmatpush.bf16.xpose.msra.mxu0 0
    %2461 = vmatpush.bf16.xpose.msra.mxu0 0
    %2462 = vmatpush.bf16.xpose.msra.mxu0 0
    %2463 = vmatpush.bf16.xpose.msra.mxu0 0
    %2464 = vmatpush.bf16.xpose.msra.mxu0 %v2455
    %2465 = vmatmul.bf16.gmra.mxu0 %v2452
    %v2466 = vpop.f32.mrf.mxu0
    %v2467 = vadd.f32 %v250, %v2466
    %v2468 = vpop.f32.mrf.mxu0
    %2469 = vdwg.mxu0
    %v2471 = vsel %vm366, %v2446, 0
    %v2474 = vsel %vm366, %v2448, 0
    %2476 = vmatpush.bf16.xpose.msra.mxu0 0
    %2477 = vmatpush.bf16.xpose.msra.mxu0 0
    %2478 = vmatpush.bf16.xpose.msra.mxu0 0
    %2479 = vmatpush.bf16.xpose.msra.mxu0 0
    %2480 = vmatpush.bf16.xpose.msra.mxu0 0
    %2481 = vmatpush.bf16.xpose.msra.mxu0 0
    %2482 = vmatpush.bf16.xpose.msra.mxu0 0
    %2483 = vmatpush.bf16.xpose.msra.mxu0 %v2474
    %2484 = vmatmul.bf16.gmra.mxu0 %v2471
    %v2485 = vpop.f32.mrf.mxu0
    %v2486 = vadd.f32 %v251, %v2485
    %v2487 = vpop.f32.mrf.mxu0
    %2488 = vdwg.mxu0
    %v2489 = vsel %vm366, %v2467, -inf
    %2490 = vmax.xlane.f32.xlu0 %v2489
    %v2491 = vpop.xlane.xlu0 %2490
    %v2492 = vsel %vm366, %v2486, -inf
    %2493 = vmax.xlane.f32.xlu0 %v2492
    %v2494 = vpop.xlane.xlu0 %2493
    %v2495 = vsub.f32 %v2467, %v2491
    %v2496 = vsub.f32 %v2486, %v2494
    %v2497 = vmul.f32 %v2495, 1.442695
    %v2498 = vpow.pop %v2497
    %v2499 = vmul.f32 %v2496, 1.442695
    %v2500 = vpow.pop %v2499
    %v2501 = vsel %vm366, %v2498, 0.0
    %2502 = vadd.xlane.f32.xlu0 %v2501
    %v2503 = vpop.xlane.xlu0 %2502
    %v2504 = vsel %vm366, %v2500, 0.0
    %2505 = vadd.xlane.f32.xlu0 %v2504
    %v2506 = vpop.xlane.xlu0 %2505
    %v2507 = vrcp.pop %v2503
    %v2508 = vmul.f32 %v2503, %v2507
    %v2509 = vsub.f32 1.0, %v2508
    %v2510 = vmul.f32 %v2507, %v2509
    %v2511 = vadd.f32 %v2507, %v2510
    %vm2512 = vweird.f32 %v2503
    %vm2513 = vweird.f32 %v2507
    %vm2514 = vmor %vm2512, %vm2513
    %v2515 = vsel %vm2514, %v2507, %v2511
    %v2516 = vand.u32 2147483647, %v2503
    %vm2517 = vcmp.eq.f32.partialorder %v2516, 8.507059e+37
    %v2518 = vand.u32 %v2503, 2147483648
    %v2519 = vor.u32 1.1754944e-38, %v2518
    %v2520 = vsel %vm2517, %v2519, %v2515
    %v2521 = vmul.f32 %v2498, %v2520
    %v2522 = vrcp.pop %v2506
    %v2523 = vmul.f32 %v2506, %v2522
    %v2524 = vsub.f32 1.0, %v2523
    %v2525 = vmul.f32 %v2522, %v2524
    %v2526 = vadd.f32 %v2522, %v2525
    %vm2527 = vweird.f32 %v2506
    %vm2528 = vweird.f32 %v2522
    %vm2529 = vmor %vm2527, %vm2528
    %v2530 = vsel %vm2529, %v2522, %v2526
    %v2531 = vand.u32 2147483647, %v2506
    %vm2532 = vcmp.eq.f32.partialorder %v2531, 8.507059e+37
    %v2533 = vand.u32 %v2506, 2147483648
    %v2534 = vor.u32 1.1754944e-38, %v2533
    %v2535 = vsel %vm2532, %v2534, %v2530
    %v2536 = vmul.f32 %v2500, %v2535
    %v2537 = vpack.c.bf16 %v2521, %v2521
    %v2538 = vpack.c.bf16 %v2536, %v2536
    %v2540 = vsel %vm366, %v2537, 0
    %v2543 = vsel %vm458, %v2449, 0
    %2545 = vmatpush.bf16.msra.mxu0 0
    %2546 = vmatpush.bf16.msra.mxu0 0
    %2547 = vmatpush.bf16.msra.mxu0 0
    %2548 = vmatpush.bf16.msra.mxu0 0
    %2549 = vmatpush.bf16.msra.mxu0 0
    %2550 = vmatpush.bf16.msra.mxu0 0
    %2551 = vmatpush.bf16.msra.mxu0 0
    %2552 = vmatpush.bf16.msra.mxu0 %v2543
    %2553 = vmatmul.bf16.gmra.mxu0 %v2540
    %v2554 = vpop.f32.mrf.mxu0
    %v2555 = vadd.f32 0.0, %v2554
    %v2556 = vpop.f32.mrf.mxu0
    %2557 = vdwg.mxu0
    %v2559 = vsel %vm366, %v2538, 0
    %v2562 = vsel %vm458, %v2450, 0
    %2564 = vmatpush.bf16.msra.mxu0 0
    %2565 = vmatpush.bf16.msra.mxu0 0
    %2566 = vmatpush.bf16.msra.mxu0 0
    %2567 = vmatpush.bf16.msra.mxu0 0
    %2568 = vmatpush.bf16.msra.mxu0 0
    %2569 = vmatpush.bf16.msra.mxu0 0
    %2570 = vmatpush.bf16.msra.mxu0 0
    %2571 = vmatpush.bf16.msra.mxu0 %v2562
    %2572 = vmatmul.bf16.gmra.mxu0 %v2559
    %v2573 = vpop.f32.mrf.mxu0
    %v2574 = vadd.f32 0.0, %v2573
    %v2575 = vpop.f32.mrf.mxu0
    %2576 = vdwg.mxu0
    %v2577 = vpack.c.bf16 %v2574, %v2555
    %s2578 = scalar_lea.vmem %s13, 28
    %v2579 = vld [vmem:[%s2578] sm:$0xf]
    %v2581 = vsel %vm366, %v2577, 0
    %v2584 = vsel %vm458, %v2579, 0
    %2586 = vmatpush.bf16.msra.mxu0 0
    %2587 = vmatpush.bf16.msra.mxu0 0
    %2588 = vmatpush.bf16.msra.mxu0 0
    %2589 = vmatpush.bf16.msra.mxu0 0
    %2590 = vmatpush.bf16.msra.mxu0 0
    %2591 = vmatpush.bf16.msra.mxu0 0
    %2592 = vmatpush.bf16.msra.mxu0 0
    %2593 = vmatpush.bf16.msra.mxu0 %v2584
    %2594 = vmatmul.bf16.gmra.mxu0 %v2581
    %v2595 = vpop.f32.mrf.mxu0
    %v2596 = vadd.f32 0.0, %v2595
    %v2597 = vpop.f32.mrf.mxu0
    %v2598 = vadd.f32 0.0, %v2597
    %2599 = vdwg.mxu0
    %v2600 = vadd.f32 %v2335, %v2596
    %v2601 = vadd.f32 %v2336, %v2598
    %s2602 = scalar_lea.vmem %s14, 1
    %v2603 = vld [vmem:[%s2602] sm:$0x1]
    %v2605 = vperm.slane %v2603, 0
    %v2607 = vadd.f32 %v2600, %v2605
    %v2608 = vadd.f32 %v2601, %v2605
    %v2609 = vadd.f32 %v2607, %v1540
    %v2610 = vadd.f32 %v2608, %v1541
    %s2611 = scalar_lea.vmem %s15, 1
    %v2612 = vld [vmem:[%s2611] sm:$0x1]
    %s2613 = scalar_lea.vmem %s16, 1
    %v2614 = vld [vmem:[%s2613] sm:$0x1]
    %v2615 = vsel %vm182, %v2609, 0.0
    %2616 = vadd.xlane.f32.xlu0 %v2615
    %v2617 = vpop.xlane.xlu0 %2616
    %v2618 = vsel %vm182, %v2610, 0.0
    %2619 = vadd.xlane.f32.xlu0 %v2618
    %v2620 = vpop.xlane.xlu0 %2619
    %v2621 = vmul.f32 %v2617, %v195
    %v2622 = vmul.f32 %v2620, %v195
    %v2623 = vsub.f32 %v2609, %v2621
    %v2624 = vsub.f32 %v2610, %v2622
    %v2625 = vmul.f32 %v2623, %v2623
    %v2626 = vmul.f32 %v2624, %v2624
    %v2627 = vsel %vm182, %v2625, 0.0
    %2628 = vadd.xlane.f32.xlu0 %v2627
    %v2629 = vpop.xlane.xlu0 %2628
    %v2630 = vsel %vm182, %v2626, 0.0
    %2631 = vadd.xlane.f32.xlu0 %v2630
    %v2632 = vpop.xlane.xlu0 %2631
    %v2633 = vmul.f32 %v2629, %v195
    %v2634 = vmul.f32 %v2632, %v195
    %v2635 = vadd.f32 %v2633, 1e-12
    %v2636 = vadd.f32 %v2634, 1e-12
    %v2637 = vrsqrt.pop %v2635
    %v2638 = vmul.f32 %v2637, %v2635
    %v2639 = vmul.f32 %v2638, %v2637
    %v2640 = vmul.f32 0.5, %v2639
    %v2641 = vsub.f32 1.5, %v2640
    %v2642 = vmul.f32 %v2637, %v2641
    %vm2643 = vweird.f32 %v2635
    %vm2644 = vweird.f32 %v2637
    %vm2645 = vmor %vm2643, %vm2644
    %v2646 = vsel %vm2645, %v2637, %v2642
    %v2647 = vrsqrt.pop %v2636
    %v2648 = vmul.f32 %v2647, %v2636
    %v2649 = vmul.f32 %v2648, %v2647
    %v2650 = vmul.f32 0.5, %v2649
    %v2651 = vsub.f32 1.5, %v2650
    %v2652 = vmul.f32 %v2647, %v2651
    %vm2653 = vweird.f32 %v2636
    %vm2654 = vweird.f32 %v2647
    %vm2655 = vmor %vm2653, %vm2654
    %v2656 = vsel %vm2655, %v2647, %v2652
    %v2657 = vmul.f32 %v2623, %v2646
    %v2658 = vmul.f32 %v2624, %v2656
    %v2660 = vperm.slane %v2612, 0
    %v2662 = vmul.f32 %v2657, %v2660
    %v2663 = vmul.f32 %v2658, %v2660
    %v2665 = vperm.slane %v2614, 0
    %v2667 = vadd.f32 %v2662, %v2665
    %v2668 = vadd.f32 %v2663, %v2665
    %v2669 = vpack.c.bf16 %v2668, %v2667
    %s2670 = scalar_lea.vmem %s17, 16
    %v2671 = vld [vmem:[%s2670] sm:$0xf]
    %v2672 = vld [vmem:[%s2670 + $0x4] sm:$0xf]
    %v2673 = vld [vmem:[%s2670 + $0x8] sm:$0xf]
    %v2674 = vld [vmem:[%s2670 + $0xc] sm:$0xf]
    %s2675 = scalar_lea.vmem %s18, 1
    %v2676 = vld [vmem:[%s2675] sm:$0x1]
    %v2678 = vperm.slane %v2676, 0
    %v2684 = vunpack.c.l.b16 %v2671
    %v2685 = vunpack.c.l.b16 %v2672
    %v2686 = vunpack.c.l.b16 %v2673
    %v2687 = vunpack.c.l.b16 %v2674
    %v2688 = vpack.c.b16 %v2685, %v2684
    %v2689 = vpack.c.b16 %v2687, %v2686
    %v2693 = vsel %vm182, %v2669, 0
    %2695 = vmatpush.bf16.msra.mxu0 0
    %2696 = vmatpush.bf16.msra.mxu0 0
    %2697 = vmatpush.bf16.msra.mxu0 0
    %2698 = vmatpush.bf16.msra.mxu0 0
    %2699 = vmatpush.bf16.msra.mxu0 0
    %2700 = vmatpush.bf16.msra.mxu0 0
    %2701 = vmatpush.bf16.msra.mxu0 %v2689
    %2702 = vmatpush.bf16.msra.mxu0 %v2688
    %2703 = vmatmul.bf16.gmra.mxu0 %v2693
    %v2704 = vpop.f32.mrf.mxu0
    %v2705 = vadd.f32 %v2678, %v2704
    %v2706 = vpop.f32.mrf.mxu0
    %v2707 = vadd.f32 %v2678, %v2706
    %2708 = vdwg.mxu0
    %v2709 = vmul.f32 %v2705, %v2705
    %v2710 = vmul.f32 %v2707, %v2707
    %v2711 = vmul.f32 %v2705, %v2709
    %v2712 = vmul.f32 %v2707, %v2710
    %v2713 = vmul.f32 %v2711, 0.044715
    %v2714 = vmul.f32 %v2712, 0.044715
    %v2715 = vadd.f32 %v2705, %v2713
    %v2716 = vadd.f32 %v2707, %v2714
    %v2717 = vmul.f32 %v2715, 0.7978846
    %v2718 = vmul.f32 %v2716, 0.7978846
    %v2719 = vtanh.pop %v2717
    %v2720 = vtanh.pop %v2718
    %v2721 = vadd.f32 %v2719, 1.0
    %v2722 = vadd.f32 %v2720, 1.0
    %v2723 = vmul.f32 %v2721, 0.5
    %v2724 = vmul.f32 %v2722, 0.5
    %v2725 = vmul.f32 %v2705, %v2723
    %v2726 = vmul.f32 %v2707, %v2724
    %v2727 = vpack.c.bf16 %v2726, %v2725
    %s2728 = scalar_lea.vmem %s19, 32
    %v2729 = vld [vmem:[%s2728] sm:$0xf]
    %v2730 = vld [vmem:[%s2728 + $0x4] sm:$0xf]
    %v2731 = vld [vmem:[%s2728 + $0x8] sm:$0xf]
    %v2732 = vld [vmem:[%s2728 + $0xc] sm:$0xf]
    %v2733 = vld [vmem:[%s2728 + $0x10] sm:$0xf]
    %v2734 = vld [vmem:[%s2728 + $0x14] sm:$0xf]
    %v2735 = vld [vmem:[%s2728 + $0x18] sm:$0xf]
    %v2736 = vld [vmem:[%s2728 + $0x1c] sm:$0xf]
    %s2737 = scalar_lea.vmem %s20, 1
    %v2738 = vld [vmem:[%s2737] sm:$0x1]
    %v2740 = vperm.slane %v2738, 0
    %v2750 = vunpack.c.l.b16 %v2729
    %v2751 = vunpack.c.l.b16 %v2730
    %v2752 = vunpack.c.l.b16 %v2731
    %v2753 = vunpack.c.l.b16 %v2732
    %v2754 = vunpack.c.l.b16 %v2733
    %v2755 = vunpack.c.l.b16 %v2734
    %v2756 = vunpack.c.l.b16 %v2735
    %v2757 = vunpack.c.l.b16 %v2736
    %v2758 = vpack.c.b16 %v2751, %v2750
    %v2759 = vpack.c.b16 %v2753, %v2752
    %v2760 = vpack.c.b16 %v2755, %v2754
    %v2761 = vpack.c.b16 %v2757, %v2756
    %v2767 = vsel %vm1466, %v2727, 0
    %2769 = vmatpush.bf16.msra.mxu0 0
    %2770 = vmatpush.bf16.msra.mxu0 0
    %2771 = vmatpush.bf16.msra.mxu0 0
    %2772 = vmatpush.bf16.msra.mxu0 0
    %2773 = vmatpush.bf16.msra.mxu0 %v2761
    %2774 = vmatpush.bf16.msra.mxu0 %v2760
    %2775 = vmatpush.bf16.msra.mxu0 %v2759
    %2776 = vmatpush.bf16.msra.mxu0 %v2758
    %2777 = vmatmul.bf16.gmra.mxu0 %v2767
    %v2778 = vpop.f32.mrf.mxu0
    %v2779 = vadd.f32 %v2740, %v2778
    %v2780 = vpop.f32.mrf.mxu0
    %v2781 = vadd.f32 %v2740, %v2780
    %2782 = vdwg.mxu0
    %v2783 = vadd.f32 %v2779, %v2667
    %v2784 = vadd.f32 %v2781, %v2668
    %s2785 = scalar_lea.vmem %s21, 1
    %v2786 = vld [vmem:[%s2785] sm:$0x1]
    %s2787 = scalar_lea.vmem %s22, 1
    %v2788 = vld [vmem:[%s2787] sm:$0x1]
    %v2789 = vsel %vm182, %v2783, 0.0
    %2790 = vadd.xlane.f32.xlu0 %v2789
    %v2791 = vpop.xlane.xlu0 %2790
    %v2792 = vsel %vm182, %v2784, 0.0
    %2793 = vadd.xlane.f32.xlu0 %v2792
    %v2794 = vpop.xlane.xlu0 %2793
    %v2795 = vmul.f32 %v2791, %v195
    %v2796 = vmul.f32 %v2794, %v195
    %v2797 = vsub.f32 %v2783, %v2795
    %v2798 = vsub.f32 %v2784, %v2796
    %v2799 = vmul.f32 %v2797, %v2797
    %v2800 = vmul.f32 %v2798, %v2798
    %v2801 = vsel %vm182, %v2799, 0.0
    %2802 = vadd.xlane.f32.xlu0 %v2801
    %v2803 = vpop.xlane.xlu0 %2802
    %v2804 = vsel %vm182, %v2800, 0.0
    %2805 = vadd.xlane.f32.xlu0 %v2804
    %v2806 = vpop.xlane.xlu0 %2805
    %v2807 = vmul.f32 %v2803, %v195
    %v2808 = vmul.f32 %v2806, %v195
    %v2809 = vadd.f32 %v2807, 1e-12
    %v2810 = vadd.f32 %v2808, 1e-12
    %v2811 = vrsqrt.pop %v2809
    %v2812 = vmul.f32 %v2811, %v2809
    %v2813 = vmul.f32 %v2812, %v2811
    %v2814 = vmul.f32 0.5, %v2813
    %v2815 = vsub.f32 1.5, %v2814
    %v2816 = vmul.f32 %v2811, %v2815
    %vm2817 = vweird.f32 %v2809
    %vm2818 = vweird.f32 %v2811
    %vm2819 = vmor %vm2817, %vm2818
    %v2820 = vsel %vm2819, %v2811, %v2816
    %v2821 = vrsqrt.pop %v2810
    %v2822 = vmul.f32 %v2821, %v2810
    %v2823 = vmul.f32 %v2822, %v2821
    %v2824 = vmul.f32 0.5, %v2823
    %v2825 = vsub.f32 1.5, %v2824
    %v2826 = vmul.f32 %v2821, %v2825
    %vm2827 = vweird.f32 %v2810
    %vm2828 = vweird.f32 %v2821
    %vm2829 = vmor %vm2827, %vm2828
    %v2830 = vsel %vm2829, %v2821, %v2826
    %v2831 = vmul.f32 %v2797, %v2820
    %v2832 = vmul.f32 %v2798, %v2830
    %v2834 = vperm.slane %v2786, 0
    %v2836 = vmul.f32 %v2831, %v2834
    %v2837 = vmul.f32 %v2832, %v2834
    %v2839 = vperm.slane %v2788, 0
    %v2841 = vadd.f32 %v2836, %v2839
    %v2842 = vadd.f32 %v2837, %v2839
    %v2843 = vpack.c.bf16 %v2841, %v2841
    %v2844 = vpack.c.bf16 %v2842, %v2842
    %v2845 = vld [vmem:[%s23] sm:$0xf]
    %v2846 = vld [vmem:[%s23 + $0x4] sm:$0xf]
    %v2847 = vld [vmem:[%s23 + $0x8] sm:$0xf]
    %v2848 = vld [vmem:[%s23 + $0xc] sm:$0xf]
    %v2849 = vld [vmem:[%s24] sm:$0x1]
    %v2851 = vperm.slane %v2849, 0
    %v2855 = vunpack.c.l.b16 %v2843
    %v2856 = vunpack.c.l.b16 %v2844
    %v2857 = vrot.slane %v2856, 7
    %vm2858 = vcmask 1041409
    %v2859 = vsel %vm2858, %v2857, %v2855
    %v2860 = vpack.c.b16 %v2859, %v2859
    %v2865 = vunpack.c.l.b16 %v2845
    %v2866 = vunpack.c.l.b16 %v2846
    %v2867 = vunpack.c.l.b16 %v2847
    %v2868 = vunpack.c.l.b16 %v2848
    %v2869 = vpack.c.b16 %v2866, %v2865
    %v2870 = vpack.c.b16 %v2868, %v2867
    %v2874 = vsel %vm182, %v2860, 0
    %2876 = vmatpush.bf16.msra.mxu0 0
    %2877 = vmatpush.bf16.msra.mxu0 0
    %2878 = vmatpush.bf16.msra.mxu0 0
    %2879 = vmatpush.bf16.msra.mxu0 0
    %2880 = vmatpush.bf16.msra.mxu0 0
    %2881 = vmatpush.bf16.msra.mxu0 0
    %2882 = vmatpush.bf16.msra.mxu0 %v2870
    %2883 = vmatpush.bf16.msra.mxu0 %v2869
    %2884 = vmatmul.bf16.gmra.mxu0 %v2874
    %v2885 = vpop.f32.mrf.mxu0
    %v2886 = vadd.f32 %v2851, %v2885
    %v2887 = vpop.f32.mrf.mxu0
    %2888 = vdwg.mxu0
    %vm2889 = vcmask 17408
    %2890 = vst.msk [vmem:[#allocation2] sm:$0x3] %vm2889, %v2886
    // Predicated region
    $region102: #{forward.1} parent=1 // pred_check
      _
    $region103: #{forward.1} parent=1 // pred_check_branch
      %2892 = sbr.rel (0) target = $region105
    $region104: #{forward.1} parent=1 // pred_region
      %2894 = vsyncadd [#allocation3], 0
      %s2896 = sshll.u32 [#allocation2], 4
      %s2897 = int_to_ptr.vmem [resolvable:$true] %s2896
      %s2898 = sshll.u32 %s25, 4
      %s2899 = int_to_ptr.hbm [resolvable:$true] %s2898
      %2901 = dma.vmem_to_hbm [thread:$0]  %s2897, 32, %s2899, [#allocation3]
    $region105: #{forward.1} parent=1 // pred_fallthru
      _
    // Predicated region
    $region106: #{forward.1} parent=1 // pred_check
      _
    $region107: #{forward.1} parent=1 // pred_check_branch
      %2903 = sbr.rel (0) target = $region109
    $region108: #{forward.1} parent=1 // pred_region
      %2905 = dma.done [#allocation3], 32
    $region109: #{forward.1} parent=1 // pred_fallthru
      _
    %2906 = vsyncpa [#allocation3], 1

</llo_original>
